<compile_context>
chip_gen: v7x
topology: tpu7x:2x2x1
jax: 0.10.0
libtpu: 0.0.40
codegen_flags: <defaults>
</compile_context>

<pallas_src>
import functools

import jax
import jax.numpy as jnp
import numpy as np
from jax.experimental import pallas as pl
from jax.experimental.pallas import tpu as pltpu


def _bottleneck_kernel(x_ref, w1_ref, b1_ref, w2_ref, b2_ref, w3_ref, b3_ref,
                       o_ref, pad_ref, *, stride):
    # x_ref  : (1, H, W, Cin)        bf16
    # w1_ref : (Cin, Cmid)           bf16  1x1 conv, BN1 scale folded in
    # w2_ref : (9*Cmid, Cmid)        bf16  3x3 conv, rows = (kh, kw, cin), BN2 folded
    # w3_ref : (Cmid, Cout)          bf16  1x1 conv, BN3 folded
    # bX_ref : (1, C)                f32   folded BN shift (beta - mean*scale)
    # o_ref  : (1, Ho, Wo, Cout)     bf16
    # pad_ref: (H+2, W+2, Cmid)      bf16  persistent padded-plane scratch
    H, W, Cin = x_ref.shape[1], x_ref.shape[2], x_ref.shape[3]
    Cmid = w1_ref.shape[1]
    Cout = w3_ref.shape[1]
    Ho, Wo = o_ref.shape[1], o_ref.shape[2]

    # ---- conv1 (1x1) + BN1 (scale folded into w1) + ReLU --------------------
    x = x_ref[0].reshape(H * W, Cin)                                   # bf16
    t1 = jnp.dot(x, w1_ref[...], preferred_element_type=jnp.float32)
    t1 = jnp.maximum(t1 + b1_ref[...], 0.0)                            # f32
    t1b = t1.astype(jnp.bfloat16).reshape(H, W, Cmid)

    # ---- conv2 (3x3, padding=1, stride) + BN2 + ReLU -------------------------
    # Persistent padded scratch: zero only the 1-pixel border (done every step,
    # not just step 0, so the "parallel" grid stays correct when steps are split
    # across TensorCores), then store the interior once.
    pad_ref[0:1, :, :] = jnp.zeros((1, W + 2, Cmid), jnp.bfloat16)
    pad_ref[H + 1:H + 2, :, :] = jnp.zeros((1, W + 2, Cmid), jnp.bfloat16)
    pad_ref[:, 0:1, :] = jnp.zeros((H + 2, 1, Cmid), jnp.bfloat16)
    pad_ref[:, W + 1:W + 2, :] = jnp.zeros((H + 2, 1, Cmid), jnp.bfloat16)
    pad_ref[1:H + 1, 1:W + 1, :] = t1b

    # im2col: 9 shifted windows concatenated along the lane axis (each piece is
    # Cmid wide -> lane-aligned when Cmid % 128 == 0), one matmul with K=9*Cmid.
    wins = [pad_ref[kh:kh + H, kw:kw + W, :]
            for kh in range(3) for kw in range(3)]
    patches = jnp.concatenate(wins, axis=-1)                           # (H,W,9*Cmid)
    if stride > 1:
        # Subsample BEFORE the matmul: keep only rows at output positions
        # (h % stride == 0, w % stride == 0). Requires stride | H and stride | W.
        patches = patches.reshape(Ho, stride, Wo, stride, 9 * Cmid)[:, 0, :, 0, :]
    patches = patches.reshape(Ho * Wo, 9 * Cmid)
    y = jnp.dot(patches, w2_ref[...], preferred_element_type=jnp.float32)
    t2 = jnp.maximum(y + b2_ref[...], 0.0)                             # f32

    # ---- conv3 (1x1, expansion=4) + BN3 + ReLU -------------------------------
    # downsample is None in this configuration -> no residual add (matches the
    # PyTorch forward exactly).
    t3 = jnp.dot(t2.astype(jnp.bfloat16), w3_ref[...],
                 preferred_element_type=jnp.float32)
    t3 = jnp.maximum(t3 + b3_ref[...], 0.0)
    o_ref[0] = t3.reshape(Ho, Wo, Cout).astype(o_ref.dtype)


def _round_up(v, m):
    return (v + m - 1) // m * m


def bottleneck3conv_pallas(x_nhwc, params, stride=1):
    """Forward pass of Bottleneck3Conv. Input/output are NHWC (channels-last).

    params = (w1, s1, b1, w2, s2, b2, w3, s3, b3) with sX/bX the eval-mode
    folded BatchNorm scale/shift (scale = gamma/sqrt(var+eps),
    shift = beta - mean*scale). Output dtype is bfloat16.
    """
    (w1, s1, b1, w2, s2, b2, w3, s3, b3) = params
    N, H, W, Cin = x_nhwc.shape
    Cmid = w1.shape[1]
    Cout = w3.shape[1]
    if stride > 1:
        assert H % stride == 0 and W % stride == 0, "stride must divide H and W"
    Ho = (H + 2 - 3) // stride + 1
    Wo = (W + 2 - 3) // stride + 1

    f32 = jnp.float32
    # Fold BN scales into the conv weights (in f32, before the bf16 cast).
    w1f = w1.astype(f32) * s1.astype(f32).reshape(1, Cmid)
    w2f = w2.astype(f32) * s2.astype(f32).reshape(1, 1, 1, Cmid)
    w3f = w3.astype(f32) * s3.astype(f32).reshape(1, Cout)
    b1f = b1.astype(f32).reshape(1, Cmid)
    b2f = b2.astype(f32).reshape(1, Cmid)
    b3f = b3.astype(f32).reshape(1, Cout)

    # Pad the bottleneck width to a lane multiple (no-op at real ResNet widths)
    # so im2col pieces and the K = 9*Cmid contraction stay lane-aligned.
    Cmid_p = _round_up(Cmid, 128)
    if Cmid_p != Cmid:
        pad = Cmid_p - Cmid
        w1f = jnp.pad(w1f, ((0, 0), (0, pad)))
        b1f = jnp.pad(b1f, ((0, 0), (0, pad)))
        w2f = jnp.pad(w2f, ((0, 0), (0, 0), (0, pad), (0, pad)))
        b2f = jnp.pad(b2f, ((0, 0), (0, pad)))
        w3f = jnp.pad(w3f, ((0, pad), (0, 0)))

    # bf16 MXU operands (f32 accumulation in-kernel); BN shifts stay f32.
    xb = x_nhwc.astype(jnp.bfloat16)
    w1b = w1f.astype(jnp.bfloat16)
    w2b = w2f.reshape(9 * Cmid_p, Cmid_p).astype(jnp.bfloat16)  # (kh,kw,cin) rows
    w3b = w3f.astype(jnp.bfloat16)

    kernel = functools.partial(_bottleneck_kernel, stride=stride)

    # VMEM budget from actual block sizes (BlockSpec double-buffers x/out),
    # capped at 48 MiB so it leaves headroom inside v7x's 64 MiB per-TC VMEM.
    def nbytes(shape, itemsize):
        return int(np.prod(shape)) * itemsize
    est = (2 * nbytes((1, H, W, Cin), 2) + 2 * nbytes((1, Ho, Wo, Cout), 2)
           + nbytes((Cin, Cmid_p), 2) + nbytes((9 * Cmid_p, Cmid_p), 2)
           + nbytes((Cmid_p, Cout), 2)
           + nbytes((H + 2, W + 2, Cmid_p), 2)               # padded scratch
           + nbytes((H * W, 9 * Cmid_p), 2)                  # im2col patches
           + 3 * nbytes((H * W, max(Cmid_p, Cout)), 4))      # f32 intermediates
    vmem_limit = int(min(max(2 * est, 32 << 20), 48 << 20))

    # TODO(synk): for small planes and large N, pack Nb>1 images per block to
    # amortize per-step overhead (keep >= 2 grid steps for v7x's two cores).
    return pl.pallas_call(
        kernel,
        out_shape=jax.ShapeDtypeStruct((N, Ho, Wo, Cout), jnp.bfloat16),
        grid_spec=pltpu.PrefetchScalarGridSpec(
            num_scalar_prefetch=0,
            grid=(N,),
            in_specs=[
                pl.BlockSpec((1, H, W, Cin), lambda n: (n, 0, 0, 0)),
                pl.BlockSpec((Cin, Cmid_p), lambda n: (0, 0)),
                pl.BlockSpec((1, Cmid_p), lambda n: (0, 0)),
                pl.BlockSpec((9 * Cmid_p, Cmid_p), lambda n: (0, 0)),
                pl.BlockSpec((1, Cmid_p), lambda n: (0, 0)),
                pl.BlockSpec((Cmid_p, Cout), lambda n: (0, 0)),
                pl.BlockSpec((1, Cout), lambda n: (0, 0)),
            ],
            out_specs=pl.BlockSpec((1, Ho, Wo, Cout), lambda n: (n, 0, 0, 0)),
            scratch_shapes=[pltpu.VMEM((H + 2, W + 2, Cmid_p), jnp.bfloat16)],
        ),
        compiler_params=pltpu.CompilerParams(
            dimension_semantics=("parallel",),
            vmem_limit_bytes=vmem_limit),
    )(xb, w1b, b1f, w2b, b2f, w3b, b3f)


def bottleneck3conv_pallas_nchw(x_nchw, params, stride=1):
    """Optional PyTorch-layout adapter. Prefer the NHWC entry point: each
    transpose here costs a full extra HBM round-trip of the activation."""
    out = bottleneck3conv_pallas(jnp.transpose(x_nchw, (0, 2, 3, 1)), params, stride)
    return jnp.transpose(out, (0, 3, 1, 2))


def _reference_forward(x_nhwc, params, stride=1):
    """Pure-JAX NHWC f32 ground truth (lax.conv at HIGHEST precision)."""
    (w1, s1, b1, w2, s2, b2, w3, s3, b3) = params

    def conv(v, w, st, pad):
        return jax.lax.conv_general_dilated(
            v.astype(jnp.float32), w.astype(jnp.float32), (st, st), pad,
            dimension_numbers=("NHWC", "HWIO", "NHWC"),
            precision=jax.lax.Precision.HIGHEST,
            preferred_element_type=jnp.float32)

    t = jnp.maximum(conv(x_nhwc, w1[None, None], 1, "VALID") * s1 + b1, 0.0)
    t = jnp.maximum(conv(t, w2, stride, ((1, 1), (1, 1))) * s2 + b2, 0.0)
    t = jnp.maximum(conv(t, w3[None, None], 1, "VALID") * s3 + b3, 0.0)
    return t


def _make_params(key, in_channels, out_channels, expansion=4, eps=1e-5):
    """Deterministic synthetic params (weights + eval-mode folded BN)."""
    ks = jax.random.split(key, 16)
    cmid = out_channels
    cout = out_channels * expansion

    def bn(kg, kb, km, kv, c):
        gamma = 1.0 + 0.1 * jax.random.normal(kg, (c,), jnp.float32)
        beta = 0.1 * jax.random.normal(kb, (c,), jnp.float32)
        mean = 0.1 * jax.random.normal(km, (c,), jnp.float32)
        var = 0.5 + jax.random.uniform(kv, (c,), jnp.float32)
        scale = gamma / jnp.sqrt(var + eps)
        shift = beta - mean * scale
        return scale.reshape(1, c), shift.reshape(1, c)

    w1 = 0.2 * jax.random.normal(ks[0], (in_channels, cmid), jnp.float32)
    s1, b1 = bn(ks[1], ks[2], ks[3], ks[4], cmid)
    w2 = 0.1 * jax.random.normal(ks[5], (3, 3, cmid, cmid), jnp.float32)
    s2, b2 = bn(ks[6], ks[7], ks[8], ks[9], cmid)
    w3 = 0.2 * jax.random.normal(ks[10], (cmid, cout), jnp.float32)
    s3, b3 = bn(ks[11], ks[12], ks[13], ks[14], cout)
    return (w1, s1, b1, w2, s2, b2, w3, s3, b3)


if __name__ == "__main__":
    key = jax.random.PRNGKey(0)
    k_x, k_p = jax.random.split(key)

    # Lane-aligned demo config: Cin=128, Cmid=128, Cout=4*Cmid=512 -> every
    # im2col piece and the output store are lane-dense (multiples of 128).
    # downsample=None -> stride=1 and (per the PyTorch forward) no residual add.
    N, H, W, Cin = 2, 16, 16, 128
    out_channels = 128
    stride = 1

    x = jax.random.normal(k_x, (N, H, W, Cin), jnp.float32)
    params = _make_params(k_p, Cin, out_channels)

    out = jax.block_until_ready(
        bottleneck3conv_pallas(x, params, stride=stride)).astype(jnp.float32)
    ref = jax.block_until_ready(_reference_forward(x, params, stride=stride))

    max_err = float(jnp.max(jnp.abs(out - ref)))
    max_ref = float(jnp.max(jnp.abs(ref)))
    # bf16 matmul operands / bf16 output vs f32 ground truth -> relative bound.
    tol = 2e-2 * max(1.0, max_ref)
    if not (np.isfinite(max_err) and np.isfinite(max_ref) and max_err <= tol):
        raise AssertionError(
            f"Pallas kernel mismatch vs f32 reference: max_err={max_err} "
            f"(tol={tol}, max_ref={max_ref})")
    print("KERNEL_OK")
</pallas_src>

<mosaic_0001>
module attributes {stable_mosaic.version = 11 : i64} {
  func.func @_bottleneck_kernel(%arg0: i32, %arg1: memref<1x16x16x128xbf16, #tpu.memory_space<vmem>>, %arg2: memref<128x128xbf16, #tpu.memory_space<vmem>>, %arg3: memref<1x128xf32, #tpu.memory_space<vmem>>, %arg4: memref<1152x128xbf16, #tpu.memory_space<vmem>>, %arg5: memref<1x128xf32, #tpu.memory_space<vmem>>, %arg6: memref<128x512xbf16, #tpu.memory_space<vmem>>, %arg7: memref<1x512xf32, #tpu.memory_space<vmem>>, %arg8: memref<1x16x16x512xbf16, #tpu.memory_space<vmem>>, %arg9: memref<18x18x128xbf16, #tpu.memory_space<vmem>>) attributes {dimension_semantics = [#tpu.dimension_semantics<parallel>], iteration_bounds = array<i64: 2>, scalar_prefetch = 0 : i64, scratch_operands = 1 : i64, tpu.core_type = #tpu.core_type<tc>, window_params = [{transform_indices = @transform_0, window_bounds = array<i64: 1, 16, 16, 128>}, {pipeline_mode = #tpu.pipeline_mode<synchronous>, transform_indices = @transform_1, window_bounds = array<i64: 128, 128>}, {pipeline_mode = #tpu.pipeline_mode<synchronous>, transform_indices = @transform_2, window_bounds = array<i64: 1, 128>}, {pipeline_mode = #tpu.pipeline_mode<synchronous>, transform_indices = @transform_3, window_bounds = array<i64: 1152, 128>}, {pipeline_mode = #tpu.pipeline_mode<synchronous>, transform_indices = @transform_4, window_bounds = array<i64: 1, 128>}, {pipeline_mode = #tpu.pipeline_mode<synchronous>, transform_indices = @transform_5, window_bounds = array<i64: 128, 512>}, {pipeline_mode = #tpu.pipeline_mode<synchronous>, transform_indices = @transform_6, window_bounds = array<i64: 1, 512>}, {transform_indices = @transform_7, window_bounds = array<i64: 1, 16, 16, 512>}]} {
    %c0 = arith.constant 0 : index
    %c0_0 = arith.constant 0 : index
    %c0_1 = arith.constant 0 : index
    %c0_2 = arith.constant 0 : index
    %0 = vector.load %arg1[%c0, %c0_0, %c0_1, %c0_2] : memref<1x16x16x128xbf16, #tpu.memory_space<vmem>>, vector<1x16x16x128xbf16>
    %1 = vector.shape_cast %0 : vector<1x16x16x128xbf16> to vector<16x16x128xbf16>
    %2 = vector.shape_cast %1 : vector<16x16x128xbf16> to vector<256x128xbf16>
    %c0_3 = arith.constant 0 : index
    %c0_4 = arith.constant 0 : index
    %3 = vector.load %arg2[%c0_3, %c0_4] : memref<128x128xbf16, #tpu.memory_space<vmem>>, vector<128x128xbf16>
    %cst = arith.constant dense<0.000000e+00> : vector<256x128xf32>
    %4 = tpu.matmul %2, %3, %cst {dimension_numbers = #tpu.dot_dimension_numbers<[1], [0], [0], [1], [0, 0, 1, 1], [], []>} : vector<256x128xbf16>, vector<128x128xbf16>, vector<256x128xf32> -> vector<256x128xf32>
    %c0_5 = arith.constant 0 : index
    %c0_6 = arith.constant 0 : index
    %5 = vector.load %arg3[%c0_5, %c0_6] : memref<1x128xf32, #tpu.memory_space<vmem>>, vector<1x128xf32>
    %6 = vector.broadcast %5 : vector<1x128xf32> to vector<256x128xf32>
    %7 = arith.addf %4, %6 : vector<256x128xf32>
    %cst_7 = arith.constant 0.000000e+00 : f32
    %8 = vector.broadcast %cst_7 : f32 to vector<256x128xf32>
    %9 = arith.maximumf %7, %8 : vector<256x128xf32>
    %10 = arith.truncf %9 : vector<256x128xf32> to vector<256x128xbf16>
    %11 = vector.shape_cast %10 : vector<256x128xbf16> to vector<16x16x128xbf16>
    %cst_8 = arith.constant 0.000000e+00 : bf16
    %12 = vector.broadcast %cst_8 : bf16 to vector<1x18x128xbf16>
    %c0_9 = arith.constant 0 : index
    %c0_10 = arith.constant 0 : index
    %c0_11 = arith.constant 0 : index
    %13 = vector.load %arg9[%c0_9, %c0_10, %c0_11] : memref<18x18x128xbf16, #tpu.memory_space<vmem>>, vector<1x18x128xbf16>
    tpu.vector_store %arg9[%c0_9, %c0_10, %c0_11], %12 {strides = array<i32>} : memref<18x18x128xbf16, #tpu.memory_space<vmem>>, vector<1x18x128xbf16>,
    %cst_12 = arith.constant 0.000000e+00 : bf16
    %14 = vector.broadcast %cst_12 : bf16 to vector<1x18x128xbf16>
    %c17 = arith.constant 17 : index
    %c0_13 = arith.constant 0 : index
    %c0_14 = arith.constant 0 : index
    %15 = vector.load %arg9[%c17, %c0_13, %c0_14] : memref<18x18x128xbf16, #tpu.memory_space<vmem>>, vector<1x18x128xbf16>
    tpu.vector_store %arg9[%c17, %c0_13, %c0_14], %14 {strides = array<i32>} : memref<18x18x128xbf16, #tpu.memory_space<vmem>>, vector<1x18x128xbf16>,
    %cst_15 = arith.constant 0.000000e+00 : bf16
    %16 = vector.broadcast %cst_15 : bf16 to vector<18x1x128xbf16>
    %c0_16 = arith.constant 0 : index
    %c0_17 = arith.constant 0 : index
    %c0_18 = arith.constant 0 : index
    %17 = vector.load %arg9[%c0_16, %c0_17, %c0_18] : memref<18x18x128xbf16, #tpu.memory_space<vmem>>, vector<18x1x128xbf16>
    tpu.vector_store %arg9[%c0_16, %c0_17, %c0_18], %16 {strides = array<i32>} : memref<18x18x128xbf16, #tpu.memory_space<vmem>>, vector<18x1x128xbf16>,
    %cst_19 = arith.constant 0.000000e+00 : bf16
    %18 = vector.broadcast %cst_19 : bf16 to vector<18x1x128xbf16>
    %c0_20 = arith.constant 0 : index
    %c17_21 = arith.constant 17 : index
    %c0_22 = arith.constant 0 : index
    %19 = vector.load %arg9[%c0_20, %c17_21, %c0_22] : memref<18x18x128xbf16, #tpu.memory_space<vmem>>, vector<18x1x128xbf16>
    tpu.vector_store %arg9[%c0_20, %c17_21, %c0_22], %18 {strides = array<i32>} : memref<18x18x128xbf16, #tpu.memory_space<vmem>>, vector<18x1x128xbf16>,
    %c1 = arith.constant 1 : index
    %c1_23 = arith.constant 1 : index
    %c0_24 = arith.constant 0 : index
    %20 = vector.load %arg9[%c1, %c1_23, %c0_24] : memref<18x18x128xbf16, #tpu.memory_space<vmem>>, vector<16x16x128xbf16>
    tpu.vector_store %arg9[%c1, %c1_23, %c0_24], %11 {strides = array<i32>} : memref<18x18x128xbf16, #tpu.memory_space<vmem>>, vector<16x16x128xbf16>,
    %c0_25 = arith.constant 0 : index
    %c0_26 = arith.constant 0 : index
    %c0_27 = arith.constant 0 : index
    %21 = vector.load %arg9[%c0_25, %c0_26, %c0_27] : memref<18x18x128xbf16, #tpu.memory_space<vmem>>, vector<16x16x128xbf16>
    %c0_28 = arith.constant 0 : index
    %c1_29 = arith.constant 1 : index
    %c0_30 = arith.constant 0 : index
    %22 = vector.load %arg9[%c0_28, %c1_29, %c0_30] : memref<18x18x128xbf16, #tpu.memory_space<vmem>>, vector<16x16x128xbf16>
    %c0_31 = arith.constant 0 : index
    %c2 = arith.constant 2 : index
    %c0_32 = arith.constant 0 : index
    %23 = vector.load %arg9[%c0_31, %c2, %c0_32] : memref<18x18x128xbf16, #tpu.memory_space<vmem>>, vector<16x16x128xbf16>
    %c1_33 = arith.constant 1 : index
    %c0_34 = arith.constant 0 : index
    %c0_35 = arith.constant 0 : index
    %24 = vector.load %arg9[%c1_33, %c0_34, %c0_35] : memref<18x18x128xbf16, #tpu.memory_space<vmem>>, vector<16x16x128xbf16>
    %c1_36 = arith.constant 1 : index
    %c1_37 = arith.constant 1 : index
    %c0_38 = arith.constant 0 : index
    %25 = vector.load %arg9[%c1_36, %c1_37, %c0_38] : memref<18x18x128xbf16, #tpu.memory_space<vmem>>, vector<16x16x128xbf16>
    %c1_39 = arith.constant 1 : index
    %c2_40 = arith.constant 2 : index
    %c0_41 = arith.constant 0 : index
    %26 = vector.load %arg9[%c1_39, %c2_40, %c0_41] : memref<18x18x128xbf16, #tpu.memory_space<vmem>>, vector<16x16x128xbf16>
    %c2_42 = arith.constant 2 : index
    %c0_43 = arith.constant 0 : index
    %c0_44 = arith.constant 0 : index
    %27 = vector.load %arg9[%c2_42, %c0_43, %c0_44] : memref<18x18x128xbf16, #tpu.memory_space<vmem>>, vector<16x16x128xbf16>
    %c2_45 = arith.constant 2 : index
    %c1_46 = arith.constant 1 : index
    %c0_47 = arith.constant 0 : index
    %28 = vector.load %arg9[%c2_45, %c1_46, %c0_47] : memref<18x18x128xbf16, #tpu.memory_space<vmem>>, vector<16x16x128xbf16>
    %c2_48 = arith.constant 2 : index
    %c2_49 = arith.constant 2 : index
    %c0_50 = arith.constant 0 : index
    %29 = vector.load %arg9[%c2_48, %c2_49, %c0_50] : memref<18x18x128xbf16, #tpu.memory_space<vmem>>, vector<16x16x128xbf16>
    %30 = tpu.concatenate %21, %22, %23, %24, %25, %26, %27, %28, %29 in 2 : vector<16x16x128xbf16>, vector<16x16x128xbf16>, vector<16x16x128xbf16>, vector<16x16x128xbf16>, vector<16x16x128xbf16>, vector<16x16x128xbf16>, vector<16x16x128xbf16>, vector<16x16x128xbf16>, vector<16x16x128xbf16> -> vector<16x16x1152xbf16>
    %31 = vector.shape_cast %30 : vector<16x16x1152xbf16> to vector<256x1152xbf16>
    %c0_51 = arith.constant 0 : index
    %c0_52 = arith.constant 0 : index
    %32 = vector.load %arg4[%c0_51, %c0_52] : memref<1152x128xbf16, #tpu.memory_space<vmem>>, vector<1152x128xbf16>
    %cst_53 = arith.constant dense<0.000000e+00> : vector<256x128xf32>
    %33 = tpu.matmul %31, %32, %cst_53 {dimension_numbers = #tpu.dot_dimension_numbers<[1], [0], [0], [1], [0, 0, 1, 1], [], []>} : vector<256x1152xbf16>, vector<1152x128xbf16>, vector<256x128xf32> -> vector<256x128xf32>
    %c0_54 = arith.constant 0 : index
    %c0_55 = arith.constant 0 : index
    %34 = vector.load %arg5[%c0_54, %c0_55] : memref<1x128xf32, #tpu.memory_space<vmem>>, vector<1x128xf32>
    %35 = vector.broadcast %34 : vector<1x128xf32> to vector<256x128xf32>
    %36 = arith.addf %33, %35 : vector<256x128xf32>
    %cst_56 = arith.constant 0.000000e+00 : f32
    %37 = vector.broadcast %cst_56 : f32 to vector<256x128xf32>
    %38 = arith.maximumf %36, %37 : vector<256x128xf32>
    %39 = arith.truncf %38 : vector<256x128xf32> to vector<256x128xbf16>
    %c0_57 = arith.constant 0 : index
    %c0_58 = arith.constant 0 : index
    %40 = vector.load %arg6[%c0_57, %c0_58] : memref<128x512xbf16, #tpu.memory_space<vmem>>, vector<128x512xbf16>
    %cst_59 = arith.constant dense<0.000000e+00> : vector<256x512xf32>
    %41 = tpu.matmul %39, %40, %cst_59 {dimension_numbers = #tpu.dot_dimension_numbers<[1], [0], [0], [1], [0, 0, 1, 1], [], []>} : vector<256x128xbf16>, vector<128x512xbf16>, vector<256x512xf32> -> vector<256x512xf32>
    %c0_60 = arith.constant 0 : index
    %c0_61 = arith.constant 0 : index
    %42 = vector.load %arg7[%c0_60, %c0_61] : memref<1x512xf32, #tpu.memory_space<vmem>>, vector<1x512xf32>
    %43 = vector.broadcast %42 : vector<1x512xf32> to vector<256x512xf32>
    %44 = arith.addf %41, %43 : vector<256x512xf32>
    %cst_62 = arith.constant 0.000000e+00 : f32
    %45 = vector.broadcast %cst_62 : f32 to vector<256x512xf32>
    %46 = arith.maximumf %44, %45 : vector<256x512xf32>
    %47 = vector.shape_cast %46 : vector<256x512xf32> to vector<16x16x512xf32>
    %48 = arith.truncf %47 : vector<16x16x512xf32> to vector<16x16x512xbf16>
    %c0_63 = arith.constant 0 : index
    %c0_64 = arith.constant 0 : index
    %c0_65 = arith.constant 0 : index
    %c0_66 = arith.constant 0 : index
    %49 = vector.load %arg8[%c0_63, %c0_64, %c0_65, %c0_66] : memref<1x16x16x512xbf16, #tpu.memory_space<vmem>>, vector<1x16x16x512xbf16>
    %50 = vector.shape_cast %49 : vector<1x16x16x512xbf16> to vector<16x16x512xbf16>
    %51 = vector.shape_cast %48 : vector<16x16x512xbf16> to vector<1x16x16x512xbf16>
    tpu.vector_store %arg8[%c0_63, %c0_64, %c0_65, %c0_66], %51 {strides = array<i32>} : memref<1x16x16x512xbf16, #tpu.memory_space<vmem>>, vector<1x16x16x512xbf16>,
    return
  }
  func.func @transform_0(%arg0: i32) -> (i32, i32, i32, i32) {
    %c0_i32 = arith.constant 0 : i32
    %c0_i32_0 = arith.constant 0 : i32
    %c0_i32_1 = arith.constant 0 : i32
    %c0_i32_2 = arith.constant 0 : i32
    return %arg0, %c0_i32, %c0_i32_0, %c0_i32_1 : i32, i32, i32, i32
  }
  func.func @transform_1(%arg0: i32) -> (i32, i32) {
    %c0_i32 = arith.constant 0 : i32
    %c0_i32_0 = arith.constant 0 : i32
    %c0_i32_1 = arith.constant 0 : i32
    return %c0_i32, %c0_i32_0 : i32, i32
  }
  func.func @transform_2(%arg0: i32) -> (i32, i32) {
    %c0_i32 = arith.constant 0 : i32
    %c0_i32_0 = arith.constant 0 : i32
    %c0_i32_1 = arith.constant 0 : i32
    return %c0_i32, %c0_i32_0 : i32, i32
  }
  func.func @transform_3(%arg0: i32) -> (i32, i32) {
    %c0_i32 = arith.constant 0 : i32
    %c0_i32_0 = arith.constant 0 : i32
    %c0_i32_1 = arith.constant 0 : i32
    return %c0_i32, %c0_i32_0 : i32, i32
  }
  func.func @transform_4(%arg0: i32) -> (i32, i32) {
    %c0_i32 = arith.constant 0 : i32
    %c0_i32_0 = arith.constant 0 : i32
    %c0_i32_1 = arith.constant 0 : i32
    return %c0_i32, %c0_i32_0 : i32, i32
  }
  func.func @transform_5(%arg0: i32) -> (i32, i32) {
    %c0_i32 = arith.constant 0 : i32
    %c0_i32_0 = arith.constant 0 : i32
    %c0_i32_1 = arith.constant 0 : i32
    return %c0_i32, %c0_i32_0 : i32, i32
  }
  func.func @transform_6(%arg0: i32) -> (i32, i32) {
    %c0_i32 = arith.constant 0 : i32
    %c0_i32_0 = arith.constant 0 : i32
    %c0_i32_1 = arith.constant 0 : i32
    return %c0_i32, %c0_i32_0 : i32, i32
  }
  func.func @transform_7(%arg0: i32) -> (i32, i32, i32, i32) {
    %c0_i32 = arith.constant 0 : i32
    %c0_i32_0 = arith.constant 0 : i32
    %c0_i32_1 = arith.constant 0 : i32
    %c0_i32_2 = arith.constant 0 : i32
    return %arg0, %c0_i32, %c0_i32_0, %c0_i32_1 : i32, i32, i32, i32
  }
}

</mosaic_0001>

<llo_original>
// kernel: tpu_custom_call.1
$region0: #{tpu_custom_call.1}
  #allocation0 [shape = 'u32[]', space=smem, size = 0x4, offset = 0x4, fixed_abs, tag = 'smem constant byte address 0x4 - core index']
  #allocation1 [shape = 'u32[144,128]{1,0:T(1,128)}', space=vmem, size = 0x12000, scoped, tag = 'internal scratch']
  #allocation2 [shape = 'bf16[18,18,128]{2,1,0:T(8,128)(2,1)}', space=vmem, size = 0x1b000, scoped, tag = 'scratch operand']
  %s0 = inlined_call_operand.hbm [shape: bf16[2,16,16,128], index: 0, kind: input, shape index: {}]
  %s1 = inlined_call_operand.hbm [shape: bf16[128,128], index: 1, kind: input, shape index: {}]
  %s2 = inlined_call_operand.vmem [shape: f32[1,128], index: 2, kind: input, shape index: {}]
  %s3 = inlined_call_operand.hbm [shape: bf16[1152,128], index: 3, kind: input, shape index: {}]
  %s4 = inlined_call_operand.vmem [shape: f32[1,128], index: 4, kind: input, shape index: {}]
  %s5 = inlined_call_operand.hbm [shape: bf16[128,512], index: 5, kind: input, shape index: {}]
  %s6 = inlined_call_operand.vmem [shape: f32[1,512], index: 6, kind: input, shape index: {}]
  %s7 = inlined_call_operand.hbm [shape: bf16[2,16,16,512], index: 7, kind: output, shape index: {}]
  %s8 = sld [smem:[#allocation0]]
  $region77: #{tpu_custom_call.1} parent=0
    _
  %s10 = ssub.s32 1, %s8
  %s11 = scalar_select 0, %s10, %s8
  $region1: #{tpu_custom_call.1} parent=0
    #allocation3 [shape = 'u8[131072]{0}', space=vmem, size = 0x20000, scoped, tag = 'input window, operand 0']
    #allocation4 [shape = 's32[2]{0}', space=sflag, size = 0x8, scoped, tag = 'scoped memory for tpu_custom_call.1']
    #allocation5 [shape = 's32[2]{0}', space=sflag, size = 0x8, scoped, tag = 'scoped memory for tpu_custom_call.1']
    #allocation6 [shape = 'u8[32768]{0}', space=vmem, size = 0x8000, scoped, tag = 'input window, operand 1, single buffered']
    #allocation7 [shape = 's32[1]{0}', space=sflag, size = 0x4, scoped, tag = 'scoped memory for tpu_custom_call.1']
    #allocation8 [shape = 'u8[294912]{0}', space=vmem, size = 0x48000, scoped, tag = 'input window, operand 3, single buffered']
    #allocation9 [shape = 'u8[131072]{0}', space=vmem, size = 0x20000, scoped, tag = 'input window, operand 5, single buffered']
    #allocation10 [shape = 's32[1]{0}', space=sflag, size = 0x4, scoped, tag = 'scoped memory for tpu_custom_call.1']
    #allocation11 [shape = 'u8[524288]{0}', space=vmem, size = 0x80000, scoped, tag = 'output window, operand 0']
    %12 = vsyncpa [#allocation4], 0
    %s13 = scalar_lea.sflag [#allocation4], 1
    %14 = vsyncpa %s13, 0
    %15 = vsyncpa [#allocation7], 0
    %16 = vsyncpa [#allocation10], 0
    %17 = vsyncpa [#allocation5], 0
    %s18 = scalar_lea.sflag [#allocation5], 1
    %19 = vsyncpa %s18, 0
    loop: start=0, step=1, limit=4
    $region2: #{tpu_custom_call.1} parent=1 // loop_pre_header
      _
    $region3: #{tpu_custom_call.1} parent=1 // loop_header
      %s21 = sphi 0, %s25
      %p22 = scmp.ge.s32.totalorder %s21, 4
      %s31 = sphi 0, %s33
      %s34 = sphi 0, %s31
      %s35 = sphi 0, %s34
      %s51 = sphi 0, %s35
      %s55 = sphi 0, %s55
      %s57 = sphi 0, %s55
      %s58 = sphi 0, %s57
      %s72 = sphi 0, %s58
      %s76 = sphi 0, %s76
      %s78 = sphi 0, %s76
      %s79 = sphi 0, %s78
      %s93 = sphi 0, %s79
      %s97 = sphi 0, %s97
      %s99 = sphi 0, %s97
      %s100 = sphi 0, %s99
      %s114 = sphi 0, %s100
      %s118 = sphi 0, %s118
      %s120 = sphi 0, %s118
      %s121 = sphi 0, %s120
      %s135 = sphi 0, %s121
      %s139 = sphi 0, %s139
      %s141 = sphi 0, %s139
      %s142 = sphi 0, %s141
      %s156 = sphi 0, %s142
      %s160 = sphi 0, %s160
      %s162 = sphi 0, %s160
      %s163 = sphi 0, %s162
      %s177 = sphi 0, %s163
      %s183 = sphi 0, %s185
      %s186 = sphi 0, %s183
      %s187 = sphi 0, %s186
      %s203 = sphi 0, %s187
    $region4: #{tpu_custom_call.1} parent=1 // loop_header_branch
      %24 = sbr.rel (%p22) target = $region8
    $region5: #{tpu_custom_call.1} parent=1 // loop_body
      %s26 = ssub.s32 %s21, 1
      %s27 = ssub.s32 %s21, 2
      %s28 = sadd.s32 %s21, 1
      %s29 = ssub.s32 %s21, %s28
      %p30 = scmp.eq.s32.totalorder %s29, 0
      %s32 = sadd.s32 %s31, 1
      %s33 = scalar_select %p30, %s31, %s32
      %p36 = pneg %p30
      %p37 = scmp.eq.s32.totalorder %s21, 1
      %p38 = por %p36, %p37
      %p39 = scmp.ne.s32.totalorder %s31, %s34
      %p40 = scmp.eq.s32.totalorder %s21, 0
      %p41 = por %p39, %p40
      %p42 = scmp.ne.s32.totalorder %s31, %s34
      %p43 = scmp.eq.s32.totalorder %s26, 1
      %p44 = por %p42, %p43
      %p45 = scmp.ne.s32.totalorder %s34, %s35
      %p46 = scmp.eq.s32.totalorder %s26, 0
      %p47 = por %p45, %p46
      %p48 = scmp.ne.s32.totalorder %s34, %s35
      %p49 = scmp.eq.s32.totalorder %s27, 1
      %p50 = por %p48, %p49
      %p52 = scmp.ne.s32.totalorder %s35, %s51
      %p53 = scmp.eq.s32.totalorder %s27, 0
      %p54 = por %p52, %p53
      %s56 = sadd.s32 %s55, 1
      %p59 = scmp.eq.s32.totalorder %s21, 1
      %p60 = scmp.ne.s32.totalorder %s55, %s57
      %p61 = scmp.eq.s32.totalorder %s21, 0
      %p62 = por %p60, %p61
      %p63 = scmp.ne.s32.totalorder %s55, %s57
      %p64 = scmp.eq.s32.totalorder %s26, 1
      %p65 = por %p63, %p64
      %p66 = scmp.ne.s32.totalorder %s57, %s58
      %p67 = scmp.eq.s32.totalorder %s26, 0
      %p68 = por %p66, %p67
      %p69 = scmp.ne.s32.totalorder %s57, %s58
      %p70 = scmp.eq.s32.totalorder %s27, 1
      %p71 = por %p69, %p70
      %p73 = scmp.ne.s32.totalorder %s58, %s72
      %p74 = scmp.eq.s32.totalorder %s27, 0
      %p75 = por %p73, %p74
      %s77 = sadd.s32 %s76, 1
      %p80 = scmp.eq.s32.totalorder %s21, 1
      %p81 = scmp.ne.s32.totalorder %s76, %s78
      %p82 = scmp.eq.s32.totalorder %s21, 0
      %p83 = por %p81, %p82
      %p84 = scmp.ne.s32.totalorder %s76, %s78
      %p85 = scmp.eq.s32.totalorder %s26, 1
      %p86 = por %p84, %p85
      %p87 = scmp.ne.s32.totalorder %s78, %s79
      %p88 = scmp.eq.s32.totalorder %s26, 0
      %p89 = por %p87, %p88
      %p90 = scmp.ne.s32.totalorder %s78, %s79
      %p91 = scmp.eq.s32.totalorder %s27, 1
      %p92 = por %p90, %p91
      %p94 = scmp.ne.s32.totalorder %s79, %s93
      %p95 = scmp.eq.s32.totalorder %s27, 0
      %p96 = por %p94, %p95
      %s98 = sadd.s32 %s97, 1
      %p101 = scmp.eq.s32.totalorder %s21, 1
      %p102 = scmp.ne.s32.totalorder %s97, %s99
      %p103 = scmp.eq.s32.totalorder %s21, 0
      %p104 = por %p102, %p103
      %p105 = scmp.ne.s32.totalorder %s97, %s99
      %p106 = scmp.eq.s32.totalorder %s26, 1
      %p107 = por %p105, %p106
      %p108 = scmp.ne.s32.totalorder %s99, %s100
      %p109 = scmp.eq.s32.totalorder %s26, 0
      %p110 = por %p108, %p109
      %p111 = scmp.ne.s32.totalorder %s99, %s100
      %p112 = scmp.eq.s32.totalorder %s27, 1
      %p113 = por %p111, %p112
      %p115 = scmp.ne.s32.totalorder %s100, %s114
      %p116 = scmp.eq.s32.totalorder %s27, 0
      %p117 = por %p115, %p116
      %s119 = sadd.s32 %s118, 1
      %p122 = scmp.eq.s32.totalorder %s21, 1
      %p123 = scmp.ne.s32.totalorder %s118, %s120
      %p124 = scmp.eq.s32.totalorder %s21, 0
      %p125 = por %p123, %p124
      %p126 = scmp.ne.s32.totalorder %s118, %s120
      %p127 = scmp.eq.s32.totalorder %s26, 1
      %p128 = por %p126, %p127
      %p129 = scmp.ne.s32.totalorder %s120, %s121
      %p130 = scmp.eq.s32.totalorder %s26, 0
      %p131 = por %p129, %p130
      %p132 = scmp.ne.s32.totalorder %s120, %s121
      %p133 = scmp.eq.s32.totalorder %s27, 1
      %p134 = por %p132, %p133
      %p136 = scmp.ne.s32.totalorder %s121, %s135
      %p137 = scmp.eq.s32.totalorder %s27, 0
      %p138 = por %p136, %p137
      %s140 = sadd.s32 %s139, 1
      %p143 = scmp.eq.s32.totalorder %s21, 1
      %p144 = scmp.ne.s32.totalorder %s139, %s141
      %p145 = scmp.eq.s32.totalorder %s21, 0
      %p146 = por %p144, %p145
      %p147 = scmp.ne.s32.totalorder %s139, %s141
      %p148 = scmp.eq.s32.totalorder %s26, 1
      %p149 = por %p147, %p148
      %p150 = scmp.ne.s32.totalorder %s141, %s142
      %p151 = scmp.eq.s32.totalorder %s26, 0
      %p152 = por %p150, %p151
      %p153 = scmp.ne.s32.totalorder %s141, %s142
      %p154 = scmp.eq.s32.totalorder %s27, 1
      %p155 = por %p153, %p154
      %p157 = scmp.ne.s32.totalorder %s142, %s156
      %p158 = scmp.eq.s32.totalorder %s27, 0
      %p159 = por %p157, %p158
      %s161 = sadd.s32 %s160, 1
      %p164 = scmp.eq.s32.totalorder %s21, 1
      %p165 = scmp.ne.s32.totalorder %s160, %s162
      %p166 = scmp.eq.s32.totalorder %s21, 0
      %p167 = por %p165, %p166
      %p168 = scmp.ne.s32.totalorder %s160, %s162
      %p169 = scmp.eq.s32.totalorder %s26, 1
      %p170 = por %p168, %p169
      %p171 = scmp.ne.s32.totalorder %s162, %s163
      %p172 = scmp.eq.s32.totalorder %s26, 0
      %p173 = por %p171, %p172
      %p174 = scmp.ne.s32.totalorder %s162, %s163
      %p175 = scmp.eq.s32.totalorder %s27, 1
      %p176 = por %p174, %p175
      %p178 = scmp.ne.s32.totalorder %s163, %s177
      %p179 = scmp.eq.s32.totalorder %s27, 0
      %p180 = por %p178, %p179
      %s181 = ssub.s32 %s21, %s28
      %p182 = scmp.eq.s32.totalorder %s181, 0
      %s184 = sadd.s32 %s183, 1
      %s185 = scalar_select %p182, %s183, %s184
      %p188 = pneg %p182
      %p189 = scmp.eq.s32.totalorder %s21, 1
      %p190 = por %p188, %p189
      %p191 = scmp.ne.s32.totalorder %s183, %s186
      %p192 = scmp.eq.s32.totalorder %s21, 0
      %p193 = por %p191, %p192
      %p194 = scmp.ne.s32.totalorder %s183, %s186
      %p195 = scmp.eq.s32.totalorder %s26, 1
      %p196 = por %p194, %p195
      %p197 = scmp.ne.s32.totalorder %s186, %s187
      %p198 = scmp.eq.s32.totalorder %s26, 0
      %p199 = por %p197, %p198
      %p200 = scmp.ne.s32.totalorder %s186, %s187
      %p201 = scmp.eq.s32.totalorder %s27, 1
      %p202 = por %p200, %p201
      %p204 = scmp.ne.s32.totalorder %s187, %s203
      %p205 = scmp.eq.s32.totalorder %s27, 0
      %p206 = por %p204, %p205
      %p207 = scmp.le.s32.totalorder 1, %s21
      %p208 = scmp.lt.s32.totalorder %s21, 3
      %p209 = pnand %p207, %p208
      %p210 = pneg %p209
      // Predicated region
      $region9: #{tpu_custom_call.1} parent=5 // pred_check
        _
      $region10: #{tpu_custom_call.1} parent=5 // pred_check_branch
        %212 = sbr.rel (%p209) target = $region12
      $region11: #{tpu_custom_call.1} parent=5 // pred_region
        %s213 = ssub.s32 %s21, 1
        // Predicated region
        $region13: #{tpu_custom_call.1} parent=11 // pred_check
          %p214 = pneg %p68
        $region14: #{tpu_custom_call.1} parent=11 // pred_check_branch
          %216 = sbr.rel (%p214) target = $region16
        $region15: #{tpu_custom_call.1} parent=11 // pred_region
          %s218 = ssub.s32 1024, 1024
          %219 = vsyncadd [#allocation7], %s218
          %s220 = sshll.u32 [#allocation6], 4
          %s221 = int_to_ptr.vmem [resolvable:$true] %s220
          %226 = dma.hbm_to_vmem [thread:$0]  %s1, 1024, %s221, [#allocation7], 64, 64, 4
        $region16: #{tpu_custom_call.1} parent=11 // pred_fallthru
          _
        // Predicated region
        $region17: #{tpu_custom_call.1} parent=11 // pred_check
          %p227 = pneg %p89
        $region18: #{tpu_custom_call.1} parent=11 // pred_check_branch
          %229 = sbr.rel (%p227) target = $region20
        $region19: #{tpu_custom_call.1} parent=11 // pred_region
          _
        $region20: #{tpu_custom_call.1} parent=11 // pred_fallthru
          _
        // Predicated region
        $region21: #{tpu_custom_call.1} parent=11 // pred_check
          %p230 = pneg %p110
        $region22: #{tpu_custom_call.1} parent=11 // pred_check_branch
          %232 = sbr.rel (%p230) target = $region24
        $region23: #{tpu_custom_call.1} parent=11 // pred_region
          %s234 = ssub.s32 9216, 9216
          %235 = vsyncadd [#allocation7], %s234
          %s236 = sshll.u32 [#allocation8], 4
          %s237 = int_to_ptr.vmem [resolvable:$true] %s236
          %242 = dma.hbm_to_vmem [thread:$0]  %s3, 9216, %s237, [#allocation7], 64, 64, 4
        $region24: #{tpu_custom_call.1} parent=11 // pred_fallthru
          _
        // Predicated region
        $region25: #{tpu_custom_call.1} parent=11 // pred_check
          %p243 = pneg %p131
        $region26: #{tpu_custom_call.1} parent=11 // pred_check_branch
          %245 = sbr.rel (%p243) target = $region28
        $region27: #{tpu_custom_call.1} parent=11 // pred_region
          _
        $region28: #{tpu_custom_call.1} parent=11 // pred_fallthru
          _
        // Predicated region
        $region29: #{tpu_custom_call.1} parent=11 // pred_check
          %p246 = pneg %p152
        $region30: #{tpu_custom_call.1} parent=11 // pred_check_branch
          %248 = sbr.rel (%p246) target = $region32
        $region31: #{tpu_custom_call.1} parent=11 // pred_region
          %s250 = ssub.s32 4096, 4096
          %251 = vsyncadd [#allocation10], %s250
          %s252 = sshll.u32 [#allocation9], 4
          %s253 = int_to_ptr.vmem [resolvable:$true] %s252
          %258 = dma.hbm_to_vmem [thread:$0]  %s5, 4096, %s253, [#allocation10], 256, 256, 16
        $region32: #{tpu_custom_call.1} parent=11 // pred_fallthru
          _
        // Predicated region
        $region33: #{tpu_custom_call.1} parent=11 // pred_check
          %p259 = pneg %p173
        $region34: #{tpu_custom_call.1} parent=11 // pred_check_branch
          %261 = sbr.rel (%p259) target = $region36
        $region35: #{tpu_custom_call.1} parent=11 // pred_region
          _
        $region36: #{tpu_custom_call.1} parent=11 // pred_fallthru
          _
      $region12: #{tpu_custom_call.1} parent=5 // pred_fallthru
        _
      %p262 = scmp.lt.s32.totalorder %s21, 2
      // Predicated region
      $region37: #{tpu_custom_call.1} parent=5 // pred_check
        %p263 = pneg %p262
      $region38: #{tpu_custom_call.1} parent=5 // pred_check_branch
        %265 = sbr.rel (%p263) target = $region40
      $region39: #{tpu_custom_call.1} parent=5 // pred_region
        // Predicated region
        $region41: #{tpu_custom_call.1} parent=39 // pred_check
          %p266 = pneg %p41
        $region42: #{tpu_custom_call.1} parent=39 // pred_check_branch
          %268 = sbr.rel (%p266) target = $region44
        $region43: #{tpu_custom_call.1} parent=39 // pred_region
          %s269 = sand.u32 %s31, 1
          %s270 = scalar_lea.sflag [#allocation4], %s269
          %s271 = sand.u32 %s31, 1
          %s272 = smul.addr %s271, 128
          %s273 = scalar_lea.vmem [#allocation3], %s272
          %s275 = ssub.s32 2048, 2048
          %276 = vsyncadd %s270, %s275
          %s277 = smul.addr %s21, 32
          %s278 = smul.addr %s277, 64
          %s279 = scalar_lea.hbm %s0, %s278
          %s280 = sshll.u32 %s273, 4
          %s281 = int_to_ptr.vmem [resolvable:$true] %s280
          %286 = dma.hbm_to_vmem [thread:$0]  %s279, 2048, %s281, %s270, 64, 64, 4
        $region44: #{tpu_custom_call.1} parent=39 // pred_fallthru
          _
      $region40: #{tpu_custom_call.1} parent=5 // pred_fallthru
        _
      %p287 = scmp.le.s32.totalorder 1, %s21
      %p288 = scmp.lt.s32.totalorder %s21, 3
      %p289 = pnand %p287, %p288
      %p290 = pneg %p289
      // Predicated region
      $region45: #{tpu_custom_call.1} parent=5 // pred_check
        _
      $region46: #{tpu_custom_call.1} parent=5 // pred_check_branch
        %292 = sbr.rel (%p289) target = $region48
      $region47: #{tpu_custom_call.1} parent=5 // pred_region
        %s293 = ssub.s32 %s21, 1
        %s294 = sand.u32 %s34, 1
        %s295 = scalar_lea.sflag [#allocation4], %s294
        %s296 = sand.u32 %s34, 1
        %s297 = smul.addr %s296, 128
        %s298 = scalar_lea.vmem [#allocation3], %s297
        // Predicated region
        $region49: #{tpu_custom_call.1} parent=47 // pred_check
          %p299 = pneg %p47
        $region50: #{tpu_custom_call.1} parent=47 // pred_check_branch
          %301 = sbr.rel (%p299) target = $region52
        $region51: #{tpu_custom_call.1} parent=47 // pred_region
          %302 = dma.done %s295, 2048
        $region52: #{tpu_custom_call.1} parent=47 // pred_fallthru
          _
        // Predicated region
        $region53: #{tpu_custom_call.1} parent=47 // pred_check
          %p303 = pneg %p68
        $region54: #{tpu_custom_call.1} parent=47 // pred_check_branch
          %305 = sbr.rel (%p303) target = $region56
        $region55: #{tpu_custom_call.1} parent=47 // pred_region
          %306 = dma.done [#allocation7], 1024
        $region56: #{tpu_custom_call.1} parent=47 // pred_fallthru
          _
        // Predicated region
        $region57: #{tpu_custom_call.1} parent=47 // pred_check
          %p307 = pneg %p110
        $region58: #{tpu_custom_call.1} parent=47 // pred_check_branch
          %309 = sbr.rel (%p307) target = $region60
        $region59: #{tpu_custom_call.1} parent=47 // pred_region
          %310 = dma.done [#allocation7], 9216
        $region60: #{tpu_custom_call.1} parent=47 // pred_fallthru
          _
        // Predicated region
        $region61: #{tpu_custom_call.1} parent=47 // pred_check
          %p311 = pneg %p152
        $region62: #{tpu_custom_call.1} parent=47 // pred_check_branch
          %313 = sbr.rel (%p311) target = $region64
        $region63: #{tpu_custom_call.1} parent=47 // pred_region
          %314 = dma.done [#allocation10], 4096
        $region64: #{tpu_custom_call.1} parent=47 // pred_fallthru
          _
        %s315 = sand.u32 %s34, 1
        %s316 = scalar_lea.sflag [#allocation4], %s315
        %s317 = sand.u32 %s34, 1
        %s318 = smul.addr %s317, 128
        %s319 = scalar_lea.vmem [#allocation3], %s318
        %p320 = pneg %p47
        %p321 = pneg %p44
        %p322 = pneg %p68
        %p323 = pneg %p65
        %p324 = pneg %p89
        %p325 = pneg %p86
        %p326 = pneg %p110
        %p327 = pneg %p107
        %p328 = pneg %p131
        %p329 = pneg %p128
        %p330 = pneg %p152
        %p331 = pneg %p149
        %p332 = pneg %p173
        %p333 = pneg %p170
        %p334 = pneg %p199
        %p335 = pneg %p196
        %s336 = sand.u32 %s186, 1
        %s337 = scalar_lea.sflag [#allocation5], %s336
        %s338 = sand.u32 %s186, 1
        %s339 = smul.addr %s338, 512
        %s340 = scalar_lea.vmem [#allocation11], %s339
        %v342 = vld [vmem:[%s298] sm:$0xf]
        %v343 = vld [vmem:[%s298 + $0x4] sm:$0xf]
        %v344 = vld [vmem:[%s298 + $0x8] sm:$0xf]
        %v345 = vld [vmem:[%s298 + $0xc] sm:$0xf]
        %v346 = vld [vmem:[%s298 + $0x10] sm:$0xf]
        %v347 = vld [vmem:[%s298 + $0x14] sm:$0xf]
        %v348 = vld [vmem:[%s298 + $0x18] sm:$0xf]
        %v349 = vld [vmem:[%s298 + $0x1c] sm:$0xf]
        %v350 = vld [vmem:[%s298 + $0x20] sm:$0xf]
        %v351 = vld [vmem:[%s298 + $0x24] sm:$0xf]
        %v352 = vld [vmem:[%s298 + $0x28] sm:$0xf]
        %v353 = vld [vmem:[%s298 + $0x2c] sm:$0xf]
        %v354 = vld [vmem:[%s298 + $0x30] sm:$0xf]
        %v355 = vld [vmem:[%s298 + $0x34] sm:$0xf]
        %v356 = vld [vmem:[%s298 + $0x38] sm:$0xf]
        %v357 = vld [vmem:[%s298 + $0x3c] sm:$0xf]
        %v358 = vld [vmem:[%s298 + $0x40] sm:$0xf]
        %v359 = vld [vmem:[%s298 + $0x44] sm:$0xf]
        %v360 = vld [vmem:[%s298 + $0x48] sm:$0xf]
        %v361 = vld [vmem:[%s298 + $0x4c] sm:$0xf]
        %v362 = vld [vmem:[%s298 + $0x50] sm:$0xf]
        %v363 = vld [vmem:[%s298 + $0x54] sm:$0xf]
        %v364 = vld [vmem:[%s298 + $0x58] sm:$0xf]
        %v365 = vld [vmem:[%s298 + $0x5c] sm:$0xf]
        %v366 = vld [vmem:[%s298 + $0x60] sm:$0xf]
        %v367 = vld [vmem:[%s298 + $0x64] sm:$0xf]
        %v368 = vld [vmem:[%s298 + $0x68] sm:$0xf]
        %v369 = vld [vmem:[%s298 + $0x6c] sm:$0xf]
        %v370 = vld [vmem:[%s298 + $0x70] sm:$0xf]
        %v371 = vld [vmem:[%s298 + $0x74] sm:$0xf]
        %v372 = vld [vmem:[%s298 + $0x78] sm:$0xf]
        %v373 = vld [vmem:[%s298 + $0x7c] sm:$0xf]
        %v374 = vld [vmem:[#allocation6] sm:$0xf]
        %v375 = vld [vmem:[#allocation6 + $0x4] sm:$0xf]
        %v376 = vld [vmem:[#allocation6 + $0x8] sm:$0xf]
        %v377 = vld [vmem:[#allocation6 + $0xc] sm:$0xf]
        %v378 = vld [vmem:[#allocation6 + $0x10] sm:$0xf]
        %v379 = vld [vmem:[#allocation6 + $0x14] sm:$0xf]
        %v380 = vld [vmem:[#allocation6 + $0x18] sm:$0xf]
        %v381 = vld [vmem:[#allocation6 + $0x1c] sm:$0xf]
        %v382 = vld [vmem:[#allocation6 + $0x20] sm:$0xf]
        %v383 = vld [vmem:[#allocation6 + $0x24] sm:$0xf]
        %v384 = vld [vmem:[#allocation6 + $0x28] sm:$0xf]
        %v385 = vld [vmem:[#allocation6 + $0x2c] sm:$0xf]
        %v386 = vld [vmem:[#allocation6 + $0x30] sm:$0xf]
        %v387 = vld [vmem:[#allocation6 + $0x34] sm:$0xf]
        %v388 = vld [vmem:[#allocation6 + $0x38] sm:$0xf]
        %v389 = vld [vmem:[#allocation6 + $0x3c] sm:$0xf]
        %v390 = vld [vmem:[%s2] sm:$0x1]
        %v392 = vlaneseq
        %v393 = vshrl.u32 %v392, 7
        %v394 = vsub.s32 0, %v393
        %v395 = vrot.slane %v390, %v394
        %v429 = vunpack.c.l.b16 %v342
        %v430 = vunpack.c.l.b16 %v343
        %v431 = vunpack.c.l.b16 %v344
        %v432 = vunpack.c.l.b16 %v345
        %v433 = vunpack.c.l.b16 %v346
        %v434 = vunpack.c.l.b16 %v347
        %v435 = vunpack.c.l.b16 %v348
        %v436 = vunpack.c.l.b16 %v349
        %v437 = vunpack.c.l.b16 %v350
        %v438 = vunpack.c.l.b16 %v351
        %v439 = vunpack.c.l.b16 %v352
        %v440 = vunpack.c.l.b16 %v353
        %v441 = vunpack.c.l.b16 %v354
        %v442 = vunpack.c.l.b16 %v355
        %v443 = vunpack.c.l.b16 %v356
        %v444 = vunpack.c.l.b16 %v357
        %v445 = vunpack.c.l.b16 %v358
        %v446 = vunpack.c.l.b16 %v359
        %v447 = vunpack.c.l.b16 %v360
        %v448 = vunpack.c.l.b16 %v361
        %v449 = vunpack.c.l.b16 %v362
        %v450 = vunpack.c.l.b16 %v363
        %v451 = vunpack.c.l.b16 %v364
        %v452 = vunpack.c.l.b16 %v365
        %v453 = vunpack.c.l.b16 %v366
        %v454 = vunpack.c.l.b16 %v367
        %v455 = vunpack.c.l.b16 %v368
        %v456 = vunpack.c.l.b16 %v369
        %v457 = vunpack.c.l.b16 %v370
        %v458 = vunpack.c.l.b16 %v371
        %v459 = vunpack.c.l.b16 %v372
        %v460 = vunpack.c.l.b16 %v373
        %v461 = vpack.c.b16 %v430, %v429
        %v462 = vpack.c.b16 %v432, %v431
        %v463 = vpack.c.b16 %v434, %v433
        %v464 = vpack.c.b16 %v436, %v435
        %v465 = vpack.c.b16 %v438, %v437
        %v466 = vpack.c.b16 %v440, %v439
        %v467 = vpack.c.b16 %v442, %v441
        %v468 = vpack.c.b16 %v444, %v443
        %v469 = vpack.c.b16 %v446, %v445
        %v470 = vpack.c.b16 %v448, %v447
        %v471 = vpack.c.b16 %v450, %v449
        %v472 = vpack.c.b16 %v452, %v451
        %v473 = vpack.c.b16 %v454, %v453
        %v474 = vpack.c.b16 %v456, %v455
        %v475 = vpack.c.b16 %v458, %v457
        %v476 = vpack.c.b16 %v460, %v459
        %v509 = vunpack.c.l.b16 %v374
        %v510 = vunpack.c.l.b16 %v375
        %v511 = vunpack.c.l.b16 %v376
        %v512 = vunpack.c.l.b16 %v377
        %v513 = vunpack.c.l.b16 %v378
        %v514 = vunpack.c.l.b16 %v379
        %v515 = vunpack.c.l.b16 %v380
        %v516 = vunpack.c.l.b16 %v381
        %v517 = vunpack.c.l.b16 %v382
        %v518 = vunpack.c.l.b16 %v383
        %v519 = vunpack.c.l.b16 %v384
        %v520 = vunpack.c.l.b16 %v385
        %v521 = vunpack.c.l.b16 %v386
        %v522 = vunpack.c.l.b16 %v387
        %v523 = vunpack.c.l.b16 %v388
        %v524 = vunpack.c.l.b16 %v389
        %v525 = vpack.c.b16 %v510, %v509
        %v526 = vpack.c.b16 %v512, %v511
        %v527 = vpack.c.b16 %v514, %v513
        %v528 = vpack.c.b16 %v516, %v515
        %v529 = vpack.c.b16 %v518, %v517
        %v530 = vpack.c.b16 %v520, %v519
        %v531 = vpack.c.b16 %v522, %v521
        %v532 = vpack.c.b16 %v524, %v523
        %541 = vmatprep.subr.bf16.mxu0 0
        %542 = vmatpush1.bf16.msra.mxu0 %v525
        %543 = vmatprep.subr.bf16.mxu0 0
        %544 = vmatpush1.bf16.msra.mxu0 %v526
        %545 = vmatprep.subr.bf16.mxu0 0
        %546 = vmatpush1.bf16.msra.mxu0 %v527
        %547 = vmatprep.subr.bf16.mxu0 0
        %548 = vmatpush1.bf16.msra.mxu0 %v528
        %549 = vmatprep.subr.bf16.mxu0 0
        %550 = vmatpush1.bf16.msra.mxu0 %v529
        %551 = vmatprep.subr.bf16.mxu0 0
        %552 = vmatpush1.bf16.msra.mxu0 %v530
        %553 = vmatprep.subr.bf16.mxu0 0
        %554 = vmatpush1.bf16.msra.mxu0 %v531
        %555 = vmatprep.subr.bf16.mxu0 0
        %556 = vmatpush1.bf16.msra.mxu0 %v532
        %557 = vmatprep.subr.bf16.mxu0 0
        %558 = vmatpush1.bf16.msra.mxu0 0
        %559 = vmatprep.subr.bf16.mxu0 0
        %560 = vmatpush1.bf16.msra.mxu0 0
        %561 = vmatprep.subr.bf16.mxu0 0
        %562 = vmatpush1.bf16.msra.mxu0 0
        %563 = vmatprep.subr.bf16.mxu0 0
        %564 = vmatpush1.bf16.msra.mxu0 0
        %565 = vmatprep.subr.bf16.mxu0 0
        %566 = vmatpush1.bf16.msra.mxu0 0
        %567 = vmatprep.subr.bf16.mxu0 0
        %568 = vmatpush1.bf16.msra.mxu0 0
        %569 = vmatprep.subr.bf16.mxu0 0
        %570 = vmatpush1.bf16.msra.mxu0 0
        %571 = vmatprep.subr.bf16.mxu0 0
        %572 = vmatpush1.bf16.msra.mxu0 0
        %573 = vmatprep.mubr.bf16.mxu0 0
        %574 = vmatmul.mubr.bf16.gmra.mrb[0].mxu0 %v461
        %v575 = vpop.f32.mrb[0].mxu0
        %v576 = vadd.f32 %v395, %v575
        %v577 = vpop.f32.mrb[0].mxu0
        %v578 = vpop.f32.mrb[0].mxu0
        %v579 = vadd.f32 %v395, %v578
        %v580 = vpop.f32.mrb[0].mxu0
        %581 = vmatprep.mubr.bf16.mxu0 0
        %582 = vmatmul.mubr.bf16.gmra.mrb[0].mxu0 %v462
        %v583 = vpop.f32.mrb[0].mxu0
        %v584 = vadd.f32 %v395, %v583
        %v585 = vpop.f32.mrb[0].mxu0
        %v586 = vpop.f32.mrb[0].mxu0
        %v587 = vadd.f32 %v395, %v586
        %v588 = vpop.f32.mrb[0].mxu0
        %589 = vmatprep.mubr.bf16.mxu0 0
        %590 = vmatmul.mubr.bf16.gmra.mrb[0].mxu0 %v463
        %v591 = vpop.f32.mrb[0].mxu0
        %v592 = vadd.f32 %v395, %v591
        %v593 = vpop.f32.mrb[0].mxu0
        %v594 = vpop.f32.mrb[0].mxu0
        %v595 = vadd.f32 %v395, %v594
        %v596 = vpop.f32.mrb[0].mxu0
        %597 = vmatprep.mubr.bf16.mxu0 0
        %598 = vmatmul.mubr.bf16.gmra.mrb[0].mxu0 %v464
        %v599 = vpop.f32.mrb[0].mxu0
        %v600 = vadd.f32 %v395, %v599
        %v601 = vpop.f32.mrb[0].mxu0
        %v602 = vpop.f32.mrb[0].mxu0
        %v603 = vadd.f32 %v395, %v602
        %v604 = vpop.f32.mrb[0].mxu0
        %605 = vmatprep.mubr.bf16.mxu0 0
        %606 = vmatmul.mubr.bf16.gmra.mrb[0].mxu0 %v465
        %v607 = vpop.f32.mrb[0].mxu0
        %v608 = vadd.f32 %v395, %v607
        %v609 = vpop.f32.mrb[0].mxu0
        %v610 = vpop.f32.mrb[0].mxu0
        %v611 = vadd.f32 %v395, %v610
        %v612 = vpop.f32.mrb[0].mxu0
        %613 = vmatprep.mubr.bf16.mxu0 0
        %614 = vmatmul.mubr.bf16.gmra.mrb[0].mxu0 %v466
        %v615 = vpop.f32.mrb[0].mxu0
        %v616 = vadd.f32 %v395, %v615
        %v617 = vpop.f32.mrb[0].mxu0
        %v618 = vpop.f32.mrb[0].mxu0
        %v619 = vadd.f32 %v395, %v618
        %v620 = vpop.f32.mrb[0].mxu0
        %621 = vmatprep.mubr.bf16.mxu0 0
        %622 = vmatmul.mubr.bf16.gmra.mrb[0].mxu0 %v467
        %v623 = vpop.f32.mrb[0].mxu0
        %v624 = vadd.f32 %v395, %v623
        %v625 = vpop.f32.mrb[0].mxu0
        %v626 = vpop.f32.mrb[0].mxu0
        %v627 = vadd.f32 %v395, %v626
        %v628 = vpop.f32.mrb[0].mxu0
        %629 = vmatprep.mubr.bf16.mxu0 0
        %630 = vmatmul.mubr.bf16.gmra.mrb[0].mxu0 %v468
        %v631 = vpop.f32.mrb[0].mxu0
        %v632 = vadd.f32 %v395, %v631
        %v633 = vpop.f32.mrb[0].mxu0
        %v634 = vpop.f32.mrb[0].mxu0
        %v635 = vadd.f32 %v395, %v634
        %v636 = vpop.f32.mrb[0].mxu0
        %637 = vmatprep.mubr.bf16.mxu0 0
        %638 = vmatmul.mubr.bf16.gmra.mrb[0].mxu0 %v469
        %v639 = vpop.f32.mrb[0].mxu0
        %v640 = vadd.f32 %v395, %v639
        %v641 = vpop.f32.mrb[0].mxu0
        %v642 = vpop.f32.mrb[0].mxu0
        %v643 = vadd.f32 %v395, %v642
        %v644 = vpop.f32.mrb[0].mxu0
        %645 = vmatprep.mubr.bf16.mxu0 0
        %646 = vmatmul.mubr.bf16.gmra.mrb[0].mxu0 %v470
        %v647 = vpop.f32.mrb[0].mxu0
        %v648 = vadd.f32 %v395, %v647
        %v649 = vpop.f32.mrb[0].mxu0
        %v650 = vpop.f32.mrb[0].mxu0
        %v651 = vadd.f32 %v395, %v650
        %v652 = vpop.f32.mrb[0].mxu0
        %653 = vmatprep.mubr.bf16.mxu0 0
        %654 = vmatmul.mubr.bf16.gmra.mrb[0].mxu0 %v471
        %v655 = vpop.f32.mrb[0].mxu0
        %v656 = vadd.f32 %v395, %v655
        %v657 = vpop.f32.mrb[0].mxu0
        %v658 = vpop.f32.mrb[0].mxu0
        %v659 = vadd.f32 %v395, %v658
        %v660 = vpop.f32.mrb[0].mxu0
        %661 = vmatprep.mubr.bf16.mxu0 0
        %662 = vmatmul.mubr.bf16.gmra.mrb[0].mxu0 %v472
        %v663 = vpop.f32.mrb[0].mxu0
        %v664 = vadd.f32 %v395, %v663
        %v665 = vpop.f32.mrb[0].mxu0
        %v666 = vpop.f32.mrb[0].mxu0
        %v667 = vadd.f32 %v395, %v666
        %v668 = vpop.f32.mrb[0].mxu0
        %669 = vmatprep.mubr.bf16.mxu0 0
        %670 = vmatmul.mubr.bf16.gmra.mrb[0].mxu0 %v473
        %v671 = vpop.f32.mrb[0].mxu0
        %v672 = vadd.f32 %v395, %v671
        %v673 = vpop.f32.mrb[0].mxu0
        %v674 = vpop.f32.mrb[0].mxu0
        %v675 = vadd.f32 %v395, %v674
        %v676 = vpop.f32.mrb[0].mxu0
        %677 = vmatprep.mubr.bf16.mxu0 0
        %678 = vmatmul.mubr.bf16.gmra.mrb[0].mxu0 %v474
        %v679 = vpop.f32.mrb[0].mxu0
        %v680 = vadd.f32 %v395, %v679
        %v681 = vpop.f32.mrb[0].mxu0
        %v682 = vpop.f32.mrb[0].mxu0
        %v683 = vadd.f32 %v395, %v682
        %v684 = vpop.f32.mrb[0].mxu0
        %685 = vmatprep.mubr.bf16.mxu0 0
        %686 = vmatmul.mubr.bf16.gmra.mrb[0].mxu0 %v475
        %v687 = vpop.f32.mrb[0].mxu0
        %v688 = vadd.f32 %v395, %v687
        %v689 = vpop.f32.mrb[0].mxu0
        %v690 = vpop.f32.mrb[0].mxu0
        %v691 = vadd.f32 %v395, %v690
        %v692 = vpop.f32.mrb[0].mxu0
        %693 = vmatprep.mubr.bf16.mxu0 0
        %694 = vmatmul.mubr.bf16.gmra.mrb[0].mxu0 %v476
        %v695 = vpop.f32.mrb[0].mxu0
        %v696 = vadd.f32 %v395, %v695
        %v697 = vpop.f32.mrb[0].mxu0
        %v698 = vpop.f32.mrb[0].mxu0
        %v699 = vadd.f32 %v395, %v698
        %v700 = vpop.f32.mrb[0].mxu0
        %701 = vdwg.mxu0
        %v702 = vmax.f32 %v576, 0.0
        %v703 = vmax.f32 %v579, 0.0
        %v704 = vmax.f32 %v584, 0.0
        %v705 = vmax.f32 %v587, 0.0
        %v706 = vmax.f32 %v592, 0.0
        %v707 = vmax.f32 %v595, 0.0
        %v708 = vmax.f32 %v600, 0.0
        %v709 = vmax.f32 %v603, 0.0
        %v710 = vmax.f32 %v608, 0.0
        %v711 = vmax.f32 %v611, 0.0
        %v712 = vmax.f32 %v616, 0.0
        %v713 = vmax.f32 %v619, 0.0
        %v714 = vmax.f32 %v624, 0.0
        %v715 = vmax.f32 %v627, 0.0
        %v716 = vmax.f32 %v632, 0.0
        %v717 = vmax.f32 %v635, 0.0
        %v718 = vmax.f32 %v640, 0.0
        %v719 = vmax.f32 %v643, 0.0
        %v720 = vmax.f32 %v648, 0.0
        %v721 = vmax.f32 %v651, 0.0
        %v722 = vmax.f32 %v656, 0.0
        %v723 = vmax.f32 %v659, 0.0
        %v724 = vmax.f32 %v664, 0.0
        %v725 = vmax.f32 %v667, 0.0
        %v726 = vmax.f32 %v672, 0.0
        %v727 = vmax.f32 %v675, 0.0
        %v728 = vmax.f32 %v680, 0.0
        %v729 = vmax.f32 %v683, 0.0
        %v730 = vmax.f32 %v688, 0.0
        %v731 = vmax.f32 %v691, 0.0
        %v732 = vmax.f32 %v696, 0.0
        %v733 = vmax.f32 %v699, 0.0
        %v734 = vpack.c.bf16 %v703, %v702
        %v735 = vpack.c.bf16 %v705, %v704
        %v736 = vpack.c.bf16 %v707, %v706
        %v737 = vpack.c.bf16 %v709, %v708
        %v738 = vpack.c.bf16 %v711, %v710
        %v739 = vpack.c.bf16 %v713, %v712
        %v740 = vpack.c.bf16 %v715, %v714
        %v741 = vpack.c.bf16 %v717, %v716
        %v742 = vpack.c.bf16 %v719, %v718
        %v743 = vpack.c.bf16 %v721, %v720
        %v744 = vpack.c.bf16 %v723, %v722
        %v745 = vpack.c.bf16 %v725, %v724
        %v746 = vpack.c.bf16 %v727, %v726
        %v747 = vpack.c.bf16 %v729, %v728
        %v748 = vpack.c.bf16 %v731, %v730
        %v749 = vpack.c.bf16 %v733, %v732
        %750 = vst [vmem:[#allocation2] sm:$0xf] 0
        %751 = vst [vmem:[#allocation2 + $0x4] sm:$0xf] 0
        %752 = vst [vmem:[#allocation2 + $0x8] sm:$0x1] 0
        %s753 = scalar_lea.vmem [#allocation2], 204
        %754 = vst [vmem:[%s753] sm:$0xf] 0
        %755 = vst [vmem:[%s753 + $0x4] sm:$0xf] 0
        %756 = vst [vmem:[%s753 + $0x8] sm:$0x1] 0
        %vm757 = vcmask 1040384
        %vm758 = vsmask.f32 256
        %vm759 = vmand %vm757, %vm758
        %v760 = vld [vmem:[#allocation2] sm:$0x1]
        %v761 = vsel %vm759, 0, %v760
        %762 = vst [vmem:[#allocation2] sm:$0x1] %v761
        %v763 = vld [vmem:[#allocation2 + $0xc] sm:$0x1]
        %v764 = vsel %vm759, 0, %v763
        %765 = vst [vmem:[#allocation2 + $0xc] sm:$0x1] %v764
        %v766 = vld [vmem:[#allocation2 + $0x18] sm:$0x1]
        %v767 = vsel %vm759, 0, %v766
        %768 = vst [vmem:[#allocation2 + $0x18] sm:$0x1] %v767
        %v769 = vld [vmem:[#allocation2 + $0x24] sm:$0x1]
        %v770 = vsel %vm759, 0, %v769
        %771 = vst [vmem:[#allocation2 + $0x24] sm:$0x1] %v770
        %v772 = vld [vmem:[#allocation2 + $0x30] sm:$0x1]
        %v773 = vsel %vm759, 0, %v772
        %774 = vst [vmem:[#allocation2 + $0x30] sm:$0x1] %v773
        %v775 = vld [vmem:[#allocation2 + $0x3c] sm:$0x1]
        %v776 = vsel %vm759, 0, %v775
        %777 = vst [vmem:[#allocation2 + $0x3c] sm:$0x1] %v776
        %v778 = vld [vmem:[#allocation2 + $0x48] sm:$0x1]
        %v779 = vsel %vm759, 0, %v778
        %780 = vst [vmem:[#allocation2 + $0x48] sm:$0x1] %v779
        %v781 = vld [vmem:[#allocation2 + $0x54] sm:$0x1]
        %v782 = vsel %vm759, 0, %v781
        %783 = vst [vmem:[#allocation2 + $0x54] sm:$0x1] %v782
        %v784 = vld [vmem:[#allocation2 + $0x60] sm:$0x1]
        %v785 = vsel %vm759, 0, %v784
        %786 = vst [vmem:[#allocation2 + $0x60] sm:$0x1] %v785
        %v787 = vld [vmem:[#allocation2 + $0x6c] sm:$0x1]
        %v788 = vsel %vm759, 0, %v787
        %789 = vst [vmem:[#allocation2 + $0x6c] sm:$0x1] %v788
        %v790 = vld [vmem:[#allocation2 + $0x78] sm:$0x1]
        %v791 = vsel %vm759, 0, %v790
        %792 = vst [vmem:[#allocation2 + $0x78] sm:$0x1] %v791
        %v793 = vld [vmem:[#allocation2 + $0x84] sm:$0x1]
        %v794 = vsel %vm759, 0, %v793
        %795 = vst [vmem:[#allocation2 + $0x84] sm:$0x1] %v794
        %v796 = vld [vmem:[#allocation2 + $0x90] sm:$0x1]
        %v797 = vsel %vm759, 0, %v796
        %798 = vst [vmem:[#allocation2 + $0x90] sm:$0x1] %v797
        %v799 = vld [vmem:[#allocation2 + $0x9c] sm:$0x1]
        %v800 = vsel %vm759, 0, %v799
        %801 = vst [vmem:[#allocation2 + $0x9c] sm:$0x1] %v800
        %v802 = vld [vmem:[#allocation2 + $0xa8] sm:$0x1]
        %v803 = vsel %vm759, 0, %v802
        %804 = vst [vmem:[#allocation2 + $0xa8] sm:$0x1] %v803
        %v805 = vld [vmem:[#allocation2 + $0xb4] sm:$0x1]
        %v806 = vsel %vm759, 0, %v805
        %807 = vst [vmem:[#allocation2 + $0xb4] sm:$0x1] %v806
        %v808 = vld [vmem:[#allocation2 + $0xc0] sm:$0x1]
        %v809 = vsel %vm759, 0, %v808
        %810 = vst [vmem:[#allocation2 + $0xc0] sm:$0x1] %v809
        %v811 = vld [vmem:[#allocation2 + $0xcc] sm:$0x1]
        %v812 = vsel %vm759, 0, %v811
        %813 = vst [vmem:[#allocation2 + $0xcc] sm:$0x1] %v812
        %vm814 = vsmask.f32 7938
        %vm815 = vmand %vm757, %vm814
        %v816 = vld [vmem:[#allocation2 + $0x8] sm:$0x1]
        %v817 = vsel %vm815, 0, %v816
        %818 = vst [vmem:[#allocation2 + $0x8] sm:$0x1] %v817
        %v819 = vld [vmem:[#allocation2 + $0x14] sm:$0x1]
        %v820 = vsel %vm815, 0, %v819
        %821 = vst [vmem:[#allocation2 + $0x14] sm:$0x1] %v820
        %v822 = vld [vmem:[#allocation2 + $0x20] sm:$0x1]
        %v823 = vsel %vm815, 0, %v822
        %824 = vst [vmem:[#allocation2 + $0x20] sm:$0x1] %v823
        %v825 = vld [vmem:[#allocation2 + $0x2c] sm:$0x1]
        %v826 = vsel %vm815, 0, %v825
        %827 = vst [vmem:[#allocation2 + $0x2c] sm:$0x1] %v826
        %v828 = vld [vmem:[#allocation2 + $0x38] sm:$0x1]
        %v829 = vsel %vm815, 0, %v828
        %830 = vst [vmem:[#allocation2 + $0x38] sm:$0x1] %v829
        %v831 = vld [vmem:[#allocation2 + $0x44] sm:$0x1]
        %v832 = vsel %vm815, 0, %v831
        %833 = vst [vmem:[#allocation2 + $0x44] sm:$0x1] %v832
        %v834 = vld [vmem:[#allocation2 + $0x50] sm:$0x1]
        %v835 = vsel %vm815, 0, %v834
        %836 = vst [vmem:[#allocation2 + $0x50] sm:$0x1] %v835
        %v837 = vld [vmem:[#allocation2 + $0x5c] sm:$0x1]
        %v838 = vsel %vm815, 0, %v837
        %839 = vst [vmem:[#allocation2 + $0x5c] sm:$0x1] %v838
        %v840 = vld [vmem:[#allocation2 + $0x68] sm:$0x1]
        %v841 = vsel %vm815, 0, %v840
        %842 = vst [vmem:[#allocation2 + $0x68] sm:$0x1] %v841
        %v843 = vld [vmem:[#allocation2 + $0x74] sm:$0x1]
        %v844 = vsel %vm815, 0, %v843
        %845 = vst [vmem:[#allocation2 + $0x74] sm:$0x1] %v844
        %v846 = vld [vmem:[#allocation2 + $0x80] sm:$0x1]
        %v847 = vsel %vm815, 0, %v846
        %848 = vst [vmem:[#allocation2 + $0x80] sm:$0x1] %v847
        %v849 = vld [vmem:[#allocation2 + $0x8c] sm:$0x1]
        %v850 = vsel %vm815, 0, %v849
        %851 = vst [vmem:[#allocation2 + $0x8c] sm:$0x1] %v850
        %v852 = vld [vmem:[#allocation2 + $0x98] sm:$0x1]
        %v853 = vsel %vm815, 0, %v852
        %854 = vst [vmem:[#allocation2 + $0x98] sm:$0x1] %v853
        %v855 = vld [vmem:[#allocation2 + $0xa4] sm:$0x1]
        %v856 = vsel %vm815, 0, %v855
        %857 = vst [vmem:[#allocation2 + $0xa4] sm:$0x1] %v856
        %v858 = vld [vmem:[#allocation2 + $0xb0] sm:$0x1]
        %v859 = vsel %vm815, 0, %v858
        %860 = vst [vmem:[#allocation2 + $0xb0] sm:$0x1] %v859
        %v861 = vld [vmem:[#allocation2 + $0xbc] sm:$0x1]
        %v862 = vsel %vm815, 0, %v861
        %863 = vst [vmem:[#allocation2 + $0xbc] sm:$0x1] %v862
        %v864 = vld [vmem:[#allocation2 + $0xc8] sm:$0x1]
        %v865 = vsel %vm815, 0, %v864
        %866 = vst [vmem:[#allocation2 + $0xc8] sm:$0x1] %v865
        %v867 = vld [vmem:[#allocation2 + $0xd4] sm:$0x1]
        %v868 = vsel %vm815, 0, %v867
        %869 = vst [vmem:[#allocation2 + $0xd4] sm:$0x1] %v868
        %v886 = vunpack.c.l.b16 %v734
        %v887 = vunpack.c.h.b16 %v734
        %v888 = vunpack.c.l.b16 %v735
        %v889 = vunpack.c.h.b16 %v735
        %v890 = vunpack.c.l.b16 %v736
        %v891 = vunpack.c.h.b16 %v736
        %v892 = vunpack.c.l.b16 %v737
        %v893 = vunpack.c.h.b16 %v737
        %v894 = vunpack.c.l.b16 %v738
        %v895 = vunpack.c.h.b16 %v738
        %v896 = vunpack.c.l.b16 %v739
        %v897 = vunpack.c.h.b16 %v739
        %v898 = vunpack.c.l.b16 %v740
        %v899 = vunpack.c.h.b16 %v740
        %v900 = vunpack.c.l.b16 %v741
        %v901 = vunpack.c.h.b16 %v741
        %v902 = vunpack.c.l.b16 %v742
        %v903 = vunpack.c.h.b16 %v742
        %v904 = vunpack.c.l.b16 %v743
        %v905 = vunpack.c.h.b16 %v743
        %v906 = vunpack.c.l.b16 %v744
        %v907 = vunpack.c.h.b16 %v744
        %v908 = vunpack.c.l.b16 %v745
        %v909 = vunpack.c.h.b16 %v745
        %v910 = vunpack.c.l.b16 %v746
        %v911 = vunpack.c.h.b16 %v746
        %v912 = vunpack.c.l.b16 %v747
        %v913 = vunpack.c.h.b16 %v747
        %v914 = vunpack.c.l.b16 %v748
        %v915 = vunpack.c.h.b16 %v748
        %v916 = vunpack.c.l.b16 %v749
        %v917 = vunpack.c.h.b16 %v749
        %v918 = vpack.c.b16 %v886, %v886
        %v919 = vpack.c.b16 %v887, %v887
        %v920 = vpack.c.b16 %v888, %v888
        %v921 = vpack.c.b16 %v889, %v889
        %v922 = vpack.c.b16 %v890, %v890
        %v923 = vpack.c.b16 %v891, %v891
        %v924 = vpack.c.b16 %v892, %v892
        %v925 = vpack.c.b16 %v893, %v893
        %v926 = vpack.c.b16 %v894, %v894
        %v927 = vpack.c.b16 %v895, %v895
        %v928 = vpack.c.b16 %v896, %v896
        %v929 = vpack.c.b16 %v897, %v897
        %v930 = vpack.c.b16 %v898, %v898
        %v931 = vpack.c.b16 %v899, %v899
        %v932 = vpack.c.b16 %v900, %v900
        %v933 = vpack.c.b16 %v901, %v901
        %v934 = vpack.c.b16 %v902, %v902
        %v935 = vpack.c.b16 %v903, %v903
        %v936 = vpack.c.b16 %v904, %v904
        %v937 = vpack.c.b16 %v905, %v905
        %v938 = vpack.c.b16 %v906, %v906
        %v939 = vpack.c.b16 %v907, %v907
        %v940 = vpack.c.b16 %v908, %v908
        %v941 = vpack.c.b16 %v909, %v909
        %v942 = vpack.c.b16 %v910, %v910
        %v943 = vpack.c.b16 %v911, %v911
        %v944 = vpack.c.b16 %v912, %v912
        %v945 = vpack.c.b16 %v913, %v913
        %v946 = vpack.c.b16 %v914, %v914
        %v947 = vpack.c.b16 %v915, %v915
        %v948 = vpack.c.b16 %v916, %v916
        %v949 = vpack.c.b16 %v917, %v917
        %vm950 = vsmask.f32 4368
        %vm951 = vmor %vm758, %vm950
        %v953 = vshrl.u32 %v918, 16
        %v955 = vrot.slane %v953, 7
        %v956 = vshll.u32 %v918, 16
        %v958 = vor.u32 %v955, %v956
        %v959 = vrot.slane %v955, 4
        %v961 = vshrl.u32 %v919, 16
        %v963 = vrot.slane %v961, 7
        %v964 = vshll.u32 %v919, 16
        %v966 = vor.u32 %v963, %v964
        %v967 = vsel %vm951, %v959, %v966
        %v968 = vrot.slane %v963, 4
        %v970 = vshrl.u32 %v920, 16
        %v972 = vrot.slane %v970, 7
        %v973 = vshll.u32 %v920, 16
        %v975 = vor.u32 %v972, %v973
        %v976 = vrot.slane %v972, 4
        %v978 = vshrl.u32 %v921, 16
        %v980 = vrot.slane %v978, 7
        %v981 = vshll.u32 %v921, 16
        %v983 = vor.u32 %v980, %v981
        %v984 = vsel %vm951, %v976, %v983
        %v985 = vrot.slane %v980, 4
        %v987 = vshrl.u32 %v922, 16
        %v989 = vrot.slane %v987, 7
        %v990 = vshll.u32 %v922, 16
        %v992 = vor.u32 %v989, %v990
        %v993 = vrot.slane %v989, 4
        %v995 = vshrl.u32 %v923, 16
        %v997 = vrot.slane %v995, 7
        %v998 = vshll.u32 %v923, 16
        %v1000 = vor.u32 %v997, %v998
        %v1001 = vsel %vm951, %v993, %v1000
        %v1002 = vrot.slane %v997, 4
        %v1004 = vshrl.u32 %v924, 16
        %v1006 = vrot.slane %v1004, 7
        %v1007 = vshll.u32 %v924, 16
        %v1009 = vor.u32 %v1006, %v1007
        %v1010 = vrot.slane %v1006, 4
        %v1012 = vshrl.u32 %v925, 16
        %v1014 = vrot.slane %v1012, 7
        %v1015 = vshll.u32 %v925, 16
        %v1017 = vor.u32 %v1014, %v1015
        %v1018 = vsel %vm951, %v1010, %v1017
        %v1019 = vrot.slane %v1014, 4
        %v1021 = vshrl.u32 %v926, 16
        %v1023 = vrot.slane %v1021, 7
        %v1024 = vshll.u32 %v926, 16
        %v1026 = vor.u32 %v1023, %v1024
        %v1027 = vrot.slane %v1023, 4
        %v1029 = vshrl.u32 %v927, 16
        %v1031 = vrot.slane %v1029, 7
        %v1032 = vshll.u32 %v927, 16
        %v1034 = vor.u32 %v1031, %v1032
        %v1035 = vsel %vm951, %v1027, %v1034
        %v1036 = vrot.slane %v1031, 4
        %v1038 = vshrl.u32 %v928, 16
        %v1040 = vrot.slane %v1038, 7
        %v1041 = vshll.u32 %v928, 16
        %v1043 = vor.u32 %v1040, %v1041
        %v1044 = vrot.slane %v1040, 4
        %v1046 = vshrl.u32 %v929, 16
        %v1048 = vrot.slane %v1046, 7
        %v1049 = vshll.u32 %v929, 16
        %v1051 = vor.u32 %v1048, %v1049
        %v1052 = vsel %vm951, %v1044, %v1051
        %v1053 = vrot.slane %v1048, 4
        %v1055 = vshrl.u32 %v930, 16
        %v1057 = vrot.slane %v1055, 7
        %v1058 = vshll.u32 %v930, 16
        %v1060 = vor.u32 %v1057, %v1058
        %v1061 = vrot.slane %v1057, 4
        %v1063 = vshrl.u32 %v931, 16
        %v1065 = vrot.slane %v1063, 7
        %v1066 = vshll.u32 %v931, 16
        %v1068 = vor.u32 %v1065, %v1066
        %v1069 = vsel %vm951, %v1061, %v1068
        %v1070 = vrot.slane %v1065, 4
        %v1072 = vshrl.u32 %v932, 16
        %v1074 = vrot.slane %v1072, 7
        %v1075 = vshll.u32 %v932, 16
        %v1077 = vor.u32 %v1074, %v1075
        %v1078 = vrot.slane %v1074, 4
        %v1080 = vshrl.u32 %v933, 16
        %v1082 = vrot.slane %v1080, 7
        %v1083 = vshll.u32 %v933, 16
        %v1085 = vor.u32 %v1082, %v1083
        %v1086 = vsel %vm951, %v1078, %v1085
        %v1087 = vrot.slane %v1082, 4
        %v1089 = vshrl.u32 %v934, 16
        %v1091 = vrot.slane %v1089, 7
        %v1092 = vshll.u32 %v934, 16
        %v1094 = vor.u32 %v1091, %v1092
        %v1095 = vrot.slane %v1091, 4
        %v1097 = vshrl.u32 %v935, 16
        %v1099 = vrot.slane %v1097, 7
        %v1100 = vshll.u32 %v935, 16
        %v1102 = vor.u32 %v1099, %v1100
        %v1103 = vsel %vm951, %v1095, %v1102
        %v1104 = vrot.slane %v1099, 4
        %v1106 = vshrl.u32 %v936, 16
        %v1108 = vrot.slane %v1106, 7
        %v1109 = vshll.u32 %v936, 16
        %v1111 = vor.u32 %v1108, %v1109
        %v1112 = vrot.slane %v1108, 4
        %v1114 = vshrl.u32 %v937, 16
        %v1116 = vrot.slane %v1114, 7
        %v1117 = vshll.u32 %v937, 16
        %v1119 = vor.u32 %v1116, %v1117
        %v1120 = vsel %vm951, %v1112, %v1119
        %v1121 = vrot.slane %v1116, 4
        %v1123 = vshrl.u32 %v938, 16
        %v1125 = vrot.slane %v1123, 7
        %v1126 = vshll.u32 %v938, 16
        %v1128 = vor.u32 %v1125, %v1126
        %v1129 = vrot.slane %v1125, 4
        %v1131 = vshrl.u32 %v939, 16
        %v1133 = vrot.slane %v1131, 7
        %v1134 = vshll.u32 %v939, 16
        %v1136 = vor.u32 %v1133, %v1134
        %v1137 = vsel %vm951, %v1129, %v1136
        %v1138 = vrot.slane %v1133, 4
        %v1140 = vshrl.u32 %v940, 16
        %v1142 = vrot.slane %v1140, 7
        %v1143 = vshll.u32 %v940, 16
        %v1145 = vor.u32 %v1142, %v1143
        %v1146 = vrot.slane %v1142, 4
        %v1148 = vshrl.u32 %v941, 16
        %v1150 = vrot.slane %v1148, 7
        %v1151 = vshll.u32 %v941, 16
        %v1153 = vor.u32 %v1150, %v1151
        %v1154 = vsel %vm951, %v1146, %v1153
        %v1155 = vrot.slane %v1150, 4
        %v1157 = vshrl.u32 %v942, 16
        %v1159 = vrot.slane %v1157, 7
        %v1160 = vshll.u32 %v942, 16
        %v1162 = vor.u32 %v1159, %v1160
        %v1163 = vrot.slane %v1159, 4
        %v1165 = vshrl.u32 %v943, 16
        %v1167 = vrot.slane %v1165, 7
        %v1168 = vshll.u32 %v943, 16
        %v1170 = vor.u32 %v1167, %v1168
        %v1171 = vsel %vm951, %v1163, %v1170
        %v1172 = vrot.slane %v1167, 4
        %v1174 = vshrl.u32 %v944, 16
        %v1176 = vrot.slane %v1174, 7
        %v1177 = vshll.u32 %v944, 16
        %v1179 = vor.u32 %v1176, %v1177
        %v1180 = vrot.slane %v1176, 4
        %v1182 = vshrl.u32 %v945, 16
        %v1184 = vrot.slane %v1182, 7
        %v1185 = vshll.u32 %v945, 16
        %v1187 = vor.u32 %v1184, %v1185
        %v1188 = vsel %vm951, %v1180, %v1187
        %v1189 = vrot.slane %v1184, 4
        %v1191 = vshrl.u32 %v946, 16
        %v1193 = vrot.slane %v1191, 7
        %v1194 = vshll.u32 %v946, 16
        %v1196 = vor.u32 %v1193, %v1194
        %v1197 = vrot.slane %v1193, 4
        %v1199 = vshrl.u32 %v947, 16
        %v1201 = vrot.slane %v1199, 7
        %v1202 = vshll.u32 %v947, 16
        %v1204 = vor.u32 %v1201, %v1202
        %v1205 = vsel %vm951, %v1197, %v1204
        %v1206 = vrot.slane %v1201, 4
        %v1208 = vshrl.u32 %v948, 16
        %v1210 = vrot.slane %v1208, 7
        %v1211 = vshll.u32 %v948, 16
        %v1213 = vor.u32 %v1210, %v1211
        %v1214 = vrot.slane %v1210, 4
        %v1216 = vshrl.u32 %v949, 16
        %v1218 = vrot.slane %v1216, 7
        %v1219 = vshll.u32 %v949, 16
        %v1221 = vor.u32 %v1218, %v1219
        %v1222 = vsel %vm951, %v1214, %v1221
        %v1223 = vrot.slane %v1218, 4
        %s1272 = scalar_lea.vmem [#allocation2], 12
        %vm1273 = vcmask 1043456
        %vm1274 = vmand %vm1273, %vm814
        %v1275 = vld [vmem:[%s1272] sm:$0xf]
        %v1276 = vsel %vm1274, %v958, %v1275
        %1277 = vst [vmem:[%s1272] sm:$0xf] %v1276
        %1278 = vst [vmem:[%s1272 + $0x4] sm:$0xf] %v967
        %v1279 = vld [vmem:[%s1272 + $0x8] sm:$0x1]
        %v1280 = vsel %vm759, %v968, %v1279
        %1281 = vst [vmem:[%s1272 + $0x8] sm:$0x1] %v1280
        %v1282 = vld [vmem:[%s1272 + $0xc] sm:$0xf]
        %v1283 = vsel %vm1274, %v975, %v1282
        %1284 = vst [vmem:[%s1272 + $0xc] sm:$0xf] %v1283
        %1285 = vst [vmem:[%s1272 + $0x10] sm:$0xf] %v984
        %v1286 = vld [vmem:[%s1272 + $0x14] sm:$0x1]
        %v1287 = vsel %vm759, %v985, %v1286
        %1288 = vst [vmem:[%s1272 + $0x14] sm:$0x1] %v1287
        %v1289 = vld [vmem:[%s1272 + $0x18] sm:$0xf]
        %v1290 = vsel %vm1274, %v992, %v1289
        %1291 = vst [vmem:[%s1272 + $0x18] sm:$0xf] %v1290
        %1292 = vst [vmem:[%s1272 + $0x1c] sm:$0xf] %v1001
        %v1293 = vld [vmem:[%s1272 + $0x20] sm:$0x1]
        %v1294 = vsel %vm759, %v1002, %v1293
        %1295 = vst [vmem:[%s1272 + $0x20] sm:$0x1] %v1294
        %v1296 = vld [vmem:[%s1272 + $0x24] sm:$0xf]
        %v1297 = vsel %vm1274, %v1009, %v1296
        %1298 = vst [vmem:[%s1272 + $0x24] sm:$0xf] %v1297
        %1299 = vst [vmem:[%s1272 + $0x28] sm:$0xf] %v1018
        %v1300 = vld [vmem:[%s1272 + $0x2c] sm:$0x1]
        %v1301 = vsel %vm759, %v1019, %v1300
        %1302 = vst [vmem:[%s1272 + $0x2c] sm:$0x1] %v1301
        %v1303 = vld [vmem:[%s1272 + $0x30] sm:$0xf]
        %v1304 = vsel %vm1274, %v1026, %v1303
        %1305 = vst [vmem:[%s1272 + $0x30] sm:$0xf] %v1304
        %1306 = vst [vmem:[%s1272 + $0x34] sm:$0xf] %v1035
        %v1307 = vld [vmem:[%s1272 + $0x38] sm:$0x1]
        %v1308 = vsel %vm759, %v1036, %v1307
        %1309 = vst [vmem:[%s1272 + $0x38] sm:$0x1] %v1308
        %v1310 = vld [vmem:[%s1272 + $0x3c] sm:$0xf]
        %v1311 = vsel %vm1274, %v1043, %v1310
        %1312 = vst [vmem:[%s1272 + $0x3c] sm:$0xf] %v1311
        %1313 = vst [vmem:[%s1272 + $0x40] sm:$0xf] %v1052
        %v1314 = vld [vmem:[%s1272 + $0x44] sm:$0x1]
        %v1315 = vsel %vm759, %v1053, %v1314
        %1316 = vst [vmem:[%s1272 + $0x44] sm:$0x1] %v1315
        %v1317 = vld [vmem:[%s1272 + $0x48] sm:$0xf]
        %v1318 = vsel %vm1274, %v1060, %v1317
        %1319 = vst [vmem:[%s1272 + $0x48] sm:$0xf] %v1318
        %1320 = vst [vmem:[%s1272 + $0x4c] sm:$0xf] %v1069
        %v1321 = vld [vmem:[%s1272 + $0x50] sm:$0x1]
        %v1322 = vsel %vm759, %v1070, %v1321
        %1323 = vst [vmem:[%s1272 + $0x50] sm:$0x1] %v1322
        %v1324 = vld [vmem:[%s1272 + $0x54] sm:$0xf]
        %v1325 = vsel %vm1274, %v1077, %v1324
        %1326 = vst [vmem:[%s1272 + $0x54] sm:$0xf] %v1325
        %1327 = vst [vmem:[%s1272 + $0x58] sm:$0xf] %v1086
        %v1328 = vld [vmem:[%s1272 + $0x5c] sm:$0x1]
        %v1329 = vsel %vm759, %v1087, %v1328
        %1330 = vst [vmem:[%s1272 + $0x5c] sm:$0x1] %v1329
        %v1331 = vld [vmem:[%s1272 + $0x60] sm:$0xf]
        %v1332 = vsel %vm1274, %v1094, %v1331
        %1333 = vst [vmem:[%s1272 + $0x60] sm:$0xf] %v1332
        %1334 = vst [vmem:[%s1272 + $0x64] sm:$0xf] %v1103
        %v1335 = vld [vmem:[%s1272 + $0x68] sm:$0x1]
        %v1336 = vsel %vm759, %v1104, %v1335
        %1337 = vst [vmem:[%s1272 + $0x68] sm:$0x1] %v1336
        %v1338 = vld [vmem:[%s1272 + $0x6c] sm:$0xf]
        %v1339 = vsel %vm1274, %v1111, %v1338
        %1340 = vst [vmem:[%s1272 + $0x6c] sm:$0xf] %v1339
        %1341 = vst [vmem:[%s1272 + $0x70] sm:$0xf] %v1120
        %v1342 = vld [vmem:[%s1272 + $0x74] sm:$0x1]
        %v1343 = vsel %vm759, %v1121, %v1342
        %1344 = vst [vmem:[%s1272 + $0x74] sm:$0x1] %v1343
        %v1345 = vld [vmem:[%s1272 + $0x78] sm:$0xf]
        %v1346 = vsel %vm1274, %v1128, %v1345
        %1347 = vst [vmem:[%s1272 + $0x78] sm:$0xf] %v1346
        %1348 = vst [vmem:[%s1272 + $0x7c] sm:$0xf] %v1137
        %v1349 = vld [vmem:[%s1272 + $0x80] sm:$0x1]
        %v1350 = vsel %vm759, %v1138, %v1349
        %1351 = vst [vmem:[%s1272 + $0x80] sm:$0x1] %v1350
        %v1352 = vld [vmem:[%s1272 + $0x84] sm:$0xf]
        %v1353 = vsel %vm1274, %v1145, %v1352
        %1354 = vst [vmem:[%s1272 + $0x84] sm:$0xf] %v1353
        %1355 = vst [vmem:[%s1272 + $0x88] sm:$0xf] %v1154
        %v1356 = vld [vmem:[%s1272 + $0x8c] sm:$0x1]
        %v1357 = vsel %vm759, %v1155, %v1356
        %1358 = vst [vmem:[%s1272 + $0x8c] sm:$0x1] %v1357
        %v1359 = vld [vmem:[%s1272 + $0x90] sm:$0xf]
        %v1360 = vsel %vm1274, %v1162, %v1359
        %1361 = vst [vmem:[%s1272 + $0x90] sm:$0xf] %v1360
        %1362 = vst [vmem:[%s1272 + $0x94] sm:$0xf] %v1171
        %v1363 = vld [vmem:[%s1272 + $0x98] sm:$0x1]
        %v1364 = vsel %vm759, %v1172, %v1363
        %1365 = vst [vmem:[%s1272 + $0x98] sm:$0x1] %v1364
        %v1366 = vld [vmem:[%s1272 + $0x9c] sm:$0xf]
        %v1367 = vsel %vm1274, %v1179, %v1366
        %1368 = vst [vmem:[%s1272 + $0x9c] sm:$0xf] %v1367
        %1369 = vst [vmem:[%s1272 + $0xa0] sm:$0xf] %v1188
        %v1370 = vld [vmem:[%s1272 + $0xa4] sm:$0x1]
        %v1371 = vsel %vm759, %v1189, %v1370
        %1372 = vst [vmem:[%s1272 + $0xa4] sm:$0x1] %v1371
        %v1373 = vld [vmem:[%s1272 + $0xa8] sm:$0xf]
        %v1374 = vsel %vm1274, %v1196, %v1373
        %1375 = vst [vmem:[%s1272 + $0xa8] sm:$0xf] %v1374
        %1376 = vst [vmem:[%s1272 + $0xac] sm:$0xf] %v1205
        %v1377 = vld [vmem:[%s1272 + $0xb0] sm:$0x1]
        %v1378 = vsel %vm759, %v1206, %v1377
        %1379 = vst [vmem:[%s1272 + $0xb0] sm:$0x1] %v1378
        %v1380 = vld [vmem:[%s1272 + $0xb4] sm:$0xf]
        %v1381 = vsel %vm1274, %v1213, %v1380
        %1382 = vst [vmem:[%s1272 + $0xb4] sm:$0xf] %v1381
        %1383 = vst [vmem:[%s1272 + $0xb8] sm:$0xf] %v1222
        %v1384 = vld [vmem:[%s1272 + $0xbc] sm:$0x1]
        %v1385 = vsel %vm759, %v1223, %v1384
        %1386 = vst [vmem:[%s1272 + $0xbc] sm:$0x1] %v1385
        %v1387 = vld [vmem:[#allocation2] sm:$0xf]
        %v1388 = vld [vmem:[#allocation2 + $0x4] sm:$0xf]
        %v1389 = vld [vmem:[#allocation2 + $0xc] sm:$0xf]
        %v1390 = vld [vmem:[#allocation2 + $0x10] sm:$0xf]
        %v1391 = vld [vmem:[#allocation2 + $0x18] sm:$0xf]
        %v1392 = vld [vmem:[#allocation2 + $0x1c] sm:$0xf]
        %v1393 = vld [vmem:[#allocation2 + $0x24] sm:$0xf]
        %v1394 = vld [vmem:[#allocation2 + $0x28] sm:$0xf]
        %v1395 = vld [vmem:[#allocation2 + $0x30] sm:$0xf]
        %v1396 = vld [vmem:[#allocation2 + $0x34] sm:$0xf]
        %v1397 = vld [vmem:[#allocation2 + $0x3c] sm:$0xf]
        %v1398 = vld [vmem:[#allocation2 + $0x40] sm:$0xf]
        %v1399 = vld [vmem:[#allocation2 + $0x48] sm:$0xf]
        %v1400 = vld [vmem:[#allocation2 + $0x4c] sm:$0xf]
        %v1401 = vld [vmem:[#allocation2 + $0x54] sm:$0xf]
        %v1402 = vld [vmem:[#allocation2 + $0x58] sm:$0xf]
        %v1403 = vld [vmem:[#allocation2 + $0x60] sm:$0xf]
        %v1404 = vld [vmem:[#allocation2 + $0x64] sm:$0xf]
        %v1405 = vld [vmem:[#allocation2 + $0x6c] sm:$0xf]
        %v1406 = vld [vmem:[#allocation2 + $0x70] sm:$0xf]
        %v1407 = vld [vmem:[#allocation2 + $0x78] sm:$0xf]
        %v1408 = vld [vmem:[#allocation2 + $0x7c] sm:$0xf]
        %v1409 = vld [vmem:[#allocation2 + $0x84] sm:$0xf]
        %v1410 = vld [vmem:[#allocation2 + $0x88] sm:$0xf]
        %v1411 = vld [vmem:[#allocation2 + $0x90] sm:$0xf]
        %v1412 = vld [vmem:[#allocation2 + $0x94] sm:$0xf]
        %v1413 = vld [vmem:[#allocation2 + $0x9c] sm:$0xf]
        %v1414 = vld [vmem:[#allocation2 + $0xa0] sm:$0xf]
        %v1415 = vld [vmem:[#allocation2 + $0xa8] sm:$0xf]
        %v1416 = vld [vmem:[#allocation2 + $0xac] sm:$0xf]
        %v1417 = vld [vmem:[#allocation2 + $0xb4] sm:$0xf]
        %v1418 = vld [vmem:[#allocation2 + $0xb8] sm:$0xf]
        %v1419 = vld [vmem:[#allocation2 + $0x8] sm:$0x1]
        %v1420 = vld [vmem:[#allocation2 + $0x14] sm:$0x1]
        %v1421 = vld [vmem:[#allocation2 + $0x20] sm:$0x1]
        %v1422 = vld [vmem:[#allocation2 + $0x2c] sm:$0x1]
        %v1423 = vld [vmem:[#allocation2 + $0x38] sm:$0x1]
        %v1424 = vld [vmem:[#allocation2 + $0x44] sm:$0x1]
        %v1425 = vld [vmem:[#allocation2 + $0x50] sm:$0x1]
        %v1426 = vld [vmem:[#allocation2 + $0x5c] sm:$0x1]
        %v1427 = vld [vmem:[#allocation2 + $0x68] sm:$0x1]
        %v1428 = vld [vmem:[#allocation2 + $0x74] sm:$0x1]
        %v1429 = vld [vmem:[#allocation2 + $0x80] sm:$0x1]
        %v1430 = vld [vmem:[#allocation2 + $0x8c] sm:$0x1]
        %v1431 = vld [vmem:[#allocation2 + $0x98] sm:$0x1]
        %v1432 = vld [vmem:[#allocation2 + $0xa4] sm:$0x1]
        %v1433 = vld [vmem:[#allocation2 + $0xb0] sm:$0x1]
        %v1434 = vld [vmem:[#allocation2 + $0xbc] sm:$0x1]
        %v1435 = vld [vmem:[#allocation2] sm:$0xe]
        %v1436 = vld [vmem:[#allocation2 + $0xc] sm:$0xe]
        %v1437 = vld [vmem:[#allocation2 + $0x18] sm:$0xe]
        %v1438 = vld [vmem:[#allocation2 + $0x24] sm:$0xe]
        %v1439 = vld [vmem:[#allocation2 + $0x30] sm:$0xe]
        %v1440 = vld [vmem:[#allocation2 + $0x3c] sm:$0xe]
        %v1441 = vld [vmem:[#allocation2 + $0x48] sm:$0xe]
        %v1442 = vld [vmem:[#allocation2 + $0x54] sm:$0xe]
        %v1443 = vld [vmem:[#allocation2 + $0x60] sm:$0xe]
        %v1444 = vld [vmem:[#allocation2 + $0x6c] sm:$0xe]
        %v1445 = vld [vmem:[#allocation2 + $0x78] sm:$0xe]
        %v1446 = vld [vmem:[#allocation2 + $0x84] sm:$0xe]
        %v1447 = vld [vmem:[#allocation2 + $0x90] sm:$0xe]
        %v1448 = vld [vmem:[#allocation2 + $0x9c] sm:$0xe]
        %v1449 = vld [vmem:[#allocation2 + $0xa8] sm:$0xe]
        %v1450 = vld [vmem:[#allocation2 + $0xb4] sm:$0xe]
        %v1451 = vld [vmem:[%s1272] sm:$0xf]
        %v1452 = vld [vmem:[%s1272 + $0x4] sm:$0xf]
        %v1453 = vld [vmem:[%s1272 + $0xc] sm:$0xf]
        %v1454 = vld [vmem:[%s1272 + $0x10] sm:$0xf]
        %v1455 = vld [vmem:[%s1272 + $0x18] sm:$0xf]
        %v1456 = vld [vmem:[%s1272 + $0x1c] sm:$0xf]
        %v1457 = vld [vmem:[%s1272 + $0x24] sm:$0xf]
        %v1458 = vld [vmem:[%s1272 + $0x28] sm:$0xf]
        %v1459 = vld [vmem:[%s1272 + $0x30] sm:$0xf]
        %v1460 = vld [vmem:[%s1272 + $0x34] sm:$0xf]
        %v1461 = vld [vmem:[%s1272 + $0x3c] sm:$0xf]
        %v1462 = vld [vmem:[%s1272 + $0x40] sm:$0xf]
        %v1463 = vld [vmem:[%s1272 + $0x48] sm:$0xf]
        %v1464 = vld [vmem:[%s1272 + $0x4c] sm:$0xf]
        %v1465 = vld [vmem:[%s1272 + $0x54] sm:$0xf]
        %v1466 = vld [vmem:[%s1272 + $0x58] sm:$0xf]
        %v1467 = vld [vmem:[%s1272 + $0x60] sm:$0xf]
        %v1468 = vld [vmem:[%s1272 + $0x64] sm:$0xf]
        %v1469 = vld [vmem:[%s1272 + $0x6c] sm:$0xf]
        %v1470 = vld [vmem:[%s1272 + $0x70] sm:$0xf]
        %v1471 = vld [vmem:[%s1272 + $0x78] sm:$0xf]
        %v1472 = vld [vmem:[%s1272 + $0x7c] sm:$0xf]
        %v1473 = vld [vmem:[%s1272 + $0x84] sm:$0xf]
        %v1474 = vld [vmem:[%s1272 + $0x88] sm:$0xf]
        %v1475 = vld [vmem:[%s1272 + $0x90] sm:$0xf]
        %v1476 = vld [vmem:[%s1272 + $0x94] sm:$0xf]
        %v1477 = vld [vmem:[%s1272 + $0x9c] sm:$0xf]
        %v1478 = vld [vmem:[%s1272 + $0xa0] sm:$0xf]
        %v1479 = vld [vmem:[%s1272 + $0xa8] sm:$0xf]
        %v1480 = vld [vmem:[%s1272 + $0xac] sm:$0xf]
        %v1481 = vld [vmem:[%s1272 + $0xb4] sm:$0xf]
        %v1482 = vld [vmem:[%s1272 + $0xb8] sm:$0xf]
        %v1483 = vld [vmem:[%s1272 + $0x8] sm:$0x1]
        %v1484 = vld [vmem:[%s1272 + $0x14] sm:$0x1]
        %v1485 = vld [vmem:[%s1272 + $0x20] sm:$0x1]
        %v1486 = vld [vmem:[%s1272 + $0x2c] sm:$0x1]
        %v1487 = vld [vmem:[%s1272 + $0x38] sm:$0x1]
        %v1488 = vld [vmem:[%s1272 + $0x44] sm:$0x1]
        %v1489 = vld [vmem:[%s1272 + $0x50] sm:$0x1]
        %v1490 = vld [vmem:[%s1272 + $0x5c] sm:$0x1]
        %v1491 = vld [vmem:[%s1272 + $0x68] sm:$0x1]
        %v1492 = vld [vmem:[%s1272 + $0x74] sm:$0x1]
        %v1493 = vld [vmem:[%s1272 + $0x80] sm:$0x1]
        %v1494 = vld [vmem:[%s1272 + $0x8c] sm:$0x1]
        %v1495 = vld [vmem:[%s1272 + $0x98] sm:$0x1]
        %v1496 = vld [vmem:[%s1272 + $0xa4] sm:$0x1]
        %v1497 = vld [vmem:[%s1272 + $0xb0] sm:$0x1]
        %v1498 = vld [vmem:[%s1272 + $0xbc] sm:$0x1]
        %v1499 = vld [vmem:[%s1272] sm:$0xe]
        %v1500 = vld [vmem:[%s1272 + $0xc] sm:$0xe]
        %v1501 = vld [vmem:[%s1272 + $0x18] sm:$0xe]
        %v1502 = vld [vmem:[%s1272 + $0x24] sm:$0xe]
        %v1503 = vld [vmem:[%s1272 + $0x30] sm:$0xe]
        %v1504 = vld [vmem:[%s1272 + $0x3c] sm:$0xe]
        %v1505 = vld [vmem:[%s1272 + $0x48] sm:$0xe]
        %v1506 = vld [vmem:[%s1272 + $0x54] sm:$0xe]
        %v1507 = vld [vmem:[%s1272 + $0x60] sm:$0xe]
        %v1508 = vld [vmem:[%s1272 + $0x6c] sm:$0xe]
        %v1509 = vld [vmem:[%s1272 + $0x78] sm:$0xe]
        %v1510 = vld [vmem:[%s1272 + $0x84] sm:$0xe]
        %v1511 = vld [vmem:[%s1272 + $0x90] sm:$0xe]
        %v1512 = vld [vmem:[%s1272 + $0x9c] sm:$0xe]
        %v1513 = vld [vmem:[%s1272 + $0xa8] sm:$0xe]
        %v1514 = vld [vmem:[%s1272 + $0xb4] sm:$0xe]
        %s1515 = scalar_lea.vmem [#allocation2], 24
        %v1516 = vld [vmem:[%s1515] sm:$0xf]
        %v1517 = vld [vmem:[%s1515 + $0x4] sm:$0xf]
        %v1518 = vld [vmem:[%s1515 + $0xc] sm:$0xf]
        %v1519 = vld [vmem:[%s1515 + $0x10] sm:$0xf]
        %v1520 = vld [vmem:[%s1515 + $0x18] sm:$0xf]
        %v1521 = vld [vmem:[%s1515 + $0x1c] sm:$0xf]
        %v1522 = vld [vmem:[%s1515 + $0x24] sm:$0xf]
        %v1523 = vld [vmem:[%s1515 + $0x28] sm:$0xf]
        %v1524 = vld [vmem:[%s1515 + $0x30] sm:$0xf]
        %v1525 = vld [vmem:[%s1515 + $0x34] sm:$0xf]
        %v1526 = vld [vmem:[%s1515 + $0x3c] sm:$0xf]
        %v1527 = vld [vmem:[%s1515 + $0x40] sm:$0xf]
        %v1528 = vld [vmem:[%s1515 + $0x48] sm:$0xf]
        %v1529 = vld [vmem:[%s1515 + $0x4c] sm:$0xf]
        %v1530 = vld [vmem:[%s1515 + $0x54] sm:$0xf]
        %v1531 = vld [vmem:[%s1515 + $0x58] sm:$0xf]
        %v1532 = vld [vmem:[%s1515 + $0x60] sm:$0xf]
        %v1533 = vld [vmem:[%s1515 + $0x64] sm:$0xf]
        %v1534 = vld [vmem:[%s1515 + $0x6c] sm:$0xf]
        %v1535 = vld [vmem:[%s1515 + $0x70] sm:$0xf]
        %v1536 = vld [vmem:[%s1515 + $0x78] sm:$0xf]
        %v1537 = vld [vmem:[%s1515 + $0x7c] sm:$0xf]
        %v1538 = vld [vmem:[%s1515 + $0x84] sm:$0xf]
        %v1539 = vld [vmem:[%s1515 + $0x88] sm:$0xf]
        %v1540 = vld [vmem:[%s1515 + $0x90] sm:$0xf]
        %v1541 = vld [vmem:[%s1515 + $0x94] sm:$0xf]
        %v1542 = vld [vmem:[%s1515 + $0x9c] sm:$0xf]
        %v1543 = vld [vmem:[%s1515 + $0xa0] sm:$0xf]
        %v1544 = vld [vmem:[%s1515 + $0xa8] sm:$0xf]
        %v1545 = vld [vmem:[%s1515 + $0xac] sm:$0xf]
        %v1546 = vld [vmem:[%s1515 + $0xb4] sm:$0xf]
        %v1547 = vld [vmem:[%s1515 + $0xb8] sm:$0xf]
        %v1548 = vld [vmem:[%s1515 + $0x8] sm:$0x1]
        %v1549 = vld [vmem:[%s1515 + $0x14] sm:$0x1]
        %v1550 = vld [vmem:[%s1515 + $0x20] sm:$0x1]
        %v1551 = vld [vmem:[%s1515 + $0x2c] sm:$0x1]
        %v1552 = vld [vmem:[%s1515 + $0x38] sm:$0x1]
        %v1553 = vld [vmem:[%s1515 + $0x44] sm:$0x1]
        %v1554 = vld [vmem:[%s1515 + $0x50] sm:$0x1]
        %v1555 = vld [vmem:[%s1515 + $0x5c] sm:$0x1]
        %v1556 = vld [vmem:[%s1515 + $0x68] sm:$0x1]
        %v1557 = vld [vmem:[%s1515 + $0x74] sm:$0x1]
        %v1558 = vld [vmem:[%s1515 + $0x80] sm:$0x1]
        %v1559 = vld [vmem:[%s1515 + $0x8c] sm:$0x1]
        %v1560 = vld [vmem:[%s1515 + $0x98] sm:$0x1]
        %v1561 = vld [vmem:[%s1515 + $0xa4] sm:$0x1]
        %v1562 = vld [vmem:[%s1515 + $0xb0] sm:$0x1]
        %v1563 = vld [vmem:[%s1515 + $0xbc] sm:$0x1]
        %v1564 = vld [vmem:[%s1515] sm:$0xe]
        %v1565 = vld [vmem:[%s1515 + $0xc] sm:$0xe]
        %v1566 = vld [vmem:[%s1515 + $0x18] sm:$0xe]
        %v1567 = vld [vmem:[%s1515 + $0x24] sm:$0xe]
        %v1568 = vld [vmem:[%s1515 + $0x30] sm:$0xe]
        %v1569 = vld [vmem:[%s1515 + $0x3c] sm:$0xe]
        %v1570 = vld [vmem:[%s1515 + $0x48] sm:$0xe]
        %v1571 = vld [vmem:[%s1515 + $0x54] sm:$0xe]
        %v1572 = vld [vmem:[%s1515 + $0x60] sm:$0xe]
        %v1573 = vld [vmem:[%s1515 + $0x6c] sm:$0xe]
        %v1574 = vld [vmem:[%s1515 + $0x78] sm:$0xe]
        %v1575 = vld [vmem:[%s1515 + $0x84] sm:$0xe]
        %v1576 = vld [vmem:[%s1515 + $0x90] sm:$0xe]
        %v1577 = vld [vmem:[%s1515 + $0x9c] sm:$0xe]
        %v1578 = vld [vmem:[%s1515 + $0xa8] sm:$0xe]
        %v1579 = vld [vmem:[%s1515 + $0xb4] sm:$0xe]
        %v1612 = vunpack.c.l.b16 %v1387
        %v1613 = vunpack.c.l.b16 %v1388
        %v1614 = vunpack.c.l.b16 %v1389
        %v1615 = vunpack.c.l.b16 %v1390
        %v1616 = vunpack.c.l.b16 %v1391
        %v1617 = vunpack.c.l.b16 %v1392
        %v1618 = vunpack.c.l.b16 %v1393
        %v1619 = vunpack.c.l.b16 %v1394
        %v1620 = vunpack.c.l.b16 %v1395
        %v1621 = vunpack.c.l.b16 %v1396
        %v1622 = vunpack.c.l.b16 %v1397
        %v1623 = vunpack.c.l.b16 %v1398
        %v1624 = vunpack.c.l.b16 %v1399
        %v1625 = vunpack.c.l.b16 %v1400
        %v1626 = vunpack.c.l.b16 %v1401
        %v1627 = vunpack.c.l.b16 %v1402
        %v1628 = vunpack.c.l.b16 %v1403
        %v1629 = vunpack.c.l.b16 %v1404
        %v1630 = vunpack.c.l.b16 %v1405
        %v1631 = vunpack.c.l.b16 %v1406
        %v1632 = vunpack.c.l.b16 %v1407
        %v1633 = vunpack.c.l.b16 %v1408
        %v1634 = vunpack.c.l.b16 %v1409
        %v1635 = vunpack.c.l.b16 %v1410
        %v1636 = vunpack.c.l.b16 %v1411
        %v1637 = vunpack.c.l.b16 %v1412
        %v1638 = vunpack.c.l.b16 %v1413
        %v1639 = vunpack.c.l.b16 %v1414
        %v1640 = vunpack.c.l.b16 %v1415
        %v1641 = vunpack.c.l.b16 %v1416
        %v1642 = vunpack.c.l.b16 %v1417
        %v1643 = vunpack.c.l.b16 %v1418
        %v1644 = vpack.c.b16 %v1613, %v1612
        %v1645 = vpack.c.b16 %v1615, %v1614
        %v1646 = vpack.c.b16 %v1617, %v1616
        %v1647 = vpack.c.b16 %v1619, %v1618
        %v1648 = vpack.c.b16 %v1621, %v1620
        %v1649 = vpack.c.b16 %v1623, %v1622
        %v1650 = vpack.c.b16 %v1625, %v1624
        %v1651 = vpack.c.b16 %v1627, %v1626
        %v1652 = vpack.c.b16 %v1629, %v1628
        %v1653 = vpack.c.b16 %v1631, %v1630
        %v1654 = vpack.c.b16 %v1633, %v1632
        %v1655 = vpack.c.b16 %v1635, %v1634
        %v1656 = vpack.c.b16 %v1637, %v1636
        %v1657 = vpack.c.b16 %v1639, %v1638
        %v1658 = vpack.c.b16 %v1641, %v1640
        %v1659 = vpack.c.b16 %v1643, %v1642
        %v1692 = vunpack.c.l.b16 %v1419
        %v1693 = vunpack.c.l.b16 %v1420
        %v1694 = vunpack.c.l.b16 %v1421
        %v1695 = vunpack.c.l.b16 %v1422
        %v1696 = vunpack.c.l.b16 %v1423
        %v1697 = vunpack.c.l.b16 %v1424
        %v1698 = vunpack.c.l.b16 %v1425
        %v1699 = vunpack.c.l.b16 %v1426
        %v1700 = vunpack.c.l.b16 %v1427
        %v1701 = vunpack.c.l.b16 %v1428
        %v1702 = vunpack.c.l.b16 %v1429
        %v1703 = vunpack.c.l.b16 %v1430
        %v1704 = vunpack.c.l.b16 %v1431
        %v1705 = vunpack.c.l.b16 %v1432
        %v1706 = vunpack.c.l.b16 %v1433
        %v1707 = vunpack.c.l.b16 %v1434
        %v1708 = vpack.c.b16 %v1692, %v1692
        %v1709 = vpack.c.b16 %v1693, %v1693
        %v1710 = vpack.c.b16 %v1694, %v1694
        %v1711 = vpack.c.b16 %v1695, %v1695
        %v1712 = vpack.c.b16 %v1696, %v1696
        %v1713 = vpack.c.b16 %v1697, %v1697
        %v1714 = vpack.c.b16 %v1698, %v1698
        %v1715 = vpack.c.b16 %v1699, %v1699
        %v1716 = vpack.c.b16 %v1700, %v1700
        %v1717 = vpack.c.b16 %v1701, %v1701
        %v1718 = vpack.c.b16 %v1702, %v1702
        %v1719 = vpack.c.b16 %v1703, %v1703
        %v1720 = vpack.c.b16 %v1704, %v1704
        %v1721 = vpack.c.b16 %v1705, %v1705
        %v1722 = vpack.c.b16 %v1706, %v1706
        %v1723 = vpack.c.b16 %v1707, %v1707
        %vm1724 = vsmask.f32 7424
        %v1726 = vshrl.u32 %v1644, 16
        %v1728 = vshll.u32 %v1644, 16
        %v1730 = vrot.slane %v1728, 1
        %v1731 = vor.u32 %v1726, %v1730
        %v1733 = vshll.u32 %v1708, 16
        %v1735 = vrot.slane %v1733, 1
        %v1736 = vsel %vm1724, %v1731, %v1735
        %v1738 = vshrl.u32 %v1645, 16
        %v1740 = vshll.u32 %v1645, 16
        %v1742 = vrot.slane %v1740, 1
        %v1743 = vor.u32 %v1738, %v1742
        %v1745 = vshll.u32 %v1709, 16
        %v1747 = vrot.slane %v1745, 1
        %v1748 = vsel %vm1724, %v1743, %v1747
        %v1750 = vshrl.u32 %v1646, 16
        %v1752 = vshll.u32 %v1646, 16
        %v1754 = vrot.slane %v1752, 1
        %v1755 = vor.u32 %v1750, %v1754
        %v1757 = vshll.u32 %v1710, 16
        %v1759 = vrot.slane %v1757, 1
        %v1760 = vsel %vm1724, %v1755, %v1759
        %v1762 = vshrl.u32 %v1647, 16
        %v1764 = vshll.u32 %v1647, 16
        %v1766 = vrot.slane %v1764, 1
        %v1767 = vor.u32 %v1762, %v1766
        %v1769 = vshll.u32 %v1711, 16
        %v1771 = vrot.slane %v1769, 1
        %v1772 = vsel %vm1724, %v1767, %v1771
        %v1774 = vshrl.u32 %v1648, 16
        %v1776 = vshll.u32 %v1648, 16
        %v1778 = vrot.slane %v1776, 1
        %v1779 = vor.u32 %v1774, %v1778
        %v1781 = vshll.u32 %v1712, 16
        %v1783 = vrot.slane %v1781, 1
        %v1784 = vsel %vm1724, %v1779, %v1783
        %v1786 = vshrl.u32 %v1649, 16
        %v1788 = vshll.u32 %v1649, 16
        %v1790 = vrot.slane %v1788, 1
        %v1791 = vor.u32 %v1786, %v1790
        %v1793 = vshll.u32 %v1713, 16
        %v1795 = vrot.slane %v1793, 1
        %v1796 = vsel %vm1724, %v1791, %v1795
        %v1798 = vshrl.u32 %v1650, 16
        %v1800 = vshll.u32 %v1650, 16
        %v1802 = vrot.slane %v1800, 1
        %v1803 = vor.u32 %v1798, %v1802
        %v1805 = vshll.u32 %v1714, 16
        %v1807 = vrot.slane %v1805, 1
        %v1808 = vsel %vm1724, %v1803, %v1807
        %v1810 = vshrl.u32 %v1651, 16
        %v1812 = vshll.u32 %v1651, 16
        %v1814 = vrot.slane %v1812, 1
        %v1815 = vor.u32 %v1810, %v1814
        %v1817 = vshll.u32 %v1715, 16
        %v1819 = vrot.slane %v1817, 1
        %v1820 = vsel %vm1724, %v1815, %v1819
        %v1822 = vshrl.u32 %v1652, 16
        %v1824 = vshll.u32 %v1652, 16
        %v1826 = vrot.slane %v1824, 1
        %v1827 = vor.u32 %v1822, %v1826
        %v1829 = vshll.u32 %v1716, 16
        %v1831 = vrot.slane %v1829, 1
        %v1832 = vsel %vm1724, %v1827, %v1831
        %v1834 = vshrl.u32 %v1653, 16
        %v1836 = vshll.u32 %v1653, 16
        %v1838 = vrot.slane %v1836, 1
        %v1839 = vor.u32 %v1834, %v1838
        %v1841 = vshll.u32 %v1717, 16
        %v1843 = vrot.slane %v1841, 1
        %v1844 = vsel %vm1724, %v1839, %v1843
        %v1846 = vshrl.u32 %v1654, 16
        %v1848 = vshll.u32 %v1654, 16
        %v1850 = vrot.slane %v1848, 1
        %v1851 = vor.u32 %v1846, %v1850
        %v1853 = vshll.u32 %v1718, 16
        %v1855 = vrot.slane %v1853, 1
        %v1856 = vsel %vm1724, %v1851, %v1855
        %v1858 = vshrl.u32 %v1655, 16
        %v1860 = vshll.u32 %v1655, 16
        %v1862 = vrot.slane %v1860, 1
        %v1863 = vor.u32 %v1858, %v1862
        %v1865 = vshll.u32 %v1719, 16
        %v1867 = vrot.slane %v1865, 1
        %v1868 = vsel %vm1724, %v1863, %v1867
        %v1870 = vshrl.u32 %v1656, 16
        %v1872 = vshll.u32 %v1656, 16
        %v1874 = vrot.slane %v1872, 1
        %v1875 = vor.u32 %v1870, %v1874
        %v1877 = vshll.u32 %v1720, 16
        %v1879 = vrot.slane %v1877, 1
        %v1880 = vsel %vm1724, %v1875, %v1879
        %v1882 = vshrl.u32 %v1657, 16
        %v1884 = vshll.u32 %v1657, 16
        %v1886 = vrot.slane %v1884, 1
        %v1887 = vor.u32 %v1882, %v1886
        %v1889 = vshll.u32 %v1721, 16
        %v1891 = vrot.slane %v1889, 1
        %v1892 = vsel %vm1724, %v1887, %v1891
        %v1894 = vshrl.u32 %v1658, 16
        %v1896 = vshll.u32 %v1658, 16
        %v1898 = vrot.slane %v1896, 1
        %v1899 = vor.u32 %v1894, %v1898
        %v1901 = vshll.u32 %v1722, 16
        %v1903 = vrot.slane %v1901, 1
        %v1904 = vsel %vm1724, %v1899, %v1903
        %v1906 = vshrl.u32 %v1659, 16
        %v1908 = vshll.u32 %v1659, 16
        %v1910 = vrot.slane %v1908, 1
        %v1911 = vor.u32 %v1906, %v1910
        %v1913 = vshll.u32 %v1723, 16
        %v1915 = vrot.slane %v1913, 1
        %v1916 = vsel %vm1724, %v1911, %v1915
        %v1949 = vunpack.c.l.b16 %v1435
        %v1950 = vunpack.c.l.b16 %v1436
        %v1951 = vunpack.c.l.b16 %v1437
        %v1952 = vunpack.c.l.b16 %v1438
        %v1953 = vunpack.c.l.b16 %v1439
        %v1954 = vunpack.c.l.b16 %v1440
        %v1955 = vunpack.c.l.b16 %v1441
        %v1956 = vunpack.c.l.b16 %v1442
        %v1957 = vunpack.c.l.b16 %v1443
        %v1958 = vunpack.c.l.b16 %v1444
        %v1959 = vunpack.c.l.b16 %v1445
        %v1960 = vunpack.c.l.b16 %v1446
        %v1961 = vunpack.c.l.b16 %v1447
        %v1962 = vunpack.c.l.b16 %v1448
        %v1963 = vunpack.c.l.b16 %v1449
        %v1964 = vunpack.c.l.b16 %v1450
        %v1965 = vpack.c.b16 %v1613, %v1949
        %v1966 = vpack.c.b16 %v1615, %v1950
        %v1967 = vpack.c.b16 %v1617, %v1951
        %v1968 = vpack.c.b16 %v1619, %v1952
        %v1969 = vpack.c.b16 %v1621, %v1953
        %v1970 = vpack.c.b16 %v1623, %v1954
        %v1971 = vpack.c.b16 %v1625, %v1955
        %v1972 = vpack.c.b16 %v1627, %v1956
        %v1973 = vpack.c.b16 %v1629, %v1957
        %v1974 = vpack.c.b16 %v1631, %v1958
        %v1975 = vpack.c.b16 %v1633, %v1959
        %v1976 = vpack.c.b16 %v1635, %v1960
        %v1977 = vpack.c.b16 %v1637, %v1961
        %v1978 = vpack.c.b16 %v1639, %v1962
        %v1979 = vpack.c.b16 %v1641, %v1963
        %v1980 = vpack.c.b16 %v1643, %v1964
        %vm1981 = vcmask 1046528
        %v1982 = vrot.slane %v1965, 1
        %v1983 = vrot.slane %v1708, 1
        %v1984 = vsel %vm1981, %v1982, %v1983
        %v1985 = vrot.slane %v1966, 1
        %v1986 = vrot.slane %v1709, 1
        %v1987 = vsel %vm1981, %v1985, %v1986
        %v1988 = vrot.slane %v1967, 1
        %v1989 = vrot.slane %v1710, 1
        %v1990 = vsel %vm1981, %v1988, %v1989
        %v1991 = vrot.slane %v1968, 1
        %v1992 = vrot.slane %v1711, 1
        %v1993 = vsel %vm1981, %v1991, %v1992
        %v1994 = vrot.slane %v1969, 1
        %v1995 = vrot.slane %v1712, 1
        %v1996 = vsel %vm1981, %v1994, %v1995
        %v1997 = vrot.slane %v1970, 1
        %v1998 = vrot.slane %v1713, 1
        %v1999 = vsel %vm1981, %v1997, %v1998
        %v2000 = vrot.slane %v1971, 1
        %v2001 = vrot.slane %v1714, 1
        %v2002 = vsel %vm1981, %v2000, %v2001
        %v2003 = vrot.slane %v1972, 1
        %v2004 = vrot.slane %v1715, 1
        %v2005 = vsel %vm1981, %v2003, %v2004
        %v2006 = vrot.slane %v1973, 1
        %v2007 = vrot.slane %v1716, 1
        %v2008 = vsel %vm1981, %v2006, %v2007
        %v2009 = vrot.slane %v1974, 1
        %v2010 = vrot.slane %v1717, 1
        %v2011 = vsel %vm1981, %v2009, %v2010
        %v2012 = vrot.slane %v1975, 1
        %v2013 = vrot.slane %v1718, 1
        %v2014 = vsel %vm1981, %v2012, %v2013
        %v2015 = vrot.slane %v1976, 1
        %v2016 = vrot.slane %v1719, 1
        %v2017 = vsel %vm1981, %v2015, %v2016
        %v2018 = vrot.slane %v1977, 1
        %v2019 = vrot.slane %v1720, 1
        %v2020 = vsel %vm1981, %v2018, %v2019
        %v2021 = vrot.slane %v1978, 1
        %v2022 = vrot.slane %v1721, 1
        %v2023 = vsel %vm1981, %v2021, %v2022
        %v2024 = vrot.slane %v1979, 1
        %v2025 = vrot.slane %v1722, 1
        %v2026 = vsel %vm1981, %v2024, %v2025
        %v2027 = vrot.slane %v1980, 1
        %v2028 = vrot.slane %v1723, 1
        %v2029 = vsel %vm1981, %v2027, %v2028
        %v2078 = vunpack.c.l.b16 %v1451
        %v2079 = vunpack.c.l.b16 %v1452
        %v2080 = vunpack.c.l.b16 %v1453
        %v2081 = vunpack.c.l.b16 %v1454
        %v2082 = vunpack.c.l.b16 %v1455
        %v2083 = vunpack.c.l.b16 %v1456
        %v2084 = vunpack.c.l.b16 %v1457
        %v2085 = vunpack.c.l.b16 %v1458
        %v2086 = vunpack.c.l.b16 %v1459
        %v2087 = vunpack.c.l.b16 %v1460
        %v2088 = vunpack.c.l.b16 %v1461
        %v2089 = vunpack.c.l.b16 %v1462
        %v2090 = vunpack.c.l.b16 %v1463
        %v2091 = vunpack.c.l.b16 %v1464
        %v2092 = vunpack.c.l.b16 %v1465
        %v2093 = vunpack.c.l.b16 %v1466
        %v2094 = vunpack.c.l.b16 %v1467
        %v2095 = vunpack.c.l.b16 %v1468
        %v2096 = vunpack.c.l.b16 %v1469
        %v2097 = vunpack.c.l.b16 %v1470
        %v2098 = vunpack.c.l.b16 %v1471
        %v2099 = vunpack.c.l.b16 %v1472
        %v2100 = vunpack.c.l.b16 %v1473
        %v2101 = vunpack.c.l.b16 %v1474
        %v2102 = vunpack.c.l.b16 %v1475
        %v2103 = vunpack.c.l.b16 %v1476
        %v2104 = vunpack.c.l.b16 %v1477
        %v2105 = vunpack.c.l.b16 %v1478
        %v2106 = vunpack.c.l.b16 %v1479
        %v2107 = vunpack.c.l.b16 %v1480
        %v2108 = vunpack.c.l.b16 %v1481
        %v2109 = vunpack.c.l.b16 %v1482
        %v2110 = vpack.c.b16 %v2079, %v2078
        %v2111 = vpack.c.b16 %v2081, %v2080
        %v2112 = vpack.c.b16 %v2083, %v2082
        %v2113 = vpack.c.b16 %v2085, %v2084
        %v2114 = vpack.c.b16 %v2087, %v2086
        %v2115 = vpack.c.b16 %v2089, %v2088
        %v2116 = vpack.c.b16 %v2091, %v2090
        %v2117 = vpack.c.b16 %v2093, %v2092
        %v2118 = vpack.c.b16 %v2095, %v2094
        %v2119 = vpack.c.b16 %v2097, %v2096
        %v2120 = vpack.c.b16 %v2099, %v2098
        %v2121 = vpack.c.b16 %v2101, %v2100
        %v2122 = vpack.c.b16 %v2103, %v2102
        %v2123 = vpack.c.b16 %v2105, %v2104
        %v2124 = vpack.c.b16 %v2107, %v2106
        %v2125 = vpack.c.b16 %v2109, %v2108
        %v2158 = vunpack.c.l.b16 %v1483
        %v2159 = vunpack.c.l.b16 %v1484
        %v2160 = vunpack.c.l.b16 %v1485
        %v2161 = vunpack.c.l.b16 %v1486
        %v2162 = vunpack.c.l.b16 %v1487
        %v2163 = vunpack.c.l.b16 %v1488
        %v2164 = vunpack.c.l.b16 %v1489
        %v2165 = vunpack.c.l.b16 %v1490
        %v2166 = vunpack.c.l.b16 %v1491
        %v2167 = vunpack.c.l.b16 %v1492
        %v2168 = vunpack.c.l.b16 %v1493
        %v2169 = vunpack.c.l.b16 %v1494
        %v2170 = vunpack.c.l.b16 %v1495
        %v2171 = vunpack.c.l.b16 %v1496
        %v2172 = vunpack.c.l.b16 %v1497
        %v2173 = vunpack.c.l.b16 %v1498
        %v2174 = vpack.c.b16 %v2158, %v2158
        %v2175 = vpack.c.b16 %v2159, %v2159
        %v2176 = vpack.c.b16 %v2160, %v2160
        %v2177 = vpack.c.b16 %v2161, %v2161
        %v2178 = vpack.c.b16 %v2162, %v2162
        %v2179 = vpack.c.b16 %v2163, %v2163
        %v2180 = vpack.c.b16 %v2164, %v2164
        %v2181 = vpack.c.b16 %v2165, %v2165
        %v2182 = vpack.c.b16 %v2166, %v2166
        %v2183 = vpack.c.b16 %v2167, %v2167
        %v2184 = vpack.c.b16 %v2168, %v2168
        %v2185 = vpack.c.b16 %v2169, %v2169
        %v2186 = vpack.c.b16 %v2170, %v2170
        %v2187 = vpack.c.b16 %v2171, %v2171
        %v2188 = vpack.c.b16 %v2172, %v2172
        %v2189 = vpack.c.b16 %v2173, %v2173
        %v2191 = vshrl.u32 %v2110, 16
        %v2193 = vshll.u32 %v2110, 16
        %v2195 = vrot.slane %v2193, 1
        %v2196 = vor.u32 %v2191, %v2195
        %v2198 = vshll.u32 %v2174, 16
        %v2200 = vrot.slane %v2198, 1
        %v2201 = vsel %vm1724, %v2196, %v2200
        %v2203 = vshrl.u32 %v2111, 16
        %v2205 = vshll.u32 %v2111, 16
        %v2207 = vrot.slane %v2205, 1
        %v2208 = vor.u32 %v2203, %v2207
        %v2210 = vshll.u32 %v2175, 16
        %v2212 = vrot.slane %v2210, 1
        %v2213 = vsel %vm1724, %v2208, %v2212
        %v2215 = vshrl.u32 %v2112, 16
        %v2217 = vshll.u32 %v2112, 16
        %v2219 = vrot.slane %v2217, 1
        %v2220 = vor.u32 %v2215, %v2219
        %v2222 = vshll.u32 %v2176, 16
        %v2224 = vrot.slane %v2222, 1
        %v2225 = vsel %vm1724, %v2220, %v2224
        %v2227 = vshrl.u32 %v2113, 16
        %v2229 = vshll.u32 %v2113, 16
        %v2231 = vrot.slane %v2229, 1
        %v2232 = vor.u32 %v2227, %v2231
        %v2234 = vshll.u32 %v2177, 16
        %v2236 = vrot.slane %v2234, 1
        %v2237 = vsel %vm1724, %v2232, %v2236
        %v2239 = vshrl.u32 %v2114, 16
        %v2241 = vshll.u32 %v2114, 16
        %v2243 = vrot.slane %v2241, 1
        %v2244 = vor.u32 %v2239, %v2243
        %v2246 = vshll.u32 %v2178, 16
        %v2248 = vrot.slane %v2246, 1
        %v2249 = vsel %vm1724, %v2244, %v2248
        %v2251 = vshrl.u32 %v2115, 16
        %v2253 = vshll.u32 %v2115, 16
        %v2255 = vrot.slane %v2253, 1
        %v2256 = vor.u32 %v2251, %v2255
        %v2258 = vshll.u32 %v2179, 16
        %v2260 = vrot.slane %v2258, 1
        %v2261 = vsel %vm1724, %v2256, %v2260
        %v2263 = vshrl.u32 %v2116, 16
        %v2265 = vshll.u32 %v2116, 16
        %v2267 = vrot.slane %v2265, 1
        %v2268 = vor.u32 %v2263, %v2267
        %v2270 = vshll.u32 %v2180, 16
        %v2272 = vrot.slane %v2270, 1
        %v2273 = vsel %vm1724, %v2268, %v2272
        %v2275 = vshrl.u32 %v2117, 16
        %v2277 = vshll.u32 %v2117, 16
        %v2279 = vrot.slane %v2277, 1
        %v2280 = vor.u32 %v2275, %v2279
        %v2282 = vshll.u32 %v2181, 16
        %v2284 = vrot.slane %v2282, 1
        %v2285 = vsel %vm1724, %v2280, %v2284
        %v2287 = vshrl.u32 %v2118, 16
        %v2289 = vshll.u32 %v2118, 16
        %v2291 = vrot.slane %v2289, 1
        %v2292 = vor.u32 %v2287, %v2291
        %v2294 = vshll.u32 %v2182, 16
        %v2296 = vrot.slane %v2294, 1
        %v2297 = vsel %vm1724, %v2292, %v2296
        %v2299 = vshrl.u32 %v2119, 16
        %v2301 = vshll.u32 %v2119, 16
        %v2303 = vrot.slane %v2301, 1
        %v2304 = vor.u32 %v2299, %v2303
        %v2306 = vshll.u32 %v2183, 16
        %v2308 = vrot.slane %v2306, 1
        %v2309 = vsel %vm1724, %v2304, %v2308
        %v2311 = vshrl.u32 %v2120, 16
        %v2313 = vshll.u32 %v2120, 16
        %v2315 = vrot.slane %v2313, 1
        %v2316 = vor.u32 %v2311, %v2315
        %v2318 = vshll.u32 %v2184, 16
        %v2320 = vrot.slane %v2318, 1
        %v2321 = vsel %vm1724, %v2316, %v2320
        %v2323 = vshrl.u32 %v2121, 16
        %v2325 = vshll.u32 %v2121, 16
        %v2327 = vrot.slane %v2325, 1
        %v2328 = vor.u32 %v2323, %v2327
        %v2330 = vshll.u32 %v2185, 16
        %v2332 = vrot.slane %v2330, 1
        %v2333 = vsel %vm1724, %v2328, %v2332
        %v2335 = vshrl.u32 %v2122, 16
        %v2337 = vshll.u32 %v2122, 16
        %v2339 = vrot.slane %v2337, 1
        %v2340 = vor.u32 %v2335, %v2339
        %v2342 = vshll.u32 %v2186, 16
        %v2344 = vrot.slane %v2342, 1
        %v2345 = vsel %vm1724, %v2340, %v2344
        %v2347 = vshrl.u32 %v2123, 16
        %v2349 = vshll.u32 %v2123, 16
        %v2351 = vrot.slane %v2349, 1
        %v2352 = vor.u32 %v2347, %v2351
        %v2354 = vshll.u32 %v2187, 16
        %v2356 = vrot.slane %v2354, 1
        %v2357 = vsel %vm1724, %v2352, %v2356
        %v2359 = vshrl.u32 %v2124, 16
        %v2361 = vshll.u32 %v2124, 16
        %v2363 = vrot.slane %v2361, 1
        %v2364 = vor.u32 %v2359, %v2363
        %v2366 = vshll.u32 %v2188, 16
        %v2368 = vrot.slane %v2366, 1
        %v2369 = vsel %vm1724, %v2364, %v2368
        %v2371 = vshrl.u32 %v2125, 16
        %v2373 = vshll.u32 %v2125, 16
        %v2375 = vrot.slane %v2373, 1
        %v2376 = vor.u32 %v2371, %v2375
        %v2378 = vshll.u32 %v2189, 16
        %v2380 = vrot.slane %v2378, 1
        %v2381 = vsel %vm1724, %v2376, %v2380
        %v2414 = vunpack.c.l.b16 %v1499
        %v2415 = vunpack.c.l.b16 %v1500
        %v2416 = vunpack.c.l.b16 %v1501
        %v2417 = vunpack.c.l.b16 %v1502
        %v2418 = vunpack.c.l.b16 %v1503
        %v2419 = vunpack.c.l.b16 %v1504
        %v2420 = vunpack.c.l.b16 %v1505
        %v2421 = vunpack.c.l.b16 %v1506
        %v2422 = vunpack.c.l.b16 %v1507
        %v2423 = vunpack.c.l.b16 %v1508
        %v2424 = vunpack.c.l.b16 %v1509
        %v2425 = vunpack.c.l.b16 %v1510
        %v2426 = vunpack.c.l.b16 %v1511
        %v2427 = vunpack.c.l.b16 %v1512
        %v2428 = vunpack.c.l.b16 %v1513
        %v2429 = vunpack.c.l.b16 %v1514
        %v2430 = vpack.c.b16 %v2079, %v2414
        %v2431 = vpack.c.b16 %v2081, %v2415
        %v2432 = vpack.c.b16 %v2083, %v2416
        %v2433 = vpack.c.b16 %v2085, %v2417
        %v2434 = vpack.c.b16 %v2087, %v2418
        %v2435 = vpack.c.b16 %v2089, %v2419
        %v2436 = vpack.c.b16 %v2091, %v2420
        %v2437 = vpack.c.b16 %v2093, %v2421
        %v2438 = vpack.c.b16 %v2095, %v2422
        %v2439 = vpack.c.b16 %v2097, %v2423
        %v2440 = vpack.c.b16 %v2099, %v2424
        %v2441 = vpack.c.b16 %v2101, %v2425
        %v2442 = vpack.c.b16 %v2103, %v2426
        %v2443 = vpack.c.b16 %v2105, %v2427
        %v2444 = vpack.c.b16 %v2107, %v2428
        %v2445 = vpack.c.b16 %v2109, %v2429
        %v2446 = vrot.slane %v2430, 1
        %v2447 = vrot.slane %v2174, 1
        %v2448 = vsel %vm1981, %v2446, %v2447
        %v2449 = vrot.slane %v2431, 1
        %v2450 = vrot.slane %v2175, 1
        %v2451 = vsel %vm1981, %v2449, %v2450
        %v2452 = vrot.slane %v2432, 1
        %v2453 = vrot.slane %v2176, 1
        %v2454 = vsel %vm1981, %v2452, %v2453
        %v2455 = vrot.slane %v2433, 1
        %v2456 = vrot.slane %v2177, 1
        %v2457 = vsel %vm1981, %v2455, %v2456
        %v2458 = vrot.slane %v2434, 1
        %v2459 = vrot.slane %v2178, 1
        %v2460 = vsel %vm1981, %v2458, %v2459
        %v2461 = vrot.slane %v2435, 1
        %v2462 = vrot.slane %v2179, 1
        %v2463 = vsel %vm1981, %v2461, %v2462
        %v2464 = vrot.slane %v2436, 1
        %v2465 = vrot.slane %v2180, 1
        %v2466 = vsel %vm1981, %v2464, %v2465
        %v2467 = vrot.slane %v2437, 1
        %v2468 = vrot.slane %v2181, 1
        %v2469 = vsel %vm1981, %v2467, %v2468
        %v2470 = vrot.slane %v2438, 1
        %v2471 = vrot.slane %v2182, 1
        %v2472 = vsel %vm1981, %v2470, %v2471
        %v2473 = vrot.slane %v2439, 1
        %v2474 = vrot.slane %v2183, 1
        %v2475 = vsel %vm1981, %v2473, %v2474
        %v2476 = vrot.slane %v2440, 1
        %v2477 = vrot.slane %v2184, 1
        %v2478 = vsel %vm1981, %v2476, %v2477
        %v2479 = vrot.slane %v2441, 1
        %v2480 = vrot.slane %v2185, 1
        %v2481 = vsel %vm1981, %v2479, %v2480
        %v2482 = vrot.slane %v2442, 1
        %v2483 = vrot.slane %v2186, 1
        %v2484 = vsel %vm1981, %v2482, %v2483
        %v2485 = vrot.slane %v2443, 1
        %v2486 = vrot.slane %v2187, 1
        %v2487 = vsel %vm1981, %v2485, %v2486
        %v2488 = vrot.slane %v2444, 1
        %v2489 = vrot.slane %v2188, 1
        %v2490 = vsel %vm1981, %v2488, %v2489
        %v2491 = vrot.slane %v2445, 1
        %v2492 = vrot.slane %v2189, 1
        %v2493 = vsel %vm1981, %v2491, %v2492
        %v2542 = vunpack.c.l.b16 %v1516
        %v2543 = vunpack.c.l.b16 %v1517
        %v2544 = vunpack.c.l.b16 %v1518
        %v2545 = vunpack.c.l.b16 %v1519
        %v2546 = vunpack.c.l.b16 %v1520
        %v2547 = vunpack.c.l.b16 %v1521
        %v2548 = vunpack.c.l.b16 %v1522
        %v2549 = vunpack.c.l.b16 %v1523
        %v2550 = vunpack.c.l.b16 %v1524
        %v2551 = vunpack.c.l.b16 %v1525
        %v2552 = vunpack.c.l.b16 %v1526
        %v2553 = vunpack.c.l.b16 %v1527
        %v2554 = vunpack.c.l.b16 %v1528
        %v2555 = vunpack.c.l.b16 %v1529
        %v2556 = vunpack.c.l.b16 %v1530
        %v2557 = vunpack.c.l.b16 %v1531
        %v2558 = vunpack.c.l.b16 %v1532
        %v2559 = vunpack.c.l.b16 %v1533
        %v2560 = vunpack.c.l.b16 %v1534
        %v2561 = vunpack.c.l.b16 %v1535
        %v2562 = vunpack.c.l.b16 %v1536
        %v2563 = vunpack.c.l.b16 %v1537
        %v2564 = vunpack.c.l.b16 %v1538
        %v2565 = vunpack.c.l.b16 %v1539
        %v2566 = vunpack.c.l.b16 %v1540
        %v2567 = vunpack.c.l.b16 %v1541
        %v2568 = vunpack.c.l.b16 %v1542
        %v2569 = vunpack.c.l.b16 %v1543
        %v2570 = vunpack.c.l.b16 %v1544
        %v2571 = vunpack.c.l.b16 %v1545
        %v2572 = vunpack.c.l.b16 %v1546
        %v2573 = vunpack.c.l.b16 %v1547
        %v2574 = vpack.c.b16 %v2543, %v2542
        %v2575 = vpack.c.b16 %v2545, %v2544
        %v2576 = vpack.c.b16 %v2547, %v2546
        %v2577 = vpack.c.b16 %v2549, %v2548
        %v2578 = vpack.c.b16 %v2551, %v2550
        %v2579 = vpack.c.b16 %v2553, %v2552
        %v2580 = vpack.c.b16 %v2555, %v2554
        %v2581 = vpack.c.b16 %v2557, %v2556
        %v2582 = vpack.c.b16 %v2559, %v2558
        %v2583 = vpack.c.b16 %v2561, %v2560
        %v2584 = vpack.c.b16 %v2563, %v2562
        %v2585 = vpack.c.b16 %v2565, %v2564
        %v2586 = vpack.c.b16 %v2567, %v2566
        %v2587 = vpack.c.b16 %v2569, %v2568
        %v2588 = vpack.c.b16 %v2571, %v2570
        %v2589 = vpack.c.b16 %v2573, %v2572
        %v2622 = vunpack.c.l.b16 %v1548
        %v2623 = vunpack.c.l.b16 %v1549
        %v2624 = vunpack.c.l.b16 %v1550
        %v2625 = vunpack.c.l.b16 %v1551
        %v2626 = vunpack.c.l.b16 %v1552
        %v2627 = vunpack.c.l.b16 %v1553
        %v2628 = vunpack.c.l.b16 %v1554
        %v2629 = vunpack.c.l.b16 %v1555
        %v2630 = vunpack.c.l.b16 %v1556
        %v2631 = vunpack.c.l.b16 %v1557
        %v2632 = vunpack.c.l.b16 %v1558
        %v2633 = vunpack.c.l.b16 %v1559
        %v2634 = vunpack.c.l.b16 %v1560
        %v2635 = vunpack.c.l.b16 %v1561
        %v2636 = vunpack.c.l.b16 %v1562
        %v2637 = vunpack.c.l.b16 %v1563
        %v2638 = vpack.c.b16 %v2622, %v2622
        %v2639 = vpack.c.b16 %v2623, %v2623
        %v2640 = vpack.c.b16 %v2624, %v2624
        %v2641 = vpack.c.b16 %v2625, %v2625
        %v2642 = vpack.c.b16 %v2626, %v2626
        %v2643 = vpack.c.b16 %v2627, %v2627
        %v2644 = vpack.c.b16 %v2628, %v2628
        %v2645 = vpack.c.b16 %v2629, %v2629
        %v2646 = vpack.c.b16 %v2630, %v2630
        %v2647 = vpack.c.b16 %v2631, %v2631
        %v2648 = vpack.c.b16 %v2632, %v2632
        %v2649 = vpack.c.b16 %v2633, %v2633
        %v2650 = vpack.c.b16 %v2634, %v2634
        %v2651 = vpack.c.b16 %v2635, %v2635
        %v2652 = vpack.c.b16 %v2636, %v2636
        %v2653 = vpack.c.b16 %v2637, %v2637
        %v2655 = vshrl.u32 %v2574, 16
        %v2657 = vshll.u32 %v2574, 16
        %v2659 = vrot.slane %v2657, 1
        %v2660 = vor.u32 %v2655, %v2659
        %v2662 = vshll.u32 %v2638, 16
        %v2664 = vrot.slane %v2662, 1
        %v2665 = vsel %vm1724, %v2660, %v2664
        %v2667 = vshrl.u32 %v2575, 16
        %v2669 = vshll.u32 %v2575, 16
        %v2671 = vrot.slane %v2669, 1
        %v2672 = vor.u32 %v2667, %v2671
        %v2674 = vshll.u32 %v2639, 16
        %v2676 = vrot.slane %v2674, 1
        %v2677 = vsel %vm1724, %v2672, %v2676
        %v2679 = vshrl.u32 %v2576, 16
        %v2681 = vshll.u32 %v2576, 16
        %v2683 = vrot.slane %v2681, 1
        %v2684 = vor.u32 %v2679, %v2683
        %v2686 = vshll.u32 %v2640, 16
        %v2688 = vrot.slane %v2686, 1
        %v2689 = vsel %vm1724, %v2684, %v2688
        %v2691 = vshrl.u32 %v2577, 16
        %v2693 = vshll.u32 %v2577, 16
        %v2695 = vrot.slane %v2693, 1
        %v2696 = vor.u32 %v2691, %v2695
        %v2698 = vshll.u32 %v2641, 16
        %v2700 = vrot.slane %v2698, 1
        %v2701 = vsel %vm1724, %v2696, %v2700
        %v2703 = vshrl.u32 %v2578, 16
        %v2705 = vshll.u32 %v2578, 16
        %v2707 = vrot.slane %v2705, 1
        %v2708 = vor.u32 %v2703, %v2707
        %v2710 = vshll.u32 %v2642, 16
        %v2712 = vrot.slane %v2710, 1
        %v2713 = vsel %vm1724, %v2708, %v2712
        %v2715 = vshrl.u32 %v2579, 16
        %v2717 = vshll.u32 %v2579, 16
        %v2719 = vrot.slane %v2717, 1
        %v2720 = vor.u32 %v2715, %v2719
        %v2722 = vshll.u32 %v2643, 16
        %v2724 = vrot.slane %v2722, 1
        %v2725 = vsel %vm1724, %v2720, %v2724
        %v2727 = vshrl.u32 %v2580, 16
        %v2729 = vshll.u32 %v2580, 16
        %v2731 = vrot.slane %v2729, 1
        %v2732 = vor.u32 %v2727, %v2731
        %v2734 = vshll.u32 %v2644, 16
        %v2736 = vrot.slane %v2734, 1
        %v2737 = vsel %vm1724, %v2732, %v2736
        %v2739 = vshrl.u32 %v2581, 16
        %v2741 = vshll.u32 %v2581, 16
        %v2743 = vrot.slane %v2741, 1
        %v2744 = vor.u32 %v2739, %v2743
        %v2746 = vshll.u32 %v2645, 16
        %v2748 = vrot.slane %v2746, 1
        %v2749 = vsel %vm1724, %v2744, %v2748
        %v2751 = vshrl.u32 %v2582, 16
        %v2753 = vshll.u32 %v2582, 16
        %v2755 = vrot.slane %v2753, 1
        %v2756 = vor.u32 %v2751, %v2755
        %v2758 = vshll.u32 %v2646, 16
        %v2760 = vrot.slane %v2758, 1
        %v2761 = vsel %vm1724, %v2756, %v2760
        %v2763 = vshrl.u32 %v2583, 16
        %v2765 = vshll.u32 %v2583, 16
        %v2767 = vrot.slane %v2765, 1
        %v2768 = vor.u32 %v2763, %v2767
        %v2770 = vshll.u32 %v2647, 16
        %v2772 = vrot.slane %v2770, 1
        %v2773 = vsel %vm1724, %v2768, %v2772
        %v2775 = vshrl.u32 %v2584, 16
        %v2777 = vshll.u32 %v2584, 16
        %v2779 = vrot.slane %v2777, 1
        %v2780 = vor.u32 %v2775, %v2779
        %v2782 = vshll.u32 %v2648, 16
        %v2784 = vrot.slane %v2782, 1
        %v2785 = vsel %vm1724, %v2780, %v2784
        %v2787 = vshrl.u32 %v2585, 16
        %v2789 = vshll.u32 %v2585, 16
        %v2791 = vrot.slane %v2789, 1
        %v2792 = vor.u32 %v2787, %v2791
        %v2794 = vshll.u32 %v2649, 16
        %v2796 = vrot.slane %v2794, 1
        %v2797 = vsel %vm1724, %v2792, %v2796
        %v2799 = vshrl.u32 %v2586, 16
        %v2801 = vshll.u32 %v2586, 16
        %v2803 = vrot.slane %v2801, 1
        %v2804 = vor.u32 %v2799, %v2803
        %v2806 = vshll.u32 %v2650, 16
        %v2808 = vrot.slane %v2806, 1
        %v2809 = vsel %vm1724, %v2804, %v2808
        %v2811 = vshrl.u32 %v2587, 16
        %v2813 = vshll.u32 %v2587, 16
        %v2815 = vrot.slane %v2813, 1
        %v2816 = vor.u32 %v2811, %v2815
        %v2818 = vshll.u32 %v2651, 16
        %v2820 = vrot.slane %v2818, 1
        %v2821 = vsel %vm1724, %v2816, %v2820
        %v2823 = vshrl.u32 %v2588, 16
        %v2825 = vshll.u32 %v2588, 16
        %v2827 = vrot.slane %v2825, 1
        %v2828 = vor.u32 %v2823, %v2827
        %v2830 = vshll.u32 %v2652, 16
        %v2832 = vrot.slane %v2830, 1
        %v2833 = vsel %vm1724, %v2828, %v2832
        %v2835 = vshrl.u32 %v2589, 16
        %v2837 = vshll.u32 %v2589, 16
        %v2839 = vrot.slane %v2837, 1
        %v2840 = vor.u32 %v2835, %v2839
        %v2842 = vshll.u32 %v2653, 16
        %v2844 = vrot.slane %v2842, 1
        %v2845 = vsel %vm1724, %v2840, %v2844
        %v2878 = vunpack.c.l.b16 %v1564
        %v2879 = vunpack.c.l.b16 %v1565
        %v2880 = vunpack.c.l.b16 %v1566
        %v2881 = vunpack.c.l.b16 %v1567
        %v2882 = vunpack.c.l.b16 %v1568
        %v2883 = vunpack.c.l.b16 %v1569
        %v2884 = vunpack.c.l.b16 %v1570
        %v2885 = vunpack.c.l.b16 %v1571
        %v2886 = vunpack.c.l.b16 %v1572
        %v2887 = vunpack.c.l.b16 %v1573
        %v2888 = vunpack.c.l.b16 %v1574
        %v2889 = vunpack.c.l.b16 %v1575
        %v2890 = vunpack.c.l.b16 %v1576
        %v2891 = vunpack.c.l.b16 %v1577
        %v2892 = vunpack.c.l.b16 %v1578
        %v2893 = vunpack.c.l.b16 %v1579
        %v2894 = vpack.c.b16 %v2543, %v2878
        %v2895 = vpack.c.b16 %v2545, %v2879
        %v2896 = vpack.c.b16 %v2547, %v2880
        %v2897 = vpack.c.b16 %v2549, %v2881
        %v2898 = vpack.c.b16 %v2551, %v2882
        %v2899 = vpack.c.b16 %v2553, %v2883
        %v2900 = vpack.c.b16 %v2555, %v2884
        %v2901 = vpack.c.b16 %v2557, %v2885
        %v2902 = vpack.c.b16 %v2559, %v2886
        %v2903 = vpack.c.b16 %v2561, %v2887
        %v2904 = vpack.c.b16 %v2563, %v2888
        %v2905 = vpack.c.b16 %v2565, %v2889
        %v2906 = vpack.c.b16 %v2567, %v2890
        %v2907 = vpack.c.b16 %v2569, %v2891
        %v2908 = vpack.c.b16 %v2571, %v2892
        %v2909 = vpack.c.b16 %v2573, %v2893
        %v2910 = vrot.slane %v2894, 1
        %v2911 = vrot.slane %v2638, 1
        %v2912 = vsel %vm1981, %v2910, %v2911
        %v2913 = vrot.slane %v2895, 1
        %v2914 = vrot.slane %v2639, 1
        %v2915 = vsel %vm1981, %v2913, %v2914
        %v2916 = vrot.slane %v2896, 1
        %v2917 = vrot.slane %v2640, 1
        %v2918 = vsel %vm1981, %v2916, %v2917
        %v2919 = vrot.slane %v2897, 1
        %v2920 = vrot.slane %v2641, 1
        %v2921 = vsel %vm1981, %v2919, %v2920
        %v2922 = vrot.slane %v2898, 1
        %v2923 = vrot.slane %v2642, 1
        %v2924 = vsel %vm1981, %v2922, %v2923
        %v2925 = vrot.slane %v2899, 1
        %v2926 = vrot.slane %v2643, 1
        %v2927 = vsel %vm1981, %v2925, %v2926
        %v2928 = vrot.slane %v2900, 1
        %v2929 = vrot.slane %v2644, 1
        %v2930 = vsel %vm1981, %v2928, %v2929
        %v2931 = vrot.slane %v2901, 1
        %v2932 = vrot.slane %v2645, 1
        %v2933 = vsel %vm1981, %v2931, %v2932
        %v2934 = vrot.slane %v2902, 1
        %v2935 = vrot.slane %v2646, 1
        %v2936 = vsel %vm1981, %v2934, %v2935
        %v2937 = vrot.slane %v2903, 1
        %v2938 = vrot.slane %v2647, 1
        %v2939 = vsel %vm1981, %v2937, %v2938
        %v2940 = vrot.slane %v2904, 1
        %v2941 = vrot.slane %v2648, 1
        %v2942 = vsel %vm1981, %v2940, %v2941
        %v2943 = vrot.slane %v2905, 1
        %v2944 = vrot.slane %v2649, 1
        %v2945 = vsel %vm1981, %v2943, %v2944
        %v2946 = vrot.slane %v2906, 1
        %v2947 = vrot.slane %v2650, 1
        %v2948 = vsel %vm1981, %v2946, %v2947
        %v2949 = vrot.slane %v2907, 1
        %v2950 = vrot.slane %v2651, 1
        %v2951 = vsel %vm1981, %v2949, %v2950
        %v2952 = vrot.slane %v2908, 1
        %v2953 = vrot.slane %v2652, 1
        %v2954 = vsel %vm1981, %v2952, %v2953
        %v2955 = vrot.slane %v2909, 1
        %v2956 = vrot.slane %v2653, 1
        %v2957 = vsel %vm1981, %v2955, %v2956
        %v2974 = vld [vmem:[#allocation8] sm:$0xf]
        %v2975 = vld [vmem:[#allocation8 + $0x4] sm:$0xf]
        %v2976 = vld [vmem:[#allocation8 + $0x8] sm:$0xf]
        %v2977 = vld [vmem:[#allocation8 + $0xc] sm:$0xf]
        %v2978 = vld [vmem:[#allocation8 + $0x10] sm:$0xf]
        %v2979 = vld [vmem:[#allocation8 + $0x14] sm:$0xf]
        %v2980 = vld [vmem:[#allocation8 + $0x18] sm:$0xf]
        %v2981 = vld [vmem:[#allocation8 + $0x1c] sm:$0xf]
        %v2982 = vld [vmem:[#allocation8 + $0x20] sm:$0xf]
        %v2983 = vld [vmem:[#allocation8 + $0x24] sm:$0xf]
        %v2984 = vld [vmem:[#allocation8 + $0x28] sm:$0xf]
        %v2985 = vld [vmem:[#allocation8 + $0x2c] sm:$0xf]
        %v2986 = vld [vmem:[#allocation8 + $0x30] sm:$0xf]
        %v2987 = vld [vmem:[#allocation8 + $0x34] sm:$0xf]
        %v2988 = vld [vmem:[#allocation8 + $0x38] sm:$0xf]
        %v2989 = vld [vmem:[#allocation8 + $0x3c] sm:$0xf]
        %v2990 = vld [vmem:[#allocation8 + $0x40] sm:$0xf]
        %v2991 = vld [vmem:[#allocation8 + $0x44] sm:$0xf]
        %v2992 = vld [vmem:[#allocation8 + $0x48] sm:$0xf]
        %v2993 = vld [vmem:[#allocation8 + $0x4c] sm:$0xf]
        %v2994 = vld [vmem:[#allocation8 + $0x50] sm:$0xf]
        %v2995 = vld [vmem:[#allocation8 + $0x54] sm:$0xf]
        %v2996 = vld [vmem:[#allocation8 + $0x58] sm:$0xf]
        %v2997 = vld [vmem:[#allocation8 + $0x5c] sm:$0xf]
        %v2998 = vld [vmem:[#allocation8 + $0x60] sm:$0xf]
        %v2999 = vld [vmem:[#allocation8 + $0x64] sm:$0xf]
        %v3000 = vld [vmem:[#allocation8 + $0x68] sm:$0xf]
        %v3001 = vld [vmem:[#allocation8 + $0x6c] sm:$0xf]
        %v3002 = vld [vmem:[#allocation8 + $0x70] sm:$0xf]
        %v3003 = vld [vmem:[#allocation8 + $0x74] sm:$0xf]
        %v3004 = vld [vmem:[#allocation8 + $0x78] sm:$0xf]
        %v3005 = vld [vmem:[#allocation8 + $0x7c] sm:$0xf]
        %v3006 = vld [vmem:[#allocation8 + $0x80] sm:$0xf]
        %v3007 = vld [vmem:[#allocation8 + $0x84] sm:$0xf]
        %v3008 = vld [vmem:[#allocation8 + $0x88] sm:$0xf]
        %v3009 = vld [vmem:[#allocation8 + $0x8c] sm:$0xf]
        %v3010 = vld [vmem:[#allocation8 + $0x90] sm:$0xf]
        %v3011 = vld [vmem:[#allocation8 + $0x94] sm:$0xf]
        %v3012 = vld [vmem:[#allocation8 + $0x98] sm:$0xf]
        %v3013 = vld [vmem:[#allocation8 + $0x9c] sm:$0xf]
        %v3014 = vld [vmem:[#allocation8 + $0xa0] sm:$0xf]
        %v3015 = vld [vmem:[#allocation8 + $0xa4] sm:$0xf]
        %v3016 = vld [vmem:[#allocation8 + $0xa8] sm:$0xf]
        %v3017 = vld [vmem:[#allocation8 + $0xac] sm:$0xf]
        %v3018 = vld [vmem:[#allocation8 + $0xb0] sm:$0xf]
        %v3019 = vld [vmem:[#allocation8 + $0xb4] sm:$0xf]
        %v3020 = vld [vmem:[#allocation8 + $0xb8] sm:$0xf]
        %v3021 = vld [vmem:[#allocation8 + $0xbc] sm:$0xf]
        %v3022 = vld [vmem:[#allocation8 + $0xc0] sm:$0xf]
        %v3023 = vld [vmem:[#allocation8 + $0xc4] sm:$0xf]
        %v3024 = vld [vmem:[#allocation8 + $0xc8] sm:$0xf]
        %v3025 = vld [vmem:[#allocation8 + $0xcc] sm:$0xf]
        %v3026 = vld [vmem:[#allocation8 + $0xd0] sm:$0xf]
        %v3027 = vld [vmem:[#allocation8 + $0xd4] sm:$0xf]
        %v3028 = vld [vmem:[#allocation8 + $0xd8] sm:$0xf]
        %v3029 = vld [vmem:[#allocation8 + $0xdc] sm:$0xf]
        %v3030 = vld [vmem:[#allocation8 + $0xe0] sm:$0xf]
        %v3031 = vld [vmem:[#allocation8 + $0xe4] sm:$0xf]
        %v3032 = vld [vmem:[#allocation8 + $0xe8] sm:$0xf]
        %v3033 = vld [vmem:[#allocation8 + $0xec] sm:$0xf]
        %v3034 = vld [vmem:[#allocation8 + $0xf0] sm:$0xf]
        %v3035 = vld [vmem:[#allocation8 + $0xf4] sm:$0xf]
        %v3036 = vld [vmem:[#allocation8 + $0xf8] sm:$0xf]
        %v3037 = vld [vmem:[#allocation8 + $0xfc] sm:$0xf]
        %v3038 = vld [vmem:[#allocation8 + $0x100] sm:$0xf]
        %v3039 = vld [vmem:[#allocation8 + $0x104] sm:$0xf]
        %v3040 = vld [vmem:[#allocation8 + $0x108] sm:$0xf]
        %v3041 = vld [vmem:[#allocation8 + $0x10c] sm:$0xf]
        %v3042 = vld [vmem:[#allocation8 + $0x110] sm:$0xf]
        %v3043 = vld [vmem:[#allocation8 + $0x114] sm:$0xf]
        %v3044 = vld [vmem:[#allocation8 + $0x118] sm:$0xf]
        %v3045 = vld [vmem:[#allocation8 + $0x11c] sm:$0xf]
        %v3046 = vld [vmem:[#allocation8 + $0x120] sm:$0xf]
        %v3047 = vld [vmem:[#allocation8 + $0x124] sm:$0xf]
        %v3048 = vld [vmem:[#allocation8 + $0x128] sm:$0xf]
        %v3049 = vld [vmem:[#allocation8 + $0x12c] sm:$0xf]
        %v3050 = vld [vmem:[#allocation8 + $0x130] sm:$0xf]
        %v3051 = vld [vmem:[#allocation8 + $0x134] sm:$0xf]
        %v3052 = vld [vmem:[#allocation8 + $0x138] sm:$0xf]
        %v3053 = vld [vmem:[#allocation8 + $0x13c] sm:$0xf]
        %v3054 = vld [vmem:[#allocation8 + $0x140] sm:$0xf]
        %v3055 = vld [vmem:[#allocation8 + $0x144] sm:$0xf]
        %v3056 = vld [vmem:[#allocation8 + $0x148] sm:$0xf]
        %v3057 = vld [vmem:[#allocation8 + $0x14c] sm:$0xf]
        %v3058 = vld [vmem:[#allocation8 + $0x150] sm:$0xf]
        %v3059 = vld [vmem:[#allocation8 + $0x154] sm:$0xf]
        %v3060 = vld [vmem:[#allocation8 + $0x158] sm:$0xf]
        %v3061 = vld [vmem:[#allocation8 + $0x15c] sm:$0xf]
        %v3062 = vld [vmem:[#allocation8 + $0x160] sm:$0xf]
        %v3063 = vld [vmem:[#allocation8 + $0x164] sm:$0xf]
        %v3064 = vld [vmem:[#allocation8 + $0x168] sm:$0xf]
        %v3065 = vld [vmem:[#allocation8 + $0x16c] sm:$0xf]
        %v3066 = vld [vmem:[#allocation8 + $0x170] sm:$0xf]
        %v3067 = vld [vmem:[#allocation8 + $0x174] sm:$0xf]
        %v3068 = vld [vmem:[#allocation8 + $0x178] sm:$0xf]
        %v3069 = vld [vmem:[#allocation8 + $0x17c] sm:$0xf]
        %v3070 = vld [vmem:[#allocation8 + $0x180] sm:$0xf]
        %v3071 = vld [vmem:[#allocation8 + $0x184] sm:$0xf]
        %v3072 = vld [vmem:[#allocation8 + $0x188] sm:$0xf]
        %v3073 = vld [vmem:[#allocation8 + $0x18c] sm:$0xf]
        %v3074 = vld [vmem:[#allocation8 + $0x190] sm:$0xf]
        %v3075 = vld [vmem:[#allocation8 + $0x194] sm:$0xf]
        %v3076 = vld [vmem:[#allocation8 + $0x198] sm:$0xf]
        %v3077 = vld [vmem:[#allocation8 + $0x19c] sm:$0xf]
        %v3078 = vld [vmem:[#allocation8 + $0x1a0] sm:$0xf]
        %v3079 = vld [vmem:[#allocation8 + $0x1a4] sm:$0xf]
        %v3080 = vld [vmem:[#allocation8 + $0x1a8] sm:$0xf]
        %v3081 = vld [vmem:[#allocation8 + $0x1ac] sm:$0xf]
        %v3082 = vld [vmem:[#allocation8 + $0x1b0] sm:$0xf]
        %v3083 = vld [vmem:[#allocation8 + $0x1b4] sm:$0xf]
        %v3084 = vld [vmem:[#allocation8 + $0x1b8] sm:$0xf]
        %v3085 = vld [vmem:[#allocation8 + $0x1bc] sm:$0xf]
        %v3086 = vld [vmem:[#allocation8 + $0x1c0] sm:$0xf]
        %v3087 = vld [vmem:[#allocation8 + $0x1c4] sm:$0xf]
        %v3088 = vld [vmem:[#allocation8 + $0x1c8] sm:$0xf]
        %v3089 = vld [vmem:[#allocation8 + $0x1cc] sm:$0xf]
        %v3090 = vld [vmem:[#allocation8 + $0x1d0] sm:$0xf]
        %v3091 = vld [vmem:[#allocation8 + $0x1d4] sm:$0xf]
        %v3092 = vld [vmem:[#allocation8 + $0x1d8] sm:$0xf]
        %v3093 = vld [vmem:[#allocation8 + $0x1dc] sm:$0xf]
        %v3094 = vld [vmem:[#allocation8 + $0x1e0] sm:$0xf]
        %v3095 = vld [vmem:[#allocation8 + $0x1e4] sm:$0xf]
        %v3096 = vld [vmem:[#allocation8 + $0x1e8] sm:$0xf]
        %v3097 = vld [vmem:[#allocation8 + $0x1ec] sm:$0xf]
        %v3098 = vld [vmem:[#allocation8 + $0x1f0] sm:$0xf]
        %v3099 = vld [vmem:[#allocation8 + $0x1f4] sm:$0xf]
        %v3100 = vld [vmem:[#allocation8 + $0x1f8] sm:$0xf]
        %v3101 = vld [vmem:[#allocation8 + $0x1fc] sm:$0xf]
        %v3102 = vld [vmem:[#allocation8 + $0x200] sm:$0xf]
        %v3103 = vld [vmem:[#allocation8 + $0x204] sm:$0xf]
        %v3104 = vld [vmem:[#allocation8 + $0x208] sm:$0xf]
        %v3105 = vld [vmem:[#allocation8 + $0x20c] sm:$0xf]
        %v3106 = vld [vmem:[#allocation8 + $0x210] sm:$0xf]
        %v3107 = vld [vmem:[#allocation8 + $0x214] sm:$0xf]
        %v3108 = vld [vmem:[#allocation8 + $0x218] sm:$0xf]
        %v3109 = vld [vmem:[#allocation8 + $0x21c] sm:$0xf]
        %v3110 = vld [vmem:[#allocation8 + $0x220] sm:$0xf]
        %v3111 = vld [vmem:[#allocation8 + $0x224] sm:$0xf]
        %v3112 = vld [vmem:[#allocation8 + $0x228] sm:$0xf]
        %v3113 = vld [vmem:[#allocation8 + $0x22c] sm:$0xf]
        %v3114 = vld [vmem:[#allocation8 + $0x230] sm:$0xf]
        %v3115 = vld [vmem:[#allocation8 + $0x234] sm:$0xf]
        %v3116 = vld [vmem:[#allocation8 + $0x238] sm:$0xf]
        %v3117 = vld [vmem:[#allocation8 + $0x23c] sm:$0xf]
        %v3118 = vld [vmem:[%s4] sm:$0x1]
        %v3120 = vlaneseq
        %v3121 = vshrl.u32 %v3120, 7
        %v3122 = vsub.s32 0, %v3121
        %v3123 = vrot.slane %v3118, %v3122
        %v3269 = vunpack.c.l.b16 %v2974
        %v3270 = vunpack.c.l.b16 %v2975
        %v3271 = vunpack.c.l.b16 %v2976
        %v3272 = vunpack.c.l.b16 %v2977
        %v3273 = vunpack.c.l.b16 %v2978
        %v3274 = vunpack.c.l.b16 %v2979
        %v3275 = vunpack.c.l.b16 %v2980
        %v3276 = vunpack.c.l.b16 %v2981
        %v3277 = vunpack.c.l.b16 %v2982
        %v3278 = vunpack.c.l.b16 %v2983
        %v3279 = vunpack.c.l.b16 %v2984
        %v3280 = vunpack.c.l.b16 %v2985
        %v3281 = vunpack.c.l.b16 %v2986
        %v3282 = vunpack.c.l.b16 %v2987
        %v3283 = vunpack.c.l.b16 %v2988
        %v3284 = vunpack.c.l.b16 %v2989
        %v3285 = vunpack.c.l.b16 %v2990
        %v3286 = vunpack.c.l.b16 %v2991
        %v3287 = vunpack.c.l.b16 %v2992
        %v3288 = vunpack.c.l.b16 %v2993
        %v3289 = vunpack.c.l.b16 %v2994
        %v3290 = vunpack.c.l.b16 %v2995
        %v3291 = vunpack.c.l.b16 %v2996
        %v3292 = vunpack.c.l.b16 %v2997
        %v3293 = vunpack.c.l.b16 %v2998
        %v3294 = vunpack.c.l.b16 %v2999
        %v3295 = vunpack.c.l.b16 %v3000
        %v3296 = vunpack.c.l.b16 %v3001
        %v3297 = vunpack.c.l.b16 %v3002
        %v3298 = vunpack.c.l.b16 %v3003
        %v3299 = vunpack.c.l.b16 %v3004
        %v3300 = vunpack.c.l.b16 %v3005
        %v3301 = vunpack.c.l.b16 %v3006
        %v3302 = vunpack.c.l.b16 %v3007
        %v3303 = vunpack.c.l.b16 %v3008
        %v3304 = vunpack.c.l.b16 %v3009
        %v3305 = vunpack.c.l.b16 %v3010
        %v3306 = vunpack.c.l.b16 %v3011
        %v3307 = vunpack.c.l.b16 %v3012
        %v3308 = vunpack.c.l.b16 %v3013
        %v3309 = vunpack.c.l.b16 %v3014
        %v3310 = vunpack.c.l.b16 %v3015
        %v3311 = vunpack.c.l.b16 %v3016
        %v3312 = vunpack.c.l.b16 %v3017
        %v3313 = vunpack.c.l.b16 %v3018
        %v3314 = vunpack.c.l.b16 %v3019
        %v3315 = vunpack.c.l.b16 %v3020
        %v3316 = vunpack.c.l.b16 %v3021
        %v3317 = vunpack.c.l.b16 %v3022
        %v3318 = vunpack.c.l.b16 %v3023
        %v3319 = vunpack.c.l.b16 %v3024
        %v3320 = vunpack.c.l.b16 %v3025
        %v3321 = vunpack.c.l.b16 %v3026
        %v3322 = vunpack.c.l.b16 %v3027
        %v3323 = vunpack.c.l.b16 %v3028
        %v3324 = vunpack.c.l.b16 %v3029
        %v3325 = vunpack.c.l.b16 %v3030
        %v3326 = vunpack.c.l.b16 %v3031
        %v3327 = vunpack.c.l.b16 %v3032
        %v3328 = vunpack.c.l.b16 %v3033
        %v3329 = vunpack.c.l.b16 %v3034
        %v3330 = vunpack.c.l.b16 %v3035
        %v3331 = vunpack.c.l.b16 %v3036
        %v3332 = vunpack.c.l.b16 %v3037
        %v3333 = vunpack.c.l.b16 %v3038
        %v3334 = vunpack.c.l.b16 %v3039
        %v3335 = vunpack.c.l.b16 %v3040
        %v3336 = vunpack.c.l.b16 %v3041
        %v3337 = vunpack.c.l.b16 %v3042
        %v3338 = vunpack.c.l.b16 %v3043
        %v3339 = vunpack.c.l.b16 %v3044
        %v3340 = vunpack.c.l.b16 %v3045
        %v3341 = vunpack.c.l.b16 %v3046
        %v3342 = vunpack.c.l.b16 %v3047
        %v3343 = vunpack.c.l.b16 %v3048
        %v3344 = vunpack.c.l.b16 %v3049
        %v3345 = vunpack.c.l.b16 %v3050
        %v3346 = vunpack.c.l.b16 %v3051
        %v3347 = vunpack.c.l.b16 %v3052
        %v3348 = vunpack.c.l.b16 %v3053
        %v3349 = vunpack.c.l.b16 %v3054
        %v3350 = vunpack.c.l.b16 %v3055
        %v3351 = vunpack.c.l.b16 %v3056
        %v3352 = vunpack.c.l.b16 %v3057
        %v3353 = vunpack.c.l.b16 %v3058
        %v3354 = vunpack.c.l.b16 %v3059
        %v3355 = vunpack.c.l.b16 %v3060
        %v3356 = vunpack.c.l.b16 %v3061
        %v3357 = vunpack.c.l.b16 %v3062
        %v3358 = vunpack.c.l.b16 %v3063
        %v3359 = vunpack.c.l.b16 %v3064
        %v3360 = vunpack.c.l.b16 %v3065
        %v3361 = vunpack.c.l.b16 %v3066
        %v3362 = vunpack.c.l.b16 %v3067
        %v3363 = vunpack.c.l.b16 %v3068
        %v3364 = vunpack.c.l.b16 %v3069
        %v3365 = vunpack.c.l.b16 %v3070
        %v3366 = vunpack.c.l.b16 %v3071
        %v3367 = vunpack.c.l.b16 %v3072
        %v3368 = vunpack.c.l.b16 %v3073
        %v3369 = vunpack.c.l.b16 %v3074
        %v3370 = vunpack.c.l.b16 %v3075
        %v3371 = vunpack.c.l.b16 %v3076
        %v3372 = vunpack.c.l.b16 %v3077
        %v3373 = vunpack.c.l.b16 %v3078
        %v3374 = vunpack.c.l.b16 %v3079
        %v3375 = vunpack.c.l.b16 %v3080
        %v3376 = vunpack.c.l.b16 %v3081
        %v3377 = vunpack.c.l.b16 %v3082
        %v3378 = vunpack.c.l.b16 %v3083
        %v3379 = vunpack.c.l.b16 %v3084
        %v3380 = vunpack.c.l.b16 %v3085
        %v3381 = vunpack.c.l.b16 %v3086
        %v3382 = vunpack.c.l.b16 %v3087
        %v3383 = vunpack.c.l.b16 %v3088
        %v3384 = vunpack.c.l.b16 %v3089
        %v3385 = vunpack.c.l.b16 %v3090
        %v3386 = vunpack.c.l.b16 %v3091
        %v3387 = vunpack.c.l.b16 %v3092
        %v3388 = vunpack.c.l.b16 %v3093
        %v3389 = vunpack.c.l.b16 %v3094
        %v3390 = vunpack.c.l.b16 %v3095
        %v3391 = vunpack.c.l.b16 %v3096
        %v3392 = vunpack.c.l.b16 %v3097
        %v3393 = vunpack.c.l.b16 %v3098
        %v3394 = vunpack.c.l.b16 %v3099
        %v3395 = vunpack.c.l.b16 %v3100
        %v3396 = vunpack.c.l.b16 %v3101
        %v3397 = vunpack.c.l.b16 %v3102
        %v3398 = vunpack.c.l.b16 %v3103
        %v3399 = vunpack.c.l.b16 %v3104
        %v3400 = vunpack.c.l.b16 %v3105
        %v3401 = vunpack.c.l.b16 %v3106
        %v3402 = vunpack.c.l.b16 %v3107
        %v3403 = vunpack.c.l.b16 %v3108
        %v3404 = vunpack.c.l.b16 %v3109
        %v3405 = vunpack.c.l.b16 %v3110
        %v3406 = vunpack.c.l.b16 %v3111
        %v3407 = vunpack.c.l.b16 %v3112
        %v3408 = vunpack.c.l.b16 %v3113
        %v3409 = vunpack.c.l.b16 %v3114
        %v3410 = vunpack.c.l.b16 %v3115
        %v3411 = vunpack.c.l.b16 %v3116
        %v3412 = vunpack.c.l.b16 %v3117
        %v3413 = vpack.c.b16 %v3270, %v3269
        %v3414 = vpack.c.b16 %v3272, %v3271
        %v3415 = vpack.c.b16 %v3274, %v3273
        %v3416 = vpack.c.b16 %v3276, %v3275
        %v3417 = vpack.c.b16 %v3278, %v3277
        %v3418 = vpack.c.b16 %v3280, %v3279
        %v3419 = vpack.c.b16 %v3282, %v3281
        %v3420 = vpack.c.b16 %v3284, %v3283
        %v3421 = vpack.c.b16 %v3286, %v3285
        %v3422 = vpack.c.b16 %v3288, %v3287
        %v3423 = vpack.c.b16 %v3290, %v3289
        %v3424 = vpack.c.b16 %v3292, %v3291
        %v3425 = vpack.c.b16 %v3294, %v3293
        %v3426 = vpack.c.b16 %v3296, %v3295
        %v3427 = vpack.c.b16 %v3298, %v3297
        %v3428 = vpack.c.b16 %v3300, %v3299
        %v3429 = vpack.c.b16 %v3302, %v3301
        %v3430 = vpack.c.b16 %v3304, %v3303
        %v3431 = vpack.c.b16 %v3306, %v3305
        %v3432 = vpack.c.b16 %v3308, %v3307
        %v3433 = vpack.c.b16 %v3310, %v3309
        %v3434 = vpack.c.b16 %v3312, %v3311
        %v3435 = vpack.c.b16 %v3314, %v3313
        %v3436 = vpack.c.b16 %v3316, %v3315
        %v3437 = vpack.c.b16 %v3318, %v3317
        %v3438 = vpack.c.b16 %v3320, %v3319
        %v3439 = vpack.c.b16 %v3322, %v3321
        %v3440 = vpack.c.b16 %v3324, %v3323
        %v3441 = vpack.c.b16 %v3326, %v3325
        %v3442 = vpack.c.b16 %v3328, %v3327
        %v3443 = vpack.c.b16 %v3330, %v3329
        %v3444 = vpack.c.b16 %v3332, %v3331
        %v3445 = vpack.c.b16 %v3334, %v3333
        %v3446 = vpack.c.b16 %v3336, %v3335
        %v3447 = vpack.c.b16 %v3338, %v3337
        %v3448 = vpack.c.b16 %v3340, %v3339
        %v3449 = vpack.c.b16 %v3342, %v3341
        %v3450 = vpack.c.b16 %v3344, %v3343
        %v3451 = vpack.c.b16 %v3346, %v3345
        %v3452 = vpack.c.b16 %v3348, %v3347
        %v3453 = vpack.c.b16 %v3350, %v3349
        %v3454 = vpack.c.b16 %v3352, %v3351
        %v3455 = vpack.c.b16 %v3354, %v3353
        %v3456 = vpack.c.b16 %v3356, %v3355
        %v3457 = vpack.c.b16 %v3358, %v3357
        %v3458 = vpack.c.b16 %v3360, %v3359
        %v3459 = vpack.c.b16 %v3362, %v3361
        %v3460 = vpack.c.b16 %v3364, %v3363
        %v3461 = vpack.c.b16 %v3366, %v3365
        %v3462 = vpack.c.b16 %v3368, %v3367
        %v3463 = vpack.c.b16 %v3370, %v3369
        %v3464 = vpack.c.b16 %v3372, %v3371
        %v3465 = vpack.c.b16 %v3374, %v3373
        %v3466 = vpack.c.b16 %v3376, %v3375
        %v3467 = vpack.c.b16 %v3378, %v3377
        %v3468 = vpack.c.b16 %v3380, %v3379
        %v3469 = vpack.c.b16 %v3382, %v3381
        %v3470 = vpack.c.b16 %v3384, %v3383
        %v3471 = vpack.c.b16 %v3386, %v3385
        %v3472 = vpack.c.b16 %v3388, %v3387
        %v3473 = vpack.c.b16 %v3390, %v3389
        %v3474 = vpack.c.b16 %v3392, %v3391
        %v3475 = vpack.c.b16 %v3394, %v3393
        %v3476 = vpack.c.b16 %v3396, %v3395
        %v3477 = vpack.c.b16 %v3398, %v3397
        %v3478 = vpack.c.b16 %v3400, %v3399
        %v3479 = vpack.c.b16 %v3402, %v3401
        %v3480 = vpack.c.b16 %v3404, %v3403
        %v3481 = vpack.c.b16 %v3406, %v3405
        %v3482 = vpack.c.b16 %v3408, %v3407
        %v3483 = vpack.c.b16 %v3410, %v3409
        %v3484 = vpack.c.b16 %v3412, %v3411
        %3557 = vmatprep.subr.bf16.mxu0 0
        %3558 = vmatpush1.bf16.msra.mxu0 %v3413
        %3559 = vmatprep.subr.bf16.mxu0 0
        %3560 = vmatpush1.bf16.msra.mxu0 %v3414
        %3561 = vmatprep.subr.bf16.mxu0 0
        %3562 = vmatpush1.bf16.msra.mxu0 %v3415
        %3563 = vmatprep.subr.bf16.mxu0 0
        %3564 = vmatpush1.bf16.msra.mxu0 %v3416
        %3565 = vmatprep.subr.bf16.mxu0 0
        %3566 = vmatpush1.bf16.msra.mxu0 %v3417
        %3567 = vmatprep.subr.bf16.mxu0 0
        %3568 = vmatpush1.bf16.msra.mxu0 %v3418
        %3569 = vmatprep.subr.bf16.mxu0 0
        %3570 = vmatpush1.bf16.msra.mxu0 %v3419
        %3571 = vmatprep.subr.bf16.mxu0 0
        %3572 = vmatpush1.bf16.msra.mxu0 %v3420
        %3573 = vmatprep.subr.bf16.mxu0 0
        %3574 = vmatpush1.bf16.msra.mxu0 %v3421
        %3575 = vmatprep.subr.bf16.mxu0 0
        %3576 = vmatpush1.bf16.msra.mxu0 %v3422
        %3577 = vmatprep.subr.bf16.mxu0 0
        %3578 = vmatpush1.bf16.msra.mxu0 %v3423
        %3579 = vmatprep.subr.bf16.mxu0 0
        %3580 = vmatpush1.bf16.msra.mxu0 %v3424
        %3581 = vmatprep.subr.bf16.mxu0 0
        %3582 = vmatpush1.bf16.msra.mxu0 %v3425
        %3583 = vmatprep.subr.bf16.mxu0 0
        %3584 = vmatpush1.bf16.msra.mxu0 %v3426
        %3585 = vmatprep.subr.bf16.mxu0 0
        %3586 = vmatpush1.bf16.msra.mxu0 %v3427
        %3587 = vmatprep.subr.bf16.mxu0 0
        %3588 = vmatpush1.bf16.msra.mxu0 %v3428
        %3589 = vmatprep.mubr.bf16.mxu0 %v1736
        %3590 = vmatmul.mubr.bf16.gmra.mrb[0].mxu0 %v1644
        %v3591 = vpop.f32.mrb[0].mxu0
        %v3592 = vadd.f32 %v3123, %v3591
        %v3593 = vpop.f32.mrb[0].mxu0
        %v3594 = vpop.f32.mrb[0].mxu0
        %v3595 = vadd.f32 %v3123, %v3594
        %v3596 = vpop.f32.mrb[0].mxu0
        %3597 = vmatprep.mubr.bf16.mxu0 %v1748
        %3598 = vmatmul.mubr.bf16.gmra.mrb[0].mxu0 %v1645
        %v3599 = vpop.f32.mrb[0].mxu0
        %v3600 = vadd.f32 %v3123, %v3599
        %v3601 = vpop.f32.mrb[0].mxu0
        %v3602 = vpop.f32.mrb[0].mxu0
        %v3603 = vadd.f32 %v3123, %v3602
        %v3604 = vpop.f32.mrb[0].mxu0
        %3605 = vmatprep.mubr.bf16.mxu0 %v1760
        %3606 = vmatmul.mubr.bf16.gmra.mrb[0].mxu0 %v1646
        %v3607 = vpop.f32.mrb[0].mxu0
        %v3608 = vadd.f32 %v3123, %v3607
        %v3609 = vpop.f32.mrb[0].mxu0
        %v3610 = vpop.f32.mrb[0].mxu0
        %v3611 = vadd.f32 %v3123, %v3610
        %v3612 = vpop.f32.mrb[0].mxu0
        %3613 = vmatprep.mubr.bf16.mxu0 %v1772
        %3614 = vmatmul.mubr.bf16.gmra.mrb[0].mxu0 %v1647
        %v3615 = vpop.f32.mrb[0].mxu0
        %v3616 = vadd.f32 %v3123, %v3615
        %v3617 = vpop.f32.mrb[0].mxu0
        %v3618 = vpop.f32.mrb[0].mxu0
        %v3619 = vadd.f32 %v3123, %v3618
        %v3620 = vpop.f32.mrb[0].mxu0
        %3621 = vmatprep.mubr.bf16.mxu0 %v1784
        %3622 = vmatmul.mubr.bf16.gmra.mrb[0].mxu0 %v1648
        %v3623 = vpop.f32.mrb[0].mxu0
        %v3624 = vadd.f32 %v3123, %v3623
        %v3625 = vpop.f32.mrb[0].mxu0
        %v3626 = vpop.f32.mrb[0].mxu0
        %v3627 = vadd.f32 %v3123, %v3626
        %v3628 = vpop.f32.mrb[0].mxu0
        %3629 = vmatprep.mubr.bf16.mxu0 %v1796
        %3630 = vmatmul.mubr.bf16.gmra.mrb[0].mxu0 %v1649
        %v3631 = vpop.f32.mrb[0].mxu0
        %v3632 = vadd.f32 %v3123, %v3631
        %v3633 = vpop.f32.mrb[0].mxu0
        %v3634 = vpop.f32.mrb[0].mxu0
        %v3635 = vadd.f32 %v3123, %v3634
        %v3636 = vpop.f32.mrb[0].mxu0
        %3637 = vmatprep.mubr.bf16.mxu0 %v1808
        %3638 = vmatmul.mubr.bf16.gmra.mrb[0].mxu0 %v1650
        %v3639 = vpop.f32.mrb[0].mxu0
        %v3640 = vadd.f32 %v3123, %v3639
        %v3641 = vpop.f32.mrb[0].mxu0
        %v3642 = vpop.f32.mrb[0].mxu0
        %v3643 = vadd.f32 %v3123, %v3642
        %v3644 = vpop.f32.mrb[0].mxu0
        %3645 = vmatprep.mubr.bf16.mxu0 %v1820
        %3646 = vmatmul.mubr.bf16.gmra.mrb[0].mxu0 %v1651
        %v3647 = vpop.f32.mrb[0].mxu0
        %v3648 = vadd.f32 %v3123, %v3647
        %v3649 = vpop.f32.mrb[0].mxu0
        %v3650 = vpop.f32.mrb[0].mxu0
        %v3651 = vadd.f32 %v3123, %v3650
        %v3652 = vpop.f32.mrb[0].mxu0
        %3653 = vmatprep.mubr.bf16.mxu0 %v1832
        %3654 = vmatmul.mubr.bf16.gmra.mrb[0].mxu0 %v1652
        %v3655 = vpop.f32.mrb[0].mxu0
        %v3656 = vadd.f32 %v3123, %v3655
        %v3657 = vpop.f32.mrb[0].mxu0
        %v3658 = vpop.f32.mrb[0].mxu0
        %v3659 = vadd.f32 %v3123, %v3658
        %v3660 = vpop.f32.mrb[0].mxu0
        %3661 = vmatprep.mubr.bf16.mxu0 %v1844
        %3662 = vmatmul.mubr.bf16.gmra.mrb[0].mxu0 %v1653
        %v3663 = vpop.f32.mrb[0].mxu0
        %v3664 = vadd.f32 %v3123, %v3663
        %v3665 = vpop.f32.mrb[0].mxu0
        %v3666 = vpop.f32.mrb[0].mxu0
        %v3667 = vadd.f32 %v3123, %v3666
        %v3668 = vpop.f32.mrb[0].mxu0
        %3669 = vmatprep.mubr.bf16.mxu0 %v1856
        %3670 = vmatmul.mubr.bf16.gmra.mrb[0].mxu0 %v1654
        %v3671 = vpop.f32.mrb[0].mxu0
        %v3672 = vadd.f32 %v3123, %v3671
        %v3673 = vpop.f32.mrb[0].mxu0
        %v3674 = vpop.f32.mrb[0].mxu0
        %v3675 = vadd.f32 %v3123, %v3674
        %v3676 = vpop.f32.mrb[0].mxu0
        %3677 = vmatprep.mubr.bf16.mxu0 %v1868
        %3678 = vmatmul.mubr.bf16.gmra.mrb[0].mxu0 %v1655
        %v3679 = vpop.f32.mrb[0].mxu0
        %v3680 = vadd.f32 %v3123, %v3679
        %v3681 = vpop.f32.mrb[0].mxu0
        %v3682 = vpop.f32.mrb[0].mxu0
        %v3683 = vadd.f32 %v3123, %v3682
        %v3684 = vpop.f32.mrb[0].mxu0
        %3685 = vmatprep.mubr.bf16.mxu0 %v1880
        %3686 = vmatmul.mubr.bf16.gmra.mrb[0].mxu0 %v1656
        %v3687 = vpop.f32.mrb[0].mxu0
        %v3688 = vadd.f32 %v3123, %v3687
        %v3689 = vpop.f32.mrb[0].mxu0
        %v3690 = vpop.f32.mrb[0].mxu0
        %v3691 = vadd.f32 %v3123, %v3690
        %v3692 = vpop.f32.mrb[0].mxu0
        %3693 = vmatprep.mubr.bf16.mxu0 %v1892
        %3694 = vmatmul.mubr.bf16.gmra.mrb[0].mxu0 %v1657
        %v3695 = vpop.f32.mrb[0].mxu0
        %v3696 = vadd.f32 %v3123, %v3695
        %v3697 = vpop.f32.mrb[0].mxu0
        %v3698 = vpop.f32.mrb[0].mxu0
        %v3699 = vadd.f32 %v3123, %v3698
        %v3700 = vpop.f32.mrb[0].mxu0
        %3701 = vmatprep.mubr.bf16.mxu0 %v1904
        %3702 = vmatmul.mubr.bf16.gmra.mrb[0].mxu0 %v1658
        %v3703 = vpop.f32.mrb[0].mxu0
        %v3704 = vadd.f32 %v3123, %v3703
        %v3705 = vpop.f32.mrb[0].mxu0
        %v3706 = vpop.f32.mrb[0].mxu0
        %v3707 = vadd.f32 %v3123, %v3706
        %v3708 = vpop.f32.mrb[0].mxu0
        %3709 = vmatprep.mubr.bf16.mxu0 %v1916
        %3710 = vmatmul.mubr.bf16.gmra.mrb[0].mxu0 %v1659
        %v3711 = vpop.f32.mrb[0].mxu0
        %v3712 = vadd.f32 %v3123, %v3711
        %v3713 = vpop.f32.mrb[0].mxu0
        %v3714 = vpop.f32.mrb[0].mxu0
        %v3715 = vadd.f32 %v3123, %v3714
        %v3716 = vpop.f32.mrb[0].mxu0
        %3717 = vdwg.mxu0
        %3718 = vmatprep.subr.bf16.mxu0 0
        %3719 = vmatpush1.bf16.msra.mxu0 %v3429
        %3720 = vmatprep.subr.bf16.mxu0 0
        %3721 = vmatpush1.bf16.msra.mxu0 %v3430
        %3722 = vmatprep.subr.bf16.mxu0 0
        %3723 = vmatpush1.bf16.msra.mxu0 %v3431
        %3724 = vmatprep.subr.bf16.mxu0 0
        %3725 = vmatpush1.bf16.msra.mxu0 %v3432
        %3726 = vmatprep.subr.bf16.mxu0 0
        %3727 = vmatpush1.bf16.msra.mxu0 %v3433
        %3728 = vmatprep.subr.bf16.mxu0 0
        %3729 = vmatpush1.bf16.msra.mxu0 %v3434
        %3730 = vmatprep.subr.bf16.mxu0 0
        %3731 = vmatpush1.bf16.msra.mxu0 %v3435
        %3732 = vmatprep.subr.bf16.mxu0 0
        %3733 = vmatpush1.bf16.msra.mxu0 %v3436
        %3734 = vmatprep.subr.bf16.mxu0 0
        %3735 = vmatpush1.bf16.msra.mxu0 %v3437
        %3736 = vmatprep.subr.bf16.mxu0 0
        %3737 = vmatpush1.bf16.msra.mxu0 %v3438
        %3738 = vmatprep.subr.bf16.mxu0 0
        %3739 = vmatpush1.bf16.msra.mxu0 %v3439
        %3740 = vmatprep.subr.bf16.mxu0 0
        %3741 = vmatpush1.bf16.msra.mxu0 %v3440
        %3742 = vmatprep.subr.bf16.mxu0 0
        %3743 = vmatpush1.bf16.msra.mxu0 %v3441
        %3744 = vmatprep.subr.bf16.mxu0 0
        %3745 = vmatpush1.bf16.msra.mxu0 %v3442
        %3746 = vmatprep.subr.bf16.mxu0 0
        %3747 = vmatpush1.bf16.msra.mxu0 %v3443
        %3748 = vmatprep.subr.bf16.mxu0 0
        %3749 = vmatpush1.bf16.msra.mxu0 %v3444
        %3750 = vmatprep.mubr.bf16.mxu0 %v2110
        %3751 = vmatmul.mubr.bf16.gmra.mrb[0].mxu0 %v1984
        %v3752 = vpop.f32.mrb[0].mxu0
        %v3753 = vadd.f32 %v3592, %v3752
        %v3754 = vpop.f32.mrb[0].mxu0
        %v3755 = vpop.f32.mrb[0].mxu0
        %v3756 = vadd.f32 %v3595, %v3755
        %v3757 = vpop.f32.mrb[0].mxu0
        %3758 = vmatprep.mubr.bf16.mxu0 %v2111
        %3759 = vmatmul.mubr.bf16.gmra.mrb[0].mxu0 %v1987
        %v3760 = vpop.f32.mrb[0].mxu0
        %v3761 = vadd.f32 %v3600, %v3760
        %v3762 = vpop.f32.mrb[0].mxu0
        %v3763 = vpop.f32.mrb[0].mxu0
        %v3764 = vadd.f32 %v3603, %v3763
        %v3765 = vpop.f32.mrb[0].mxu0
        %3766 = vmatprep.mubr.bf16.mxu0 %v2112
        %3767 = vmatmul.mubr.bf16.gmra.mrb[0].mxu0 %v1990
        %v3768 = vpop.f32.mrb[0].mxu0
        %v3769 = vadd.f32 %v3608, %v3768
        %v3770 = vpop.f32.mrb[0].mxu0
        %v3771 = vpop.f32.mrb[0].mxu0
        %v3772 = vadd.f32 %v3611, %v3771
        %v3773 = vpop.f32.mrb[0].mxu0
        %3774 = vmatprep.mubr.bf16.mxu0 %v2113
        %3775 = vmatmul.mubr.bf16.gmra.mrb[0].mxu0 %v1993
        %v3776 = vpop.f32.mrb[0].mxu0
        %v3777 = vadd.f32 %v3616, %v3776
        %v3778 = vpop.f32.mrb[0].mxu0
        %v3779 = vpop.f32.mrb[0].mxu0
        %v3780 = vadd.f32 %v3619, %v3779
        %v3781 = vpop.f32.mrb[0].mxu0
        %3782 = vmatprep.mubr.bf16.mxu0 %v2114
        %3783 = vmatmul.mubr.bf16.gmra.mrb[0].mxu0 %v1996
        %v3784 = vpop.f32.mrb[0].mxu0
        %v3785 = vadd.f32 %v3624, %v3784
        %v3786 = vpop.f32.mrb[0].mxu0
        %v3787 = vpop.f32.mrb[0].mxu0
        %v3788 = vadd.f32 %v3627, %v3787
        %v3789 = vpop.f32.mrb[0].mxu0
        %3790 = vmatprep.mubr.bf16.mxu0 %v2115
        %3791 = vmatmul.mubr.bf16.gmra.mrb[0].mxu0 %v1999
        %v3792 = vpop.f32.mrb[0].mxu0
        %v3793 = vadd.f32 %v3632, %v3792
        %v3794 = vpop.f32.mrb[0].mxu0
        %v3795 = vpop.f32.mrb[0].mxu0
        %v3796 = vadd.f32 %v3635, %v3795
        %v3797 = vpop.f32.mrb[0].mxu0
        %3798 = vmatprep.mubr.bf16.mxu0 %v2116
        %3799 = vmatmul.mubr.bf16.gmra.mrb[0].mxu0 %v2002
        %v3800 = vpop.f32.mrb[0].mxu0
        %v3801 = vadd.f32 %v3640, %v3800
        %v3802 = vpop.f32.mrb[0].mxu0
        %v3803 = vpop.f32.mrb[0].mxu0
        %v3804 = vadd.f32 %v3643, %v3803
        %v3805 = vpop.f32.mrb[0].mxu0
        %3806 = vmatprep.mubr.bf16.mxu0 %v2117
        %3807 = vmatmul.mubr.bf16.gmra.mrb[0].mxu0 %v2005
        %v3808 = vpop.f32.mrb[0].mxu0
        %v3809 = vadd.f32 %v3648, %v3808
        %v3810 = vpop.f32.mrb[0].mxu0
        %v3811 = vpop.f32.mrb[0].mxu0
        %v3812 = vadd.f32 %v3651, %v3811
        %v3813 = vpop.f32.mrb[0].mxu0
        %3814 = vmatprep.mubr.bf16.mxu0 %v2118
        %3815 = vmatmul.mubr.bf16.gmra.mrb[0].mxu0 %v2008
        %v3816 = vpop.f32.mrb[0].mxu0
        %v3817 = vadd.f32 %v3656, %v3816
        %v3818 = vpop.f32.mrb[0].mxu0
        %v3819 = vpop.f32.mrb[0].mxu0
        %v3820 = vadd.f32 %v3659, %v3819
        %v3821 = vpop.f32.mrb[0].mxu0
        %3822 = vmatprep.mubr.bf16.mxu0 %v2119
        %3823 = vmatmul.mubr.bf16.gmra.mrb[0].mxu0 %v2011
        %v3824 = vpop.f32.mrb[0].mxu0
        %v3825 = vadd.f32 %v3664, %v3824
        %v3826 = vpop.f32.mrb[0].mxu0
        %v3827 = vpop.f32.mrb[0].mxu0
        %v3828 = vadd.f32 %v3667, %v3827
        %v3829 = vpop.f32.mrb[0].mxu0
        %3830 = vmatprep.mubr.bf16.mxu0 %v2120
        %3831 = vmatmul.mubr.bf16.gmra.mrb[0].mxu0 %v2014
        %v3832 = vpop.f32.mrb[0].mxu0
        %v3833 = vadd.f32 %v3672, %v3832
        %v3834 = vpop.f32.mrb[0].mxu0
        %v3835 = vpop.f32.mrb[0].mxu0
        %v3836 = vadd.f32 %v3675, %v3835
        %v3837 = vpop.f32.mrb[0].mxu0
        %3838 = vmatprep.mubr.bf16.mxu0 %v2121
        %3839 = vmatmul.mubr.bf16.gmra.mrb[0].mxu0 %v2017
        %v3840 = vpop.f32.mrb[0].mxu0
        %v3841 = vadd.f32 %v3680, %v3840
        %v3842 = vpop.f32.mrb[0].mxu0
        %v3843 = vpop.f32.mrb[0].mxu0
        %v3844 = vadd.f32 %v3683, %v3843
        %v3845 = vpop.f32.mrb[0].mxu0
        %3846 = vmatprep.mubr.bf16.mxu0 %v2122
        %3847 = vmatmul.mubr.bf16.gmra.mrb[0].mxu0 %v2020
        %v3848 = vpop.f32.mrb[0].mxu0
        %v3849 = vadd.f32 %v3688, %v3848
        %v3850 = vpop.f32.mrb[0].mxu0
        %v3851 = vpop.f32.mrb[0].mxu0
        %v3852 = vadd.f32 %v3691, %v3851
        %v3853 = vpop.f32.mrb[0].mxu0
        %3854 = vmatprep.mubr.bf16.mxu0 %v2123
        %3855 = vmatmul.mubr.bf16.gmra.mrb[0].mxu0 %v2023
        %v3856 = vpop.f32.mrb[0].mxu0
        %v3857 = vadd.f32 %v3696, %v3856
        %v3858 = vpop.f32.mrb[0].mxu0
        %v3859 = vpop.f32.mrb[0].mxu0
        %v3860 = vadd.f32 %v3699, %v3859
        %v3861 = vpop.f32.mrb[0].mxu0
        %3862 = vmatprep.mubr.bf16.mxu0 %v2124
        %3863 = vmatmul.mubr.bf16.gmra.mrb[0].mxu0 %v2026
        %v3864 = vpop.f32.mrb[0].mxu0
        %v3865 = vadd.f32 %v3704, %v3864
        %v3866 = vpop.f32.mrb[0].mxu0
        %v3867 = vpop.f32.mrb[0].mxu0
        %v3868 = vadd.f32 %v3707, %v3867
        %v3869 = vpop.f32.mrb[0].mxu0
        %3870 = vmatprep.mubr.bf16.mxu0 %v2125
        %3871 = vmatmul.mubr.bf16.gmra.mrb[0].mxu0 %v2029
        %v3872 = vpop.f32.mrb[0].mxu0
        %v3873 = vadd.f32 %v3712, %v3872
        %v3874 = vpop.f32.mrb[0].mxu0
        %v3875 = vpop.f32.mrb[0].mxu0
        %v3876 = vadd.f32 %v3715, %v3875
        %v3877 = vpop.f32.mrb[0].mxu0
        %3878 = vdwg.mxu0
        %3879 = vmatprep.subr.bf16.mxu0 0
        %3880 = vmatpush1.bf16.msra.mxu0 %v3445
        %3881 = vmatprep.subr.bf16.mxu0 0
        %3882 = vmatpush1.bf16.msra.mxu0 %v3446
        %3883 = vmatprep.subr.bf16.mxu0 0
        %3884 = vmatpush1.bf16.msra.mxu0 %v3447
        %3885 = vmatprep.subr.bf16.mxu0 0
        %3886 = vmatpush1.bf16.msra.mxu0 %v3448
        %3887 = vmatprep.subr.bf16.mxu0 0
        %3888 = vmatpush1.bf16.msra.mxu0 %v3449
        %3889 = vmatprep.subr.bf16.mxu0 0
        %3890 = vmatpush1.bf16.msra.mxu0 %v3450
        %3891 = vmatprep.subr.bf16.mxu0 0
        %3892 = vmatpush1.bf16.msra.mxu0 %v3451
        %3893 = vmatprep.subr.bf16.mxu0 0
        %3894 = vmatpush1.bf16.msra.mxu0 %v3452
        %3895 = vmatprep.subr.bf16.mxu0 0
        %3896 = vmatpush1.bf16.msra.mxu0 %v3453
        %3897 = vmatprep.subr.bf16.mxu0 0
        %3898 = vmatpush1.bf16.msra.mxu0 %v3454
        %3899 = vmatprep.subr.bf16.mxu0 0
        %3900 = vmatpush1.bf16.msra.mxu0 %v3455
        %3901 = vmatprep.subr.bf16.mxu0 0
        %3902 = vmatpush1.bf16.msra.mxu0 %v3456
        %3903 = vmatprep.subr.bf16.mxu0 0
        %3904 = vmatpush1.bf16.msra.mxu0 %v3457
        %3905 = vmatprep.subr.bf16.mxu0 0
        %3906 = vmatpush1.bf16.msra.mxu0 %v3458
        %3907 = vmatprep.subr.bf16.mxu0 0
        %3908 = vmatpush1.bf16.msra.mxu0 %v3459
        %3909 = vmatprep.subr.bf16.mxu0 0
        %3910 = vmatpush1.bf16.msra.mxu0 %v3460
        %3911 = vmatprep.mubr.bf16.mxu0 %v2448
        %3912 = vmatmul.mubr.bf16.gmra.mrb[0].mxu0 %v2201
        %v3913 = vpop.f32.mrb[0].mxu0
        %v3914 = vadd.f32 %v3753, %v3913
        %v3915 = vpop.f32.mrb[0].mxu0
        %v3916 = vpop.f32.mrb[0].mxu0
        %v3917 = vadd.f32 %v3756, %v3916
        %v3918 = vpop.f32.mrb[0].mxu0
        %3919 = vmatprep.mubr.bf16.mxu0 %v2451
        %3920 = vmatmul.mubr.bf16.gmra.mrb[0].mxu0 %v2213
        %v3921 = vpop.f32.mrb[0].mxu0
        %v3922 = vadd.f32 %v3761, %v3921
        %v3923 = vpop.f32.mrb[0].mxu0
        %v3924 = vpop.f32.mrb[0].mxu0
        %v3925 = vadd.f32 %v3764, %v3924
        %v3926 = vpop.f32.mrb[0].mxu0
        %3927 = vmatprep.mubr.bf16.mxu0 %v2454
        %3928 = vmatmul.mubr.bf16.gmra.mrb[0].mxu0 %v2225
        %v3929 = vpop.f32.mrb[0].mxu0
        %v3930 = vadd.f32 %v3769, %v3929
        %v3931 = vpop.f32.mrb[0].mxu0
        %v3932 = vpop.f32.mrb[0].mxu0
        %v3933 = vadd.f32 %v3772, %v3932
        %v3934 = vpop.f32.mrb[0].mxu0
        %3935 = vmatprep.mubr.bf16.mxu0 %v2457
        %3936 = vmatmul.mubr.bf16.gmra.mrb[0].mxu0 %v2237
        %v3937 = vpop.f32.mrb[0].mxu0
        %v3938 = vadd.f32 %v3777, %v3937
        %v3939 = vpop.f32.mrb[0].mxu0
        %v3940 = vpop.f32.mrb[0].mxu0
        %v3941 = vadd.f32 %v3780, %v3940
        %v3942 = vpop.f32.mrb[0].mxu0
        %3943 = vmatprep.mubr.bf16.mxu0 %v2460
        %3944 = vmatmul.mubr.bf16.gmra.mrb[0].mxu0 %v2249
        %v3945 = vpop.f32.mrb[0].mxu0
        %v3946 = vadd.f32 %v3785, %v3945
        %v3947 = vpop.f32.mrb[0].mxu0
        %v3948 = vpop.f32.mrb[0].mxu0
        %v3949 = vadd.f32 %v3788, %v3948
        %v3950 = vpop.f32.mrb[0].mxu0
        %3951 = vmatprep.mubr.bf16.mxu0 %v2463
        %3952 = vmatmul.mubr.bf16.gmra.mrb[0].mxu0 %v2261
        %v3953 = vpop.f32.mrb[0].mxu0
        %v3954 = vadd.f32 %v3793, %v3953
        %v3955 = vpop.f32.mrb[0].mxu0
        %v3956 = vpop.f32.mrb[0].mxu0
        %v3957 = vadd.f32 %v3796, %v3956
        %v3958 = vpop.f32.mrb[0].mxu0
        %3959 = vmatprep.mubr.bf16.mxu0 %v2466
        %3960 = vmatmul.mubr.bf16.gmra.mrb[0].mxu0 %v2273
        %v3961 = vpop.f32.mrb[0].mxu0
        %v3962 = vadd.f32 %v3801, %v3961
        %v3963 = vpop.f32.mrb[0].mxu0
        %v3964 = vpop.f32.mrb[0].mxu0
        %v3965 = vadd.f32 %v3804, %v3964
        %v3966 = vpop.f32.mrb[0].mxu0
        %3967 = vmatprep.mubr.bf16.mxu0 %v2469
        %3968 = vmatmul.mubr.bf16.gmra.mrb[0].mxu0 %v2285
        %v3969 = vpop.f32.mrb[0].mxu0
        %v3970 = vadd.f32 %v3809, %v3969
        %v3971 = vpop.f32.mrb[0].mxu0
        %v3972 = vpop.f32.mrb[0].mxu0
        %v3973 = vadd.f32 %v3812, %v3972
        %v3974 = vpop.f32.mrb[0].mxu0
        %3975 = vmatprep.mubr.bf16.mxu0 %v2472
        %3976 = vmatmul.mubr.bf16.gmra.mrb[0].mxu0 %v2297
        %v3977 = vpop.f32.mrb[0].mxu0
        %v3978 = vadd.f32 %v3817, %v3977
        %v3979 = vpop.f32.mrb[0].mxu0
        %v3980 = vpop.f32.mrb[0].mxu0
        %v3981 = vadd.f32 %v3820, %v3980
        %v3982 = vpop.f32.mrb[0].mxu0
        %3983 = vmatprep.mubr.bf16.mxu0 %v2475
        %3984 = vmatmul.mubr.bf16.gmra.mrb[0].mxu0 %v2309
        %v3985 = vpop.f32.mrb[0].mxu0
        %v3986 = vadd.f32 %v3825, %v3985
        %v3987 = vpop.f32.mrb[0].mxu0
        %v3988 = vpop.f32.mrb[0].mxu0
        %v3989 = vadd.f32 %v3828, %v3988
        %v3990 = vpop.f32.mrb[0].mxu0
        %3991 = vmatprep.mubr.bf16.mxu0 %v2478
        %3992 = vmatmul.mubr.bf16.gmra.mrb[0].mxu0 %v2321
        %v3993 = vpop.f32.mrb[0].mxu0
        %v3994 = vadd.f32 %v3833, %v3993
        %v3995 = vpop.f32.mrb[0].mxu0
        %v3996 = vpop.f32.mrb[0].mxu0
        %v3997 = vadd.f32 %v3836, %v3996
        %v3998 = vpop.f32.mrb[0].mxu0
        %3999 = vmatprep.mubr.bf16.mxu0 %v2481
        %4000 = vmatmul.mubr.bf16.gmra.mrb[0].mxu0 %v2333
        %v4001 = vpop.f32.mrb[0].mxu0
        %v4002 = vadd.f32 %v3841, %v4001
        %v4003 = vpop.f32.mrb[0].mxu0
        %v4004 = vpop.f32.mrb[0].mxu0
        %v4005 = vadd.f32 %v3844, %v4004
        %v4006 = vpop.f32.mrb[0].mxu0
        %4007 = vmatprep.mubr.bf16.mxu0 %v2484
        %4008 = vmatmul.mubr.bf16.gmra.mrb[0].mxu0 %v2345
        %v4009 = vpop.f32.mrb[0].mxu0
        %v4010 = vadd.f32 %v3849, %v4009
        %v4011 = vpop.f32.mrb[0].mxu0
        %v4012 = vpop.f32.mrb[0].mxu0
        %v4013 = vadd.f32 %v3852, %v4012
        %v4014 = vpop.f32.mrb[0].mxu0
        %4015 = vmatprep.mubr.bf16.mxu0 %v2487
        %4016 = vmatmul.mubr.bf16.gmra.mrb[0].mxu0 %v2357
        %v4017 = vpop.f32.mrb[0].mxu0
        %v4018 = vadd.f32 %v3857, %v4017
        %v4019 = vpop.f32.mrb[0].mxu0
        %v4020 = vpop.f32.mrb[0].mxu0
        %v4021 = vadd.f32 %v3860, %v4020
        %v4022 = vpop.f32.mrb[0].mxu0
        %4023 = vmatprep.mubr.bf16.mxu0 %v2490
        %4024 = vmatmul.mubr.bf16.gmra.mrb[0].mxu0 %v2369
        %v4025 = vpop.f32.mrb[0].mxu0
        %v4026 = vadd.f32 %v3865, %v4025
        %v4027 = vpop.f32.mrb[0].mxu0
        %v4028 = vpop.f32.mrb[0].mxu0
        %v4029 = vadd.f32 %v3868, %v4028
        %v4030 = vpop.f32.mrb[0].mxu0
        %4031 = vmatprep.mubr.bf16.mxu0 %v2493
        %4032 = vmatmul.mubr.bf16.gmra.mrb[0].mxu0 %v2381
        %v4033 = vpop.f32.mrb[0].mxu0
        %v4034 = vadd.f32 %v3873, %v4033
        %v4035 = vpop.f32.mrb[0].mxu0
        %v4036 = vpop.f32.mrb[0].mxu0
        %v4037 = vadd.f32 %v3876, %v4036
        %v4038 = vpop.f32.mrb[0].mxu0
        %4039 = vdwg.mxu0
        %4040 = vmatprep.subr.bf16.mxu0 0
        %4041 = vmatpush1.bf16.msra.mxu0 %v3461
        %4042 = vmatprep.subr.bf16.mxu0 0
        %4043 = vmatpush1.bf16.msra.mxu0 %v3462
        %4044 = vmatprep.subr.bf16.mxu0 0
        %4045 = vmatpush1.bf16.msra.mxu0 %v3463
        %4046 = vmatprep.subr.bf16.mxu0 0
        %4047 = vmatpush1.bf16.msra.mxu0 %v3464
        %4048 = vmatprep.subr.bf16.mxu0 0
        %4049 = vmatpush1.bf16.msra.mxu0 %v3465
        %4050 = vmatprep.subr.bf16.mxu0 0
        %4051 = vmatpush1.bf16.msra.mxu0 %v3466
        %4052 = vmatprep.subr.bf16.mxu0 0
        %4053 = vmatpush1.bf16.msra.mxu0 %v3467
        %4054 = vmatprep.subr.bf16.mxu0 0
        %4055 = vmatpush1.bf16.msra.mxu0 %v3468
        %4056 = vmatprep.subr.bf16.mxu0 0
        %4057 = vmatpush1.bf16.msra.mxu0 %v3469
        %4058 = vmatprep.subr.bf16.mxu0 0
        %4059 = vmatpush1.bf16.msra.mxu0 %v3470
        %4060 = vmatprep.subr.bf16.mxu0 0
        %4061 = vmatpush1.bf16.msra.mxu0 %v3471
        %4062 = vmatprep.subr.bf16.mxu0 0
        %4063 = vmatpush1.bf16.msra.mxu0 %v3472
        %4064 = vmatprep.subr.bf16.mxu0 0
        %4065 = vmatpush1.bf16.msra.mxu0 %v3473
        %4066 = vmatprep.subr.bf16.mxu0 0
        %4067 = vmatpush1.bf16.msra.mxu0 %v3474
        %4068 = vmatprep.subr.bf16.mxu0 0
        %4069 = vmatpush1.bf16.msra.mxu0 %v3475
        %4070 = vmatprep.subr.bf16.mxu0 0
        %4071 = vmatpush1.bf16.msra.mxu0 %v3476
        %4072 = vmatprep.mubr.bf16.mxu0 %v2665
        %4073 = vmatmul.mubr.bf16.gmra.mrb[0].mxu0 %v2574
        %v4074 = vpop.f32.mrb[0].mxu0
        %v4075 = vadd.f32 %v3914, %v4074
        %v4076 = vpop.f32.mrb[0].mxu0
        %v4077 = vpop.f32.mrb[0].mxu0
        %v4078 = vadd.f32 %v3917, %v4077
        %v4079 = vpop.f32.mrb[0].mxu0
        %4080 = vmatprep.mubr.bf16.mxu0 %v2677
        %4081 = vmatmul.mubr.bf16.gmra.mrb[0].mxu0 %v2575
        %v4082 = vpop.f32.mrb[0].mxu0
        %v4083 = vadd.f32 %v3922, %v4082
        %v4084 = vpop.f32.mrb[0].mxu0
        %v4085 = vpop.f32.mrb[0].mxu0
        %v4086 = vadd.f32 %v3925, %v4085
        %v4087 = vpop.f32.mrb[0].mxu0
        %4088 = vmatprep.mubr.bf16.mxu0 %v2689
        %4089 = vmatmul.mubr.bf16.gmra.mrb[0].mxu0 %v2576
        %v4090 = vpop.f32.mrb[0].mxu0
        %v4091 = vadd.f32 %v3930, %v4090
        %v4092 = vpop.f32.mrb[0].mxu0
        %v4093 = vpop.f32.mrb[0].mxu0
        %v4094 = vadd.f32 %v3933, %v4093
        %v4095 = vpop.f32.mrb[0].mxu0
        %4096 = vmatprep.mubr.bf16.mxu0 %v2701
        %4097 = vmatmul.mubr.bf16.gmra.mrb[0].mxu0 %v2577
        %v4098 = vpop.f32.mrb[0].mxu0
        %v4099 = vadd.f32 %v3938, %v4098
        %v4100 = vpop.f32.mrb[0].mxu0
        %v4101 = vpop.f32.mrb[0].mxu0
        %v4102 = vadd.f32 %v3941, %v4101
        %v4103 = vpop.f32.mrb[0].mxu0
        %4104 = vmatprep.mubr.bf16.mxu0 %v2713
        %4105 = vmatmul.mubr.bf16.gmra.mrb[0].mxu0 %v2578
        %v4106 = vpop.f32.mrb[0].mxu0
        %v4107 = vadd.f32 %v3946, %v4106
        %v4108 = vpop.f32.mrb[0].mxu0
        %v4109 = vpop.f32.mrb[0].mxu0
        %v4110 = vadd.f32 %v3949, %v4109
        %v4111 = vpop.f32.mrb[0].mxu0
        %4112 = vmatprep.mubr.bf16.mxu0 %v2725
        %4113 = vmatmul.mubr.bf16.gmra.mrb[0].mxu0 %v2579
        %v4114 = vpop.f32.mrb[0].mxu0
        %v4115 = vadd.f32 %v3954, %v4114
        %v4116 = vpop.f32.mrb[0].mxu0
        %v4117 = vpop.f32.mrb[0].mxu0
        %v4118 = vadd.f32 %v3957, %v4117
        %v4119 = vpop.f32.mrb[0].mxu0
        %4120 = vmatprep.mubr.bf16.mxu0 %v2737
        %4121 = vmatmul.mubr.bf16.gmra.mrb[0].mxu0 %v2580
        %v4122 = vpop.f32.mrb[0].mxu0
        %v4123 = vadd.f32 %v3962, %v4122
        %v4124 = vpop.f32.mrb[0].mxu0
        %v4125 = vpop.f32.mrb[0].mxu0
        %v4126 = vadd.f32 %v3965, %v4125
        %v4127 = vpop.f32.mrb[0].mxu0
        %4128 = vmatprep.mubr.bf16.mxu0 %v2749
        %4129 = vmatmul.mubr.bf16.gmra.mrb[0].mxu0 %v2581
        %v4130 = vpop.f32.mrb[0].mxu0
        %v4131 = vadd.f32 %v3970, %v4130
        %v4132 = vpop.f32.mrb[0].mxu0
        %v4133 = vpop.f32.mrb[0].mxu0
        %v4134 = vadd.f32 %v3973, %v4133
        %v4135 = vpop.f32.mrb[0].mxu0
        %4136 = vmatprep.mubr.bf16.mxu0 %v2761
        %4137 = vmatmul.mubr.bf16.gmra.mrb[0].mxu0 %v2582
        %v4138 = vpop.f32.mrb[0].mxu0
        %v4139 = vadd.f32 %v3978, %v4138
        %v4140 = vpop.f32.mrb[0].mxu0
        %v4141 = vpop.f32.mrb[0].mxu0
        %v4142 = vadd.f32 %v3981, %v4141
        %v4143 = vpop.f32.mrb[0].mxu0
        %4144 = vmatprep.mubr.bf16.mxu0 %v2773
        %4145 = vmatmul.mubr.bf16.gmra.mrb[0].mxu0 %v2583
        %v4146 = vpop.f32.mrb[0].mxu0
        %v4147 = vadd.f32 %v3986, %v4146
        %v4148 = vpop.f32.mrb[0].mxu0
        %v4149 = vpop.f32.mrb[0].mxu0
        %v4150 = vadd.f32 %v3989, %v4149
        %v4151 = vpop.f32.mrb[0].mxu0
        %4152 = vmatprep.mubr.bf16.mxu0 %v2785
        %4153 = vmatmul.mubr.bf16.gmra.mrb[0].mxu0 %v2584
        %v4154 = vpop.f32.mrb[0].mxu0
        %v4155 = vadd.f32 %v3994, %v4154
        %v4156 = vpop.f32.mrb[0].mxu0
        %v4157 = vpop.f32.mrb[0].mxu0
        %v4158 = vadd.f32 %v3997, %v4157
        %v4159 = vpop.f32.mrb[0].mxu0
        %4160 = vmatprep.mubr.bf16.mxu0 %v2797
        %4161 = vmatmul.mubr.bf16.gmra.mrb[0].mxu0 %v2585
        %v4162 = vpop.f32.mrb[0].mxu0
        %v4163 = vadd.f32 %v4002, %v4162
        %v4164 = vpop.f32.mrb[0].mxu0
        %v4165 = vpop.f32.mrb[0].mxu0
        %v4166 = vadd.f32 %v4005, %v4165
        %v4167 = vpop.f32.mrb[0].mxu0
        %4168 = vmatprep.mubr.bf16.mxu0 %v2809
        %4169 = vmatmul.mubr.bf16.gmra.mrb[0].mxu0 %v2586
        %v4170 = vpop.f32.mrb[0].mxu0
        %v4171 = vadd.f32 %v4010, %v4170
        %v4172 = vpop.f32.mrb[0].mxu0
        %v4173 = vpop.f32.mrb[0].mxu0
        %v4174 = vadd.f32 %v4013, %v4173
        %v4175 = vpop.f32.mrb[0].mxu0
        %4176 = vmatprep.mubr.bf16.mxu0 %v2821
        %4177 = vmatmul.mubr.bf16.gmra.mrb[0].mxu0 %v2587
        %v4178 = vpop.f32.mrb[0].mxu0
        %v4179 = vadd.f32 %v4018, %v4178
        %v4180 = vpop.f32.mrb[0].mxu0
        %v4181 = vpop.f32.mrb[0].mxu0
        %v4182 = vadd.f32 %v4021, %v4181
        %v4183 = vpop.f32.mrb[0].mxu0
        %4184 = vmatprep.mubr.bf16.mxu0 %v2833
        %4185 = vmatmul.mubr.bf16.gmra.mrb[0].mxu0 %v2588
        %v4186 = vpop.f32.mrb[0].mxu0
        %v4187 = vadd.f32 %v4026, %v4186
        %v4188 = vpop.f32.mrb[0].mxu0
        %v4189 = vpop.f32.mrb[0].mxu0
        %v4190 = vadd.f32 %v4029, %v4189
        %v4191 = vpop.f32.mrb[0].mxu0
        %4192 = vmatprep.mubr.bf16.mxu0 %v2845
        %4193 = vmatmul.mubr.bf16.gmra.mrb[0].mxu0 %v2589
        %v4194 = vpop.f32.mrb[0].mxu0
        %v4195 = vadd.f32 %v4034, %v4194
        %v4196 = vpop.f32.mrb[0].mxu0
        %v4197 = vpop.f32.mrb[0].mxu0
        %v4198 = vadd.f32 %v4037, %v4197
        %v4199 = vpop.f32.mrb[0].mxu0
        %4200 = vdwg.mxu0
        %4201 = vmatprep.subr.bf16.mxu0 0
        %4202 = vmatpush1.bf16.msra.mxu0 %v3477
        %4203 = vmatprep.subr.bf16.mxu0 0
        %4204 = vmatpush1.bf16.msra.mxu0 %v3478
        %4205 = vmatprep.subr.bf16.mxu0 0
        %4206 = vmatpush1.bf16.msra.mxu0 %v3479
        %4207 = vmatprep.subr.bf16.mxu0 0
        %4208 = vmatpush1.bf16.msra.mxu0 %v3480
        %4209 = vmatprep.subr.bf16.mxu0 0
        %4210 = vmatpush1.bf16.msra.mxu0 %v3481
        %4211 = vmatprep.subr.bf16.mxu0 0
        %4212 = vmatpush1.bf16.msra.mxu0 %v3482
        %4213 = vmatprep.subr.bf16.mxu0 0
        %4214 = vmatpush1.bf16.msra.mxu0 %v3483
        %4215 = vmatprep.subr.bf16.mxu0 0
        %4216 = vmatpush1.bf16.msra.mxu0 %v3484
        %4217 = vmatprep.subr.bf16.mxu0 0
        %4218 = vmatpush1.bf16.msra.mxu0 0
        %4219 = vmatprep.subr.bf16.mxu0 0
        %4220 = vmatpush1.bf16.msra.mxu0 0
        %4221 = vmatprep.subr.bf16.mxu0 0
        %4222 = vmatpush1.bf16.msra.mxu0 0
        %4223 = vmatprep.subr.bf16.mxu0 0
        %4224 = vmatpush1.bf16.msra.mxu0 0
        %4225 = vmatprep.subr.bf16.mxu0 0
        %4226 = vmatpush1.bf16.msra.mxu0 0
        %4227 = vmatprep.subr.bf16.mxu0 0
        %4228 = vmatpush1.bf16.msra.mxu0 0
        %4229 = vmatprep.subr.bf16.mxu0 0
        %4230 = vmatpush1.bf16.msra.mxu0 0
        %4231 = vmatprep.subr.bf16.mxu0 0
        %4232 = vmatpush1.bf16.msra.mxu0 0
        %4233 = vmatprep.mubr.bf16.mxu0 0
        %4234 = vmatmul.mubr.bf16.gmra.mrb[0].mxu0 %v2912
        %v4235 = vpop.f32.mrb[0].mxu0
        %v4236 = vadd.f32 %v4075, %v4235
        %v4237 = vpop.f32.mrb[0].mxu0
        %v4238 = vpop.f32.mrb[0].mxu0
        %v4239 = vadd.f32 %v4078, %v4238
        %v4240 = vpop.f32.mrb[0].mxu0
        %4241 = vmatprep.mubr.bf16.mxu0 0
        %4242 = vmatmul.mubr.bf16.gmra.mrb[0].mxu0 %v2915
        %v4243 = vpop.f32.mrb[0].mxu0
        %v4244 = vadd.f32 %v4083, %v4243
        %v4245 = vpop.f32.mrb[0].mxu0
        %v4246 = vpop.f32.mrb[0].mxu0
        %v4247 = vadd.f32 %v4086, %v4246
        %v4248 = vpop.f32.mrb[0].mxu0
        %4249 = vmatprep.mubr.bf16.mxu0 0
        %4250 = vmatmul.mubr.bf16.gmra.mrb[0].mxu0 %v2918
        %v4251 = vpop.f32.mrb[0].mxu0
        %v4252 = vadd.f32 %v4091, %v4251
        %v4253 = vpop.f32.mrb[0].mxu0
        %v4254 = vpop.f32.mrb[0].mxu0
        %v4255 = vadd.f32 %v4094, %v4254
        %v4256 = vpop.f32.mrb[0].mxu0
        %4257 = vmatprep.mubr.bf16.mxu0 0
        %4258 = vmatmul.mubr.bf16.gmra.mrb[0].mxu0 %v2921
        %v4259 = vpop.f32.mrb[0].mxu0
        %v4260 = vadd.f32 %v4099, %v4259
        %v4261 = vpop.f32.mrb[0].mxu0
        %v4262 = vpop.f32.mrb[0].mxu0
        %v4263 = vadd.f32 %v4102, %v4262
        %v4264 = vpop.f32.mrb[0].mxu0
        %4265 = vmatprep.mubr.bf16.mxu0 0
        %4266 = vmatmul.mubr.bf16.gmra.mrb[0].mxu0 %v2924
        %v4267 = vpop.f32.mrb[0].mxu0
        %v4268 = vadd.f32 %v4107, %v4267
        %v4269 = vpop.f32.mrb[0].mxu0
        %v4270 = vpop.f32.mrb[0].mxu0
        %v4271 = vadd.f32 %v4110, %v4270
        %v4272 = vpop.f32.mrb[0].mxu0
        %4273 = vmatprep.mubr.bf16.mxu0 0
        %4274 = vmatmul.mubr.bf16.gmra.mrb[0].mxu0 %v2927
        %v4275 = vpop.f32.mrb[0].mxu0
        %v4276 = vadd.f32 %v4115, %v4275
        %v4277 = vpop.f32.mrb[0].mxu0
        %v4278 = vpop.f32.mrb[0].mxu0
        %v4279 = vadd.f32 %v4118, %v4278
        %v4280 = vpop.f32.mrb[0].mxu0
        %4281 = vmatprep.mubr.bf16.mxu0 0
        %4282 = vmatmul.mubr.bf16.gmra.mrb[0].mxu0 %v2930
        %v4283 = vpop.f32.mrb[0].mxu0
        %v4284 = vadd.f32 %v4123, %v4283
        %v4285 = vpop.f32.mrb[0].mxu0
        %v4286 = vpop.f32.mrb[0].mxu0
        %v4287 = vadd.f32 %v4126, %v4286
        %v4288 = vpop.f32.mrb[0].mxu0
        %4289 = vmatprep.mubr.bf16.mxu0 0
        %4290 = vmatmul.mubr.bf16.gmra.mrb[0].mxu0 %v2933
        %v4291 = vpop.f32.mrb[0].mxu0
        %v4292 = vadd.f32 %v4131, %v4291
        %v4293 = vpop.f32.mrb[0].mxu0
        %v4294 = vpop.f32.mrb[0].mxu0
        %v4295 = vadd.f32 %v4134, %v4294
        %v4296 = vpop.f32.mrb[0].mxu0
        %4297 = vmatprep.mubr.bf16.mxu0 0
        %4298 = vmatmul.mubr.bf16.gmra.mrb[0].mxu0 %v2936
        %v4299 = vpop.f32.mrb[0].mxu0
        %v4300 = vadd.f32 %v4139, %v4299
        %v4301 = vpop.f32.mrb[0].mxu0
        %v4302 = vpop.f32.mrb[0].mxu0
        %v4303 = vadd.f32 %v4142, %v4302
        %v4304 = vpop.f32.mrb[0].mxu0
        %4305 = vmatprep.mubr.bf16.mxu0 0
        %4306 = vmatmul.mubr.bf16.gmra.mrb[0].mxu0 %v2939
        %v4307 = vpop.f32.mrb[0].mxu0
        %v4308 = vadd.f32 %v4147, %v4307
        %v4309 = vpop.f32.mrb[0].mxu0
        %v4310 = vpop.f32.mrb[0].mxu0
        %v4311 = vadd.f32 %v4150, %v4310
        %v4312 = vpop.f32.mrb[0].mxu0
        %4313 = vmatprep.mubr.bf16.mxu0 0
        %4314 = vmatmul.mubr.bf16.gmra.mrb[0].mxu0 %v2942
        %v4315 = vpop.f32.mrb[0].mxu0
        %v4316 = vadd.f32 %v4155, %v4315
        %v4317 = vpop.f32.mrb[0].mxu0
        %v4318 = vpop.f32.mrb[0].mxu0
        %v4319 = vadd.f32 %v4158, %v4318
        %v4320 = vpop.f32.mrb[0].mxu0
        %4321 = vmatprep.mubr.bf16.mxu0 0
        %4322 = vmatmul.mubr.bf16.gmra.mrb[0].mxu0 %v2945
        %v4323 = vpop.f32.mrb[0].mxu0
        %v4324 = vadd.f32 %v4163, %v4323
        %v4325 = vpop.f32.mrb[0].mxu0
        %v4326 = vpop.f32.mrb[0].mxu0
        %v4327 = vadd.f32 %v4166, %v4326
        %v4328 = vpop.f32.mrb[0].mxu0
        %4329 = vmatprep.mubr.bf16.mxu0 0
        %4330 = vmatmul.mubr.bf16.gmra.mrb[0].mxu0 %v2948
        %v4331 = vpop.f32.mrb[0].mxu0
        %v4332 = vadd.f32 %v4171, %v4331
        %v4333 = vpop.f32.mrb[0].mxu0
        %v4334 = vpop.f32.mrb[0].mxu0
        %v4335 = vadd.f32 %v4174, %v4334
        %v4336 = vpop.f32.mrb[0].mxu0
        %4337 = vmatprep.mubr.bf16.mxu0 0
        %4338 = vmatmul.mubr.bf16.gmra.mrb[0].mxu0 %v2951
        %v4339 = vpop.f32.mrb[0].mxu0
        %v4340 = vadd.f32 %v4179, %v4339
        %v4341 = vpop.f32.mrb[0].mxu0
        %v4342 = vpop.f32.mrb[0].mxu0
        %v4343 = vadd.f32 %v4182, %v4342
        %v4344 = vpop.f32.mrb[0].mxu0
        %4345 = vmatprep.mubr.bf16.mxu0 0
        %4346 = vmatmul.mubr.bf16.gmra.mrb[0].mxu0 %v2954
        %v4347 = vpop.f32.mrb[0].mxu0
        %v4348 = vadd.f32 %v4187, %v4347
        %v4349 = vpop.f32.mrb[0].mxu0
        %v4350 = vpop.f32.mrb[0].mxu0
        %v4351 = vadd.f32 %v4190, %v4350
        %v4352 = vpop.f32.mrb[0].mxu0
        %4353 = vmatprep.mubr.bf16.mxu0 0
        %4354 = vmatmul.mubr.bf16.gmra.mrb[0].mxu0 %v2957
        %v4355 = vpop.f32.mrb[0].mxu0
        %v4356 = vadd.f32 %v4195, %v4355
        %v4357 = vpop.f32.mrb[0].mxu0
        %v4358 = vpop.f32.mrb[0].mxu0
        %v4359 = vadd.f32 %v4198, %v4358
        %v4360 = vpop.f32.mrb[0].mxu0
        %4361 = vdwg.mxu0
        %v4362 = vmax.f32 %v4236, 0.0
        %v4363 = vmax.f32 %v4239, 0.0
        %v4364 = vmax.f32 %v4244, 0.0
        %v4365 = vmax.f32 %v4247, 0.0
        %v4366 = vmax.f32 %v4252, 0.0
        %v4367 = vmax.f32 %v4255, 0.0
        %v4368 = vmax.f32 %v4260, 0.0
        %v4369 = vmax.f32 %v4263, 0.0
        %v4370 = vmax.f32 %v4268, 0.0
        %v4371 = vmax.f32 %v4271, 0.0
        %v4372 = vmax.f32 %v4276, 0.0
        %v4373 = vmax.f32 %v4279, 0.0
        %v4374 = vmax.f32 %v4284, 0.0
        %v4375 = vmax.f32 %v4287, 0.0
        %v4376 = vmax.f32 %v4292, 0.0
        %v4377 = vmax.f32 %v4295, 0.0
        %v4378 = vmax.f32 %v4300, 0.0
        %v4379 = vmax.f32 %v4303, 0.0
        %v4380 = vmax.f32 %v4308, 0.0
        %v4381 = vmax.f32 %v4311, 0.0
        %v4382 = vmax.f32 %v4316, 0.0
        %v4383 = vmax.f32 %v4319, 0.0
        %v4384 = vmax.f32 %v4324, 0.0
        %v4385 = vmax.f32 %v4327, 0.0
        %v4386 = vmax.f32 %v4332, 0.0
        %v4387 = vmax.f32 %v4335, 0.0
        %v4388 = vmax.f32 %v4340, 0.0
        %v4389 = vmax.f32 %v4343, 0.0
        %v4390 = vmax.f32 %v4348, 0.0
        %v4391 = vmax.f32 %v4351, 0.0
        %v4392 = vmax.f32 %v4356, 0.0
        %v4393 = vmax.f32 %v4359, 0.0
        %v4394 = vpack.c.bf16 %v4363, %v4362
        %v4395 = vpack.c.bf16 %v4365, %v4364
        %v4396 = vpack.c.bf16 %v4367, %v4366
        %v4397 = vpack.c.bf16 %v4369, %v4368
        %v4398 = vpack.c.bf16 %v4371, %v4370
        %v4399 = vpack.c.bf16 %v4373, %v4372
        %v4400 = vpack.c.bf16 %v4375, %v4374
        %v4401 = vpack.c.bf16 %v4377, %v4376
        %v4402 = vpack.c.bf16 %v4379, %v4378
        %v4403 = vpack.c.bf16 %v4381, %v4380
        %v4404 = vpack.c.bf16 %v4383, %v4382
        %v4405 = vpack.c.bf16 %v4385, %v4384
        %v4406 = vpack.c.bf16 %v4387, %v4386
        %v4407 = vpack.c.bf16 %v4389, %v4388
        %v4408 = vpack.c.bf16 %v4391, %v4390
        %v4409 = vpack.c.bf16 %v4393, %v4392
        %v4410 = vld [vmem:[#allocation9] sm:$0xff]
        %v4411 = vld [vmem:[#allocation9 + $0x8] sm:$0xff]
        %v4412 = vld [vmem:[#allocation9 + $0x10] sm:$0xff]
        %v4413 = vld [vmem:[#allocation9 + $0x18] sm:$0xff]
        %v4414 = vld [vmem:[#allocation9 + $0x20] sm:$0xff]
        %v4415 = vld [vmem:[#allocation9 + $0x28] sm:$0xff]
        %v4416 = vld [vmem:[#allocation9 + $0x30] sm:$0xff]
        %v4417 = vld [vmem:[#allocation9 + $0x38] sm:$0xff]
        %v4418 = vld [vmem:[#allocation9 + $0x40] sm:$0xff]
        %v4419 = vld [vmem:[#allocation9 + $0x48] sm:$0xff]
        %v4420 = vld [vmem:[#allocation9 + $0x50] sm:$0xff]
        %v4421 = vld [vmem:[#allocation9 + $0x58] sm:$0xff]
        %v4422 = vld [vmem:[#allocation9 + $0x60] sm:$0xff]
        %v4423 = vld [vmem:[#allocation9 + $0x68] sm:$0xff]
        %v4424 = vld [vmem:[#allocation9 + $0x70] sm:$0xff]
        %v4425 = vld [vmem:[#allocation9 + $0x78] sm:$0xff]
        %v4426 = vld [vmem:[#allocation9 + $0x80] sm:$0xff]
        %v4427 = vld [vmem:[#allocation9 + $0x88] sm:$0xff]
        %v4428 = vld [vmem:[#allocation9 + $0x90] sm:$0xff]
        %v4429 = vld [vmem:[#allocation9 + $0x98] sm:$0xff]
        %v4430 = vld [vmem:[#allocation9 + $0xa0] sm:$0xff]
        %v4431 = vld [vmem:[#allocation9 + $0xa8] sm:$0xff]
        %v4432 = vld [vmem:[#allocation9 + $0xb0] sm:$0xff]
        %v4433 = vld [vmem:[#allocation9 + $0xb8] sm:$0xff]
        %v4434 = vld [vmem:[#allocation9 + $0xc0] sm:$0xff]
        %v4435 = vld [vmem:[#allocation9 + $0xc8] sm:$0xff]
        %v4436 = vld [vmem:[#allocation9 + $0xd0] sm:$0xff]
        %v4437 = vld [vmem:[#allocation9 + $0xd8] sm:$0xff]
        %v4438 = vld [vmem:[#allocation9 + $0xe0] sm:$0xff]
        %v4439 = vld [vmem:[#allocation9 + $0xe8] sm:$0xff]
        %v4440 = vld [vmem:[#allocation9 + $0xf0] sm:$0xff]
        %v4441 = vld [vmem:[#allocation9 + $0xf8] sm:$0xff]
        %v4442 = vld [vmem:[%s6] sm:$0xf]
        %v4444 = vlaneseq
        %v4445 = vshrl.u32 %v4444, 7
        %v4446 = vsub.s32 0, %v4445
        %v4447 = vrot.slane %v4442, %v4446
        %v4448 = vlaneseq
        %v4449 = vshrl.u32 %v4448, 7
        %v4450 = vsub.s32 1, %v4449
        %v4451 = vrot.slane %v4442, %v4450
        %v4452 = vlaneseq
        %v4453 = vshrl.u32 %v4452, 7
        %v4454 = vsub.s32 2, %v4453
        %v4455 = vrot.slane %v4442, %v4454
        %v4456 = vlaneseq
        %v4457 = vshrl.u32 %v4456, 7
        %v4458 = vsub.s32 3, %v4457
        %v4459 = vrot.slane %v4442, %v4458
        %v4496 = vunpack.c.l.b16 %v4410
        %v4497 = vunpack.c.h.b16 %v4410
        %v4498 = vunpack.c.l.b16 %v4411
        %v4499 = vunpack.c.h.b16 %v4411
        %v4500 = vunpack.c.l.b16 %v4412
        %v4501 = vunpack.c.h.b16 %v4412
        %v4502 = vunpack.c.l.b16 %v4413
        %v4503 = vunpack.c.h.b16 %v4413
        %v4504 = vunpack.c.l.b16 %v4414
        %v4505 = vunpack.c.h.b16 %v4414
        %v4506 = vunpack.c.l.b16 %v4415
        %v4507 = vunpack.c.h.b16 %v4415
        %v4508 = vunpack.c.l.b16 %v4416
        %v4509 = vunpack.c.h.b16 %v4416
        %v4510 = vunpack.c.l.b16 %v4417
        %v4511 = vunpack.c.h.b16 %v4417
        %v4512 = vunpack.c.l.b16 %v4418
        %v4513 = vunpack.c.h.b16 %v4418
        %v4514 = vunpack.c.l.b16 %v4419
        %v4515 = vunpack.c.h.b16 %v4419
        %v4516 = vunpack.c.l.b16 %v4420
        %v4517 = vunpack.c.h.b16 %v4420
        %v4518 = vunpack.c.l.b16 %v4421
        %v4519 = vunpack.c.h.b16 %v4421
        %v4520 = vunpack.c.l.b16 %v4422
        %v4521 = vunpack.c.h.b16 %v4422
        %v4522 = vunpack.c.l.b16 %v4423
        %v4523 = vunpack.c.h.b16 %v4423
        %v4524 = vunpack.c.l.b16 %v4424
        %v4525 = vunpack.c.h.b16 %v4424
        %v4526 = vunpack.c.l.b16 %v4425
        %v4527 = vunpack.c.h.b16 %v4425
        %v4528 = vunpack.c.l.b16 %v4426
        %v4529 = vunpack.c.h.b16 %v4426
        %v4530 = vunpack.c.l.b16 %v4427
        %v4531 = vunpack.c.h.b16 %v4427
        %v4532 = vunpack.c.l.b16 %v4428
        %v4533 = vunpack.c.h.b16 %v4428
        %v4534 = vunpack.c.l.b16 %v4429
        %v4535 = vunpack.c.h.b16 %v4429
        %v4536 = vunpack.c.l.b16 %v4430
        %v4537 = vunpack.c.h.b16 %v4430
        %v4538 = vunpack.c.l.b16 %v4431
        %v4539 = vunpack.c.h.b16 %v4431
        %v4540 = vunpack.c.l.b16 %v4432
        %v4541 = vunpack.c.h.b16 %v4432
        %v4542 = vunpack.c.l.b16 %v4433
        %v4543 = vunpack.c.h.b16 %v4433
        %v4544 = vunpack.c.l.b16 %v4434
        %v4545 = vunpack.c.h.b16 %v4434
        %v4546 = vunpack.c.l.b16 %v4435
        %v4547 = vunpack.c.h.b16 %v4435
        %v4548 = vunpack.c.l.b16 %v4436
        %v4549 = vunpack.c.h.b16 %v4436
        %v4550 = vunpack.c.l.b16 %v4437
        %v4551 = vunpack.c.h.b16 %v4437
        %v4552 = vunpack.c.l.b16 %v4438
        %v4553 = vunpack.c.h.b16 %v4438
        %v4554 = vunpack.c.l.b16 %v4439
        %v4555 = vunpack.c.h.b16 %v4439
        %v4556 = vunpack.c.l.b16 %v4440
        %v4557 = vunpack.c.h.b16 %v4440
        %v4558 = vunpack.c.l.b16 %v4441
        %v4559 = vunpack.c.h.b16 %v4441
        %v4560 = vpack.c.b16 %v4500, %v4496
        %v4561 = vpack.c.b16 %v4501, %v4497
        %v4562 = vpack.c.b16 %v4502, %v4498
        %v4563 = vpack.c.b16 %v4503, %v4499
        %v4564 = vpack.c.b16 %v4508, %v4504
        %v4565 = vpack.c.b16 %v4509, %v4505
        %v4566 = vpack.c.b16 %v4510, %v4506
        %v4567 = vpack.c.b16 %v4511, %v4507
        %v4568 = vpack.c.b16 %v4516, %v4512
        %v4569 = vpack.c.b16 %v4517, %v4513
        %v4570 = vpack.c.b16 %v4518, %v4514
        %v4571 = vpack.c.b16 %v4519, %v4515
        %v4572 = vpack.c.b16 %v4524, %v4520
        %v4573 = vpack.c.b16 %v4525, %v4521
        %v4574 = vpack.c.b16 %v4526, %v4522
        %v4575 = vpack.c.b16 %v4527, %v4523
        %v4576 = vpack.c.b16 %v4532, %v4528
        %v4577 = vpack.c.b16 %v4533, %v4529
        %v4578 = vpack.c.b16 %v4534, %v4530
        %v4579 = vpack.c.b16 %v4535, %v4531
        %v4580 = vpack.c.b16 %v4540, %v4536
        %v4581 = vpack.c.b16 %v4541, %v4537
        %v4582 = vpack.c.b16 %v4542, %v4538
        %v4583 = vpack.c.b16 %v4543, %v4539
        %v4584 = vpack.c.b16 %v4548, %v4544
        %v4585 = vpack.c.b16 %v4549, %v4545
        %v4586 = vpack.c.b16 %v4550, %v4546
        %v4587 = vpack.c.b16 %v4551, %v4547
        %v4588 = vpack.c.b16 %v4556, %v4552
        %v4589 = vpack.c.b16 %v4557, %v4553
        %v4590 = vpack.c.b16 %v4558, %v4554
        %v4591 = vpack.c.b16 %v4559, %v4555
        %4624 = vmatprep.subr.bf16.mxu0 %v4561
        %4625 = vmatpush1.bf16.msra.mxu0 %v4560
        %4626 = vmatprep.subr.bf16.mxu0 %v4565
        %4627 = vmatpush1.bf16.msra.mxu0 %v4564
        %4628 = vmatprep.subr.bf16.mxu0 %v4569
        %4629 = vmatpush1.bf16.msra.mxu0 %v4568
        %4630 = vmatprep.subr.bf16.mxu0 %v4573
        %4631 = vmatpush1.bf16.msra.mxu0 %v4572
        %4632 = vmatprep.subr.bf16.mxu0 %v4577
        %4633 = vmatpush1.bf16.msra.mxu0 %v4576
        %4634 = vmatprep.subr.bf16.mxu0 %v4581
        %4635 = vmatpush1.bf16.msra.mxu0 %v4580
        %4636 = vmatprep.subr.bf16.mxu0 %v4585
        %4637 = vmatpush1.bf16.msra.mxu0 %v4584
        %4638 = vmatprep.subr.bf16.mxu0 %v4589
        %4639 = vmatpush1.bf16.msra.mxu0 %v4588
        %4640 = vmatprep.subr.bf16.mxu0 0
        %4641 = vmatpush1.bf16.msra.mxu0 0
        %4642 = vmatprep.subr.bf16.mxu0 0
        %4643 = vmatpush1.bf16.msra.mxu0 0
        %4644 = vmatprep.subr.bf16.mxu0 0
        %4645 = vmatpush1.bf16.msra.mxu0 0
        %4646 = vmatprep.subr.bf16.mxu0 0
        %4647 = vmatpush1.bf16.msra.mxu0 0
        %4648 = vmatprep.subr.bf16.mxu0 0
        %4649 = vmatpush1.bf16.msra.mxu0 0
        %4650 = vmatprep.subr.bf16.mxu0 0
        %4651 = vmatpush1.bf16.msra.mxu0 0
        %4652 = vmatprep.subr.bf16.mxu0 0
        %4653 = vmatpush1.bf16.msra.mxu0 0
        %4654 = vmatprep.subr.bf16.mxu0 0
        %4655 = vmatpush1.bf16.msra.mxu0 0
        %4656 = vmatprep.mubr.bf16.mxu0 0
        %4657 = vmatmul.mubr.bf16.gmra.mrb[0].mxu0 %v4394
        %v4658 = vpop.f32.mrb[0].mxu0
        %v4659 = vadd.f32 %v4447, %v4658
        %v4660 = vpop.f32.mrb[0].mxu0
        %v4661 = vadd.f32 %v4451, %v4660
        %v4662 = vpop.f32.mrb[0].mxu0
        %v4663 = vadd.f32 %v4447, %v4662
        %v4664 = vpop.f32.mrb[0].mxu0
        %v4665 = vadd.f32 %v4451, %v4664
        %4666 = vmatprep.mubr.bf16.mxu0 0
        %4667 = vmatmul.mubr.bf16.gmra.mrb[0].mxu0 %v4395
        %v4668 = vpop.f32.mrb[0].mxu0
        %v4669 = vadd.f32 %v4447, %v4668
        %v4670 = vpop.f32.mrb[0].mxu0
        %v4671 = vadd.f32 %v4451, %v4670
        %v4672 = vpop.f32.mrb[0].mxu0
        %v4673 = vadd.f32 %v4447, %v4672
        %v4674 = vpop.f32.mrb[0].mxu0
        %v4675 = vadd.f32 %v4451, %v4674
        %4676 = vmatprep.mubr.bf16.mxu0 0
        %4677 = vmatmul.mubr.bf16.gmra.mrb[0].mxu0 %v4396
        %v4678 = vpop.f32.mrb[0].mxu0
        %v4679 = vadd.f32 %v4447, %v4678
        %v4680 = vpop.f32.mrb[0].mxu0
        %v4681 = vadd.f32 %v4451, %v4680
        %v4682 = vpop.f32.mrb[0].mxu0
        %v4683 = vadd.f32 %v4447, %v4682
        %v4684 = vpop.f32.mrb[0].mxu0
        %v4685 = vadd.f32 %v4451, %v4684
        %4686 = vmatprep.mubr.bf16.mxu0 0
        %4687 = vmatmul.mubr.bf16.gmra.mrb[0].mxu0 %v4397
        %v4688 = vpop.f32.mrb[0].mxu0
        %v4689 = vadd.f32 %v4447, %v4688
        %v4690 = vpop.f32.mrb[0].mxu0
        %v4691 = vadd.f32 %v4451, %v4690
        %v4692 = vpop.f32.mrb[0].mxu0
        %v4693 = vadd.f32 %v4447, %v4692
        %v4694 = vpop.f32.mrb[0].mxu0
        %v4695 = vadd.f32 %v4451, %v4694
        %4696 = vmatprep.mubr.bf16.mxu0 0
        %4697 = vmatmul.mubr.bf16.gmra.mrb[0].mxu0 %v4398
        %v4698 = vpop.f32.mrb[0].mxu0
        %v4699 = vadd.f32 %v4447, %v4698
        %v4700 = vpop.f32.mrb[0].mxu0
        %v4701 = vadd.f32 %v4451, %v4700
        %v4702 = vpop.f32.mrb[0].mxu0
        %v4703 = vadd.f32 %v4447, %v4702
        %v4704 = vpop.f32.mrb[0].mxu0
        %v4705 = vadd.f32 %v4451, %v4704
        %4706 = vmatprep.mubr.bf16.mxu0 0
        %4707 = vmatmul.mubr.bf16.gmra.mrb[0].mxu0 %v4399
        %v4708 = vpop.f32.mrb[0].mxu0
        %v4709 = vadd.f32 %v4447, %v4708
        %v4710 = vpop.f32.mrb[0].mxu0
        %v4711 = vadd.f32 %v4451, %v4710
        %v4712 = vpop.f32.mrb[0].mxu0
        %v4713 = vadd.f32 %v4447, %v4712
        %v4714 = vpop.f32.mrb[0].mxu0
        %v4715 = vadd.f32 %v4451, %v4714
        %4716 = vmatprep.mubr.bf16.mxu0 0
        %4717 = vmatmul.mubr.bf16.gmra.mrb[0].mxu0 %v4400
        %v4718 = vpop.f32.mrb[0].mxu0
        %v4719 = vadd.f32 %v4447, %v4718
        %v4720 = vpop.f32.mrb[0].mxu0
        %v4721 = vadd.f32 %v4451, %v4720
        %v4722 = vpop.f32.mrb[0].mxu0
        %v4723 = vadd.f32 %v4447, %v4722
        %v4724 = vpop.f32.mrb[0].mxu0
        %v4725 = vadd.f32 %v4451, %v4724
        %4726 = vmatprep.mubr.bf16.mxu0 0
        %4727 = vmatmul.mubr.bf16.gmra.mrb[0].mxu0 %v4401
        %v4728 = vpop.f32.mrb[0].mxu0
        %v4729 = vadd.f32 %v4447, %v4728
        %v4730 = vpop.f32.mrb[0].mxu0
        %v4731 = vadd.f32 %v4451, %v4730
        %v4732 = vpop.f32.mrb[0].mxu0
        %v4733 = vadd.f32 %v4447, %v4732
        %v4734 = vpop.f32.mrb[0].mxu0
        %v4735 = vadd.f32 %v4451, %v4734
        %4736 = vmatprep.mubr.bf16.mxu0 0
        %4737 = vmatmul.mubr.bf16.gmra.mrb[0].mxu0 %v4402
        %v4738 = vpop.f32.mrb[0].mxu0
        %v4739 = vadd.f32 %v4447, %v4738
        %v4740 = vpop.f32.mrb[0].mxu0
        %v4741 = vadd.f32 %v4451, %v4740
        %v4742 = vpop.f32.mrb[0].mxu0
        %v4743 = vadd.f32 %v4447, %v4742
        %v4744 = vpop.f32.mrb[0].mxu0
        %v4745 = vadd.f32 %v4451, %v4744
        %4746 = vmatprep.mubr.bf16.mxu0 0
        %4747 = vmatmul.mubr.bf16.gmra.mrb[0].mxu0 %v4403
        %v4748 = vpop.f32.mrb[0].mxu0
        %v4749 = vadd.f32 %v4447, %v4748
        %v4750 = vpop.f32.mrb[0].mxu0
        %v4751 = vadd.f32 %v4451, %v4750
        %v4752 = vpop.f32.mrb[0].mxu0
        %v4753 = vadd.f32 %v4447, %v4752
        %v4754 = vpop.f32.mrb[0].mxu0
        %v4755 = vadd.f32 %v4451, %v4754
        %4756 = vmatprep.mubr.bf16.mxu0 0
        %4757 = vmatmul.mubr.bf16.gmra.mrb[0].mxu0 %v4404
        %v4758 = vpop.f32.mrb[0].mxu0
        %v4759 = vadd.f32 %v4447, %v4758
        %v4760 = vpop.f32.mrb[0].mxu0
        %v4761 = vadd.f32 %v4451, %v4760
        %v4762 = vpop.f32.mrb[0].mxu0
        %v4763 = vadd.f32 %v4447, %v4762
        %v4764 = vpop.f32.mrb[0].mxu0
        %v4765 = vadd.f32 %v4451, %v4764
        %4766 = vmatprep.mubr.bf16.mxu0 0
        %4767 = vmatmul.mubr.bf16.gmra.mrb[0].mxu0 %v4405
        %v4768 = vpop.f32.mrb[0].mxu0
        %v4769 = vadd.f32 %v4447, %v4768
        %v4770 = vpop.f32.mrb[0].mxu0
        %v4771 = vadd.f32 %v4451, %v4770
        %v4772 = vpop.f32.mrb[0].mxu0
        %v4773 = vadd.f32 %v4447, %v4772
        %v4774 = vpop.f32.mrb[0].mxu0
        %v4775 = vadd.f32 %v4451, %v4774
        %4776 = vmatprep.mubr.bf16.mxu0 0
        %4777 = vmatmul.mubr.bf16.gmra.mrb[0].mxu0 %v4406
        %v4778 = vpop.f32.mrb[0].mxu0
        %v4779 = vadd.f32 %v4447, %v4778
        %v4780 = vpop.f32.mrb[0].mxu0
        %v4781 = vadd.f32 %v4451, %v4780
        %v4782 = vpop.f32.mrb[0].mxu0
        %v4783 = vadd.f32 %v4447, %v4782
        %v4784 = vpop.f32.mrb[0].mxu0
        %v4785 = vadd.f32 %v4451, %v4784
        %4786 = vmatprep.mubr.bf16.mxu0 0
        %4787 = vmatmul.mubr.bf16.gmra.mrb[0].mxu0 %v4407
        %v4788 = vpop.f32.mrb[0].mxu0
        %v4789 = vadd.f32 %v4447, %v4788
        %v4790 = vpop.f32.mrb[0].mxu0
        %v4791 = vadd.f32 %v4451, %v4790
        %v4792 = vpop.f32.mrb[0].mxu0
        %v4793 = vadd.f32 %v4447, %v4792
        %v4794 = vpop.f32.mrb[0].mxu0
        %v4795 = vadd.f32 %v4451, %v4794
        %4796 = vmatprep.mubr.bf16.mxu0 0
        %4797 = vmatmul.mubr.bf16.gmra.mrb[0].mxu0 %v4408
        %v4798 = vpop.f32.mrb[0].mxu0
        %v4799 = vadd.f32 %v4447, %v4798
        %v4800 = vpop.f32.mrb[0].mxu0
        %v4801 = vadd.f32 %v4451, %v4800
        %v4802 = vpop.f32.mrb[0].mxu0
        %v4803 = vadd.f32 %v4447, %v4802
        %v4804 = vpop.f32.mrb[0].mxu0
        %v4805 = vadd.f32 %v4451, %v4804
        %4806 = vmatprep.mubr.bf16.mxu0 0
        %4807 = vmatmul.mubr.bf16.gmra.mrb[0].mxu0 %v4409
        %v4808 = vpop.f32.mrb[0].mxu0
        %v4809 = vadd.f32 %v4447, %v4808
        %v4810 = vpop.f32.mrb[0].mxu0
        %v4811 = vadd.f32 %v4451, %v4810
        %v4812 = vpop.f32.mrb[0].mxu0
        %v4813 = vadd.f32 %v4447, %v4812
        %v4814 = vpop.f32.mrb[0].mxu0
        %v4815 = vadd.f32 %v4451, %v4814
        %4816 = vdwg.mxu0
        %4817 = vmatprep.subr.bf16.mxu0 %v4563
        %4818 = vmatpush1.bf16.msra.mxu0 %v4562
        %4819 = vmatprep.subr.bf16.mxu0 %v4567
        %4820 = vmatpush1.bf16.msra.mxu0 %v4566
        %4821 = vmatprep.subr.bf16.mxu0 %v4571
        %4822 = vmatpush1.bf16.msra.mxu0 %v4570
        %4823 = vmatprep.subr.bf16.mxu0 %v4575
        %4824 = vmatpush1.bf16.msra.mxu0 %v4574
        %4825 = vmatprep.subr.bf16.mxu0 %v4579
        %4826 = vmatpush1.bf16.msra.mxu0 %v4578
        %4827 = vmatprep.subr.bf16.mxu0 %v4583
        %4828 = vmatpush1.bf16.msra.mxu0 %v4582
        %4829 = vmatprep.subr.bf16.mxu0 %v4587
        %4830 = vmatpush1.bf16.msra.mxu0 %v4586
        %4831 = vmatprep.subr.bf16.mxu0 %v4591
        %4832 = vmatpush1.bf16.msra.mxu0 %v4590
        %4833 = vmatprep.subr.bf16.mxu0 0
        %4834 = vmatpush1.bf16.msra.mxu0 0
        %4835 = vmatprep.subr.bf16.mxu0 0
        %4836 = vmatpush1.bf16.msra.mxu0 0
        %4837 = vmatprep.subr.bf16.mxu0 0
        %4838 = vmatpush1.bf16.msra.mxu0 0
        %4839 = vmatprep.subr.bf16.mxu0 0
        %4840 = vmatpush1.bf16.msra.mxu0 0
        %4841 = vmatprep.subr.bf16.mxu0 0
        %4842 = vmatpush1.bf16.msra.mxu0 0
        %4843 = vmatprep.subr.bf16.mxu0 0
        %4844 = vmatpush1.bf16.msra.mxu0 0
        %4845 = vmatprep.subr.bf16.mxu0 0
        %4846 = vmatpush1.bf16.msra.mxu0 0
        %4847 = vmatprep.subr.bf16.mxu0 0
        %4848 = vmatpush1.bf16.msra.mxu0 0
        %4849 = vmatprep.mubr.bf16.mxu0 0
        %4850 = vmatmul.mubr.bf16.gmra.mrb[0].mxu0 %v4394
        %v4851 = vpop.f32.mrb[0].mxu0
        %v4852 = vadd.f32 %v4455, %v4851
        %v4853 = vpop.f32.mrb[0].mxu0
        %v4854 = vadd.f32 %v4459, %v4853
        %v4855 = vpop.f32.mrb[0].mxu0
        %v4856 = vadd.f32 %v4455, %v4855
        %v4857 = vpop.f32.mrb[0].mxu0
        %v4858 = vadd.f32 %v4459, %v4857
        %4859 = vmatprep.mubr.bf16.mxu0 0
        %4860 = vmatmul.mubr.bf16.gmra.mrb[0].mxu0 %v4395
        %v4861 = vpop.f32.mrb[0].mxu0
        %v4862 = vadd.f32 %v4455, %v4861
        %v4863 = vpop.f32.mrb[0].mxu0
        %v4864 = vadd.f32 %v4459, %v4863
        %v4865 = vpop.f32.mrb[0].mxu0
        %v4866 = vadd.f32 %v4455, %v4865
        %v4867 = vpop.f32.mrb[0].mxu0
        %v4868 = vadd.f32 %v4459, %v4867
        %4869 = vmatprep.mubr.bf16.mxu0 0
        %4870 = vmatmul.mubr.bf16.gmra.mrb[0].mxu0 %v4396
        %v4871 = vpop.f32.mrb[0].mxu0
        %v4872 = vadd.f32 %v4455, %v4871
        %v4873 = vpop.f32.mrb[0].mxu0
        %v4874 = vadd.f32 %v4459, %v4873
        %v4875 = vpop.f32.mrb[0].mxu0
        %v4876 = vadd.f32 %v4455, %v4875
        %v4877 = vpop.f32.mrb[0].mxu0
        %v4878 = vadd.f32 %v4459, %v4877
        %4879 = vmatprep.mubr.bf16.mxu0 0
        %4880 = vmatmul.mubr.bf16.gmra.mrb[0].mxu0 %v4397
        %v4881 = vpop.f32.mrb[0].mxu0
        %v4882 = vadd.f32 %v4455, %v4881
        %v4883 = vpop.f32.mrb[0].mxu0
        %v4884 = vadd.f32 %v4459, %v4883
        %v4885 = vpop.f32.mrb[0].mxu0
        %v4886 = vadd.f32 %v4455, %v4885
        %v4887 = vpop.f32.mrb[0].mxu0
        %v4888 = vadd.f32 %v4459, %v4887
        %4889 = vmatprep.mubr.bf16.mxu0 0
        %4890 = vmatmul.mubr.bf16.gmra.mrb[0].mxu0 %v4398
        %v4891 = vpop.f32.mrb[0].mxu0
        %v4892 = vadd.f32 %v4455, %v4891
        %v4893 = vpop.f32.mrb[0].mxu0
        %v4894 = vadd.f32 %v4459, %v4893
        %v4895 = vpop.f32.mrb[0].mxu0
        %v4896 = vadd.f32 %v4455, %v4895
        %v4897 = vpop.f32.mrb[0].mxu0
        %v4898 = vadd.f32 %v4459, %v4897
        %4899 = vmatprep.mubr.bf16.mxu0 0
        %4900 = vmatmul.mubr.bf16.gmra.mrb[0].mxu0 %v4399
        %v4901 = vpop.f32.mrb[0].mxu0
        %v4902 = vadd.f32 %v4455, %v4901
        %v4903 = vpop.f32.mrb[0].mxu0
        %v4904 = vadd.f32 %v4459, %v4903
        %v4905 = vpop.f32.mrb[0].mxu0
        %v4906 = vadd.f32 %v4455, %v4905
        %v4907 = vpop.f32.mrb[0].mxu0
        %v4908 = vadd.f32 %v4459, %v4907
        %4909 = vmatprep.mubr.bf16.mxu0 0
        %4910 = vmatmul.mubr.bf16.gmra.mrb[0].mxu0 %v4400
        %v4911 = vpop.f32.mrb[0].mxu0
        %v4912 = vadd.f32 %v4455, %v4911
        %v4913 = vpop.f32.mrb[0].mxu0
        %v4914 = vadd.f32 %v4459, %v4913
        %v4915 = vpop.f32.mrb[0].mxu0
        %v4916 = vadd.f32 %v4455, %v4915
        %v4917 = vpop.f32.mrb[0].mxu0
        %v4918 = vadd.f32 %v4459, %v4917
        %4919 = vmatprep.mubr.bf16.mxu0 0
        %4920 = vmatmul.mubr.bf16.gmra.mrb[0].mxu0 %v4401
        %v4921 = vpop.f32.mrb[0].mxu0
        %v4922 = vadd.f32 %v4455, %v4921
        %v4923 = vpop.f32.mrb[0].mxu0
        %v4924 = vadd.f32 %v4459, %v4923
        %v4925 = vpop.f32.mrb[0].mxu0
        %v4926 = vadd.f32 %v4455, %v4925
        %v4927 = vpop.f32.mrb[0].mxu0
        %v4928 = vadd.f32 %v4459, %v4927
        %4929 = vmatprep.mubr.bf16.mxu0 0
        %4930 = vmatmul.mubr.bf16.gmra.mrb[0].mxu0 %v4402
        %v4931 = vpop.f32.mrb[0].mxu0
        %v4932 = vadd.f32 %v4455, %v4931
        %v4933 = vpop.f32.mrb[0].mxu0
        %v4934 = vadd.f32 %v4459, %v4933
        %v4935 = vpop.f32.mrb[0].mxu0
        %v4936 = vadd.f32 %v4455, %v4935
        %v4937 = vpop.f32.mrb[0].mxu0
        %v4938 = vadd.f32 %v4459, %v4937
        %4939 = vmatprep.mubr.bf16.mxu0 0
        %4940 = vmatmul.mubr.bf16.gmra.mrb[0].mxu0 %v4403
        %v4941 = vpop.f32.mrb[0].mxu0
        %v4942 = vadd.f32 %v4455, %v4941
        %v4943 = vpop.f32.mrb[0].mxu0
        %v4944 = vadd.f32 %v4459, %v4943
        %v4945 = vpop.f32.mrb[0].mxu0
        %v4946 = vadd.f32 %v4455, %v4945
        %v4947 = vpop.f32.mrb[0].mxu0
        %v4948 = vadd.f32 %v4459, %v4947
        %4949 = vmatprep.mubr.bf16.mxu0 0
        %4950 = vmatmul.mubr.bf16.gmra.mrb[0].mxu0 %v4404
        %v4951 = vpop.f32.mrb[0].mxu0
        %v4952 = vadd.f32 %v4455, %v4951
        %v4953 = vpop.f32.mrb[0].mxu0
        %v4954 = vadd.f32 %v4459, %v4953
        %v4955 = vpop.f32.mrb[0].mxu0
        %v4956 = vadd.f32 %v4455, %v4955
        %v4957 = vpop.f32.mrb[0].mxu0
        %v4958 = vadd.f32 %v4459, %v4957
        %4959 = vmatprep.mubr.bf16.mxu0 0
        %4960 = vmatmul.mubr.bf16.gmra.mrb[0].mxu0 %v4405
        %v4961 = vpop.f32.mrb[0].mxu0
        %v4962 = vadd.f32 %v4455, %v4961
        %v4963 = vpop.f32.mrb[0].mxu0
        %v4964 = vadd.f32 %v4459, %v4963
        %v4965 = vpop.f32.mrb[0].mxu0
        %v4966 = vadd.f32 %v4455, %v4965
        %v4967 = vpop.f32.mrb[0].mxu0
        %v4968 = vadd.f32 %v4459, %v4967
        %4969 = vmatprep.mubr.bf16.mxu0 0
        %4970 = vmatmul.mubr.bf16.gmra.mrb[0].mxu0 %v4406
        %v4971 = vpop.f32.mrb[0].mxu0
        %v4972 = vadd.f32 %v4455, %v4971
        %v4973 = vpop.f32.mrb[0].mxu0
        %v4974 = vadd.f32 %v4459, %v4973
        %v4975 = vpop.f32.mrb[0].mxu0
        %v4976 = vadd.f32 %v4455, %v4975
        %v4977 = vpop.f32.mrb[0].mxu0
        %v4978 = vadd.f32 %v4459, %v4977
        %4979 = vmatprep.mubr.bf16.mxu0 0
        %4980 = vmatmul.mubr.bf16.gmra.mrb[0].mxu0 %v4407
        %v4981 = vpop.f32.mrb[0].mxu0
        %v4982 = vadd.f32 %v4455, %v4981
        %v4983 = vpop.f32.mrb[0].mxu0
        %v4984 = vadd.f32 %v4459, %v4983
        %v4985 = vpop.f32.mrb[0].mxu0
        %v4986 = vadd.f32 %v4455, %v4985
        %v4987 = vpop.f32.mrb[0].mxu0
        %v4988 = vadd.f32 %v4459, %v4987
        %4989 = vmatprep.mubr.bf16.mxu0 0
        %4990 = vmatmul.mubr.bf16.gmra.mrb[0].mxu0 %v4408
        %v4991 = vpop.f32.mrb[0].mxu0
        %v4992 = vadd.f32 %v4455, %v4991
        %v4993 = vpop.f32.mrb[0].mxu0
        %v4994 = vadd.f32 %v4459, %v4993
        %v4995 = vpop.f32.mrb[0].mxu0
        %v4996 = vadd.f32 %v4455, %v4995
        %v4997 = vpop.f32.mrb[0].mxu0
        %v4998 = vadd.f32 %v4459, %v4997
        %4999 = vmatprep.mubr.bf16.mxu0 0
        %5000 = vmatmul.mubr.bf16.gmra.mrb[0].mxu0 %v4409
        %v5001 = vpop.f32.mrb[0].mxu0
        %v5002 = vadd.f32 %v4455, %v5001
        %v5003 = vpop.f32.mrb[0].mxu0
        %v5004 = vadd.f32 %v4459, %v5003
        %v5005 = vpop.f32.mrb[0].mxu0
        %v5006 = vadd.f32 %v4455, %v5005
        %v5007 = vpop.f32.mrb[0].mxu0
        %v5008 = vadd.f32 %v4459, %v5007
        %5009 = vdwg.mxu0
        %v5010 = vmax.f32 %v4659, 0.0
        %v5011 = vmax.f32 %v4661, 0.0
        %v5012 = vmax.f32 %v4852, 0.0
        %v5013 = vmax.f32 %v4854, 0.0
        %v5014 = vmax.f32 %v4663, 0.0
        %v5015 = vmax.f32 %v4665, 0.0
        %v5016 = vmax.f32 %v4856, 0.0
        %v5017 = vmax.f32 %v4858, 0.0
        %v5018 = vmax.f32 %v4669, 0.0
        %v5019 = vmax.f32 %v4671, 0.0
        %v5020 = vmax.f32 %v4862, 0.0
        %v5021 = vmax.f32 %v4864, 0.0
        %v5022 = vmax.f32 %v4673, 0.0
        %v5023 = vmax.f32 %v4675, 0.0
        %v5024 = vmax.f32 %v4866, 0.0
        %v5025 = vmax.f32 %v4868, 0.0
        %v5026 = vmax.f32 %v4679, 0.0
        %v5027 = vmax.f32 %v4681, 0.0
        %v5028 = vmax.f32 %v4872, 0.0
        %v5029 = vmax.f32 %v4874, 0.0
        %v5030 = vmax.f32 %v4683, 0.0
        %v5031 = vmax.f32 %v4685, 0.0
        %v5032 = vmax.f32 %v4876, 0.0
        %v5033 = vmax.f32 %v4878, 0.0
        %v5034 = vmax.f32 %v4689, 0.0
        %v5035 = vmax.f32 %v4691, 0.0
        %v5036 = vmax.f32 %v4882, 0.0
        %v5037 = vmax.f32 %v4884, 0.0
        %v5038 = vmax.f32 %v4693, 0.0
        %v5039 = vmax.f32 %v4695, 0.0
        %v5040 = vmax.f32 %v4886, 0.0
        %v5041 = vmax.f32 %v4888, 0.0
        %v5042 = vmax.f32 %v4699, 0.0
        %v5043 = vmax.f32 %v4701, 0.0
        %v5044 = vmax.f32 %v4892, 0.0
        %v5045 = vmax.f32 %v4894, 0.0
        %v5046 = vmax.f32 %v4703, 0.0
        %v5047 = vmax.f32 %v4705, 0.0
        %v5048 = vmax.f32 %v4896, 0.0
        %v5049 = vmax.f32 %v4898, 0.0
        %v5050 = vmax.f32 %v4709, 0.0
        %v5051 = vmax.f32 %v4711, 0.0
        %v5052 = vmax.f32 %v4902, 0.0
        %v5053 = vmax.f32 %v4904, 0.0
        %v5054 = vmax.f32 %v4713, 0.0
        %v5055 = vmax.f32 %v4715, 0.0
        %v5056 = vmax.f32 %v4906, 0.0
        %v5057 = vmax.f32 %v4908, 0.0
        %v5058 = vmax.f32 %v4719, 0.0
        %v5059 = vmax.f32 %v4721, 0.0
        %v5060 = vmax.f32 %v4912, 0.0
        %v5061 = vmax.f32 %v4914, 0.0
        %v5062 = vmax.f32 %v4723, 0.0
        %v5063 = vmax.f32 %v4725, 0.0
        %v5064 = vmax.f32 %v4916, 0.0
        %v5065 = vmax.f32 %v4918, 0.0
        %v5066 = vmax.f32 %v4729, 0.0
        %v5067 = vmax.f32 %v4731, 0.0
        %v5068 = vmax.f32 %v4922, 0.0
        %v5069 = vmax.f32 %v4924, 0.0
        %v5070 = vmax.f32 %v4733, 0.0
        %v5071 = vmax.f32 %v4735, 0.0
        %v5072 = vmax.f32 %v4926, 0.0
        %v5073 = vmax.f32 %v4928, 0.0
        %v5074 = vmax.f32 %v4739, 0.0
        %v5075 = vmax.f32 %v4741, 0.0
        %v5076 = vmax.f32 %v4932, 0.0
        %v5077 = vmax.f32 %v4934, 0.0
        %v5078 = vmax.f32 %v4743, 0.0
        %v5079 = vmax.f32 %v4745, 0.0
        %v5080 = vmax.f32 %v4936, 0.0
        %v5081 = vmax.f32 %v4938, 0.0
        %v5082 = vmax.f32 %v4749, 0.0
        %v5083 = vmax.f32 %v4751, 0.0
        %v5084 = vmax.f32 %v4942, 0.0
        %v5085 = vmax.f32 %v4944, 0.0
        %v5086 = vmax.f32 %v4753, 0.0
        %v5087 = vmax.f32 %v4755, 0.0
        %v5088 = vmax.f32 %v4946, 0.0
        %v5089 = vmax.f32 %v4948, 0.0
        %v5090 = vmax.f32 %v4759, 0.0
        %v5091 = vmax.f32 %v4761, 0.0
        %v5092 = vmax.f32 %v4952, 0.0
        %v5093 = vmax.f32 %v4954, 0.0
        %v5094 = vmax.f32 %v4763, 0.0
        %v5095 = vmax.f32 %v4765, 0.0
        %v5096 = vmax.f32 %v4956, 0.0
        %v5097 = vmax.f32 %v4958, 0.0
        %v5098 = vmax.f32 %v4769, 0.0
        %v5099 = vmax.f32 %v4771, 0.0
        %v5100 = vmax.f32 %v4962, 0.0
        %v5101 = vmax.f32 %v4964, 0.0
        %v5102 = vmax.f32 %v4773, 0.0
        %v5103 = vmax.f32 %v4775, 0.0
        %v5104 = vmax.f32 %v4966, 0.0
        %v5105 = vmax.f32 %v4968, 0.0
        %v5106 = vmax.f32 %v4779, 0.0
        %v5107 = vmax.f32 %v4781, 0.0
        %v5108 = vmax.f32 %v4972, 0.0
        %v5109 = vmax.f32 %v4974, 0.0
        %v5110 = vmax.f32 %v4783, 0.0
        %v5111 = vmax.f32 %v4785, 0.0
        %v5112 = vmax.f32 %v4976, 0.0
        %v5113 = vmax.f32 %v4978, 0.0
        %v5114 = vmax.f32 %v4789, 0.0
        %v5115 = vmax.f32 %v4791, 0.0
        %v5116 = vmax.f32 %v4982, 0.0
        %v5117 = vmax.f32 %v4984, 0.0
        %v5118 = vmax.f32 %v4793, 0.0
        %v5119 = vmax.f32 %v4795, 0.0
        %v5120 = vmax.f32 %v4986, 0.0
        %v5121 = vmax.f32 %v4988, 0.0
        %v5122 = vmax.f32 %v4799, 0.0
        %v5123 = vmax.f32 %v4801, 0.0
        %v5124 = vmax.f32 %v4992, 0.0
        %v5125 = vmax.f32 %v4994, 0.0
        %v5126 = vmax.f32 %v4803, 0.0
        %v5127 = vmax.f32 %v4805, 0.0
        %v5128 = vmax.f32 %v4996, 0.0
        %v5129 = vmax.f32 %v4998, 0.0
        %v5130 = vmax.f32 %v4809, 0.0
        %v5131 = vmax.f32 %v4811, 0.0
        %v5132 = vmax.f32 %v5002, 0.0
        %v5133 = vmax.f32 %v5004, 0.0
        %v5134 = vmax.f32 %v4813, 0.0
        %v5135 = vmax.f32 %v4815, 0.0
        %v5136 = vmax.f32 %v5006, 0.0
        %v5137 = vmax.f32 %v5008, 0.0
        %v5138 = vpack.c.bf16 %v5014, %v5010
        %v5139 = vpack.c.bf16 %v5015, %v5011
        %v5140 = vpack.c.bf16 %v5016, %v5012
        %v5141 = vpack.c.bf16 %v5017, %v5013
        %v5142 = vpack.c.bf16 %v5022, %v5018
        %v5143 = vpack.c.bf16 %v5023, %v5019
        %v5144 = vpack.c.bf16 %v5024, %v5020
        %v5145 = vpack.c.bf16 %v5025, %v5021
        %v5146 = vpack.c.bf16 %v5030, %v5026
        %v5147 = vpack.c.bf16 %v5031, %v5027
        %v5148 = vpack.c.bf16 %v5032, %v5028
        %v5149 = vpack.c.bf16 %v5033, %v5029
        %v5150 = vpack.c.bf16 %v5038, %v5034
        %v5151 = vpack.c.bf16 %v5039, %v5035
        %v5152 = vpack.c.bf16 %v5040, %v5036
        %v5153 = vpack.c.bf16 %v5041, %v5037
        %v5154 = vpack.c.bf16 %v5046, %v5042
        %v5155 = vpack.c.bf16 %v5047, %v5043
        %v5156 = vpack.c.bf16 %v5048, %v5044
        %v5157 = vpack.c.bf16 %v5049, %v5045
        %v5158 = vpack.c.bf16 %v5054, %v5050
        %v5159 = vpack.c.bf16 %v5055, %v5051
        %v5160 = vpack.c.bf16 %v5056, %v5052
        %v5161 = vpack.c.bf16 %v5057, %v5053
        %v5162 = vpack.c.bf16 %v5062, %v5058
        %v5163 = vpack.c.bf16 %v5063, %v5059
        %v5164 = vpack.c.bf16 %v5064, %v5060
        %v5165 = vpack.c.bf16 %v5065, %v5061
        %v5166 = vpack.c.bf16 %v5070, %v5066
        %v5167 = vpack.c.bf16 %v5071, %v5067
        %v5168 = vpack.c.bf16 %v5072, %v5068
        %v5169 = vpack.c.bf16 %v5073, %v5069
        %v5170 = vpack.c.bf16 %v5078, %v5074
        %v5171 = vpack.c.bf16 %v5079, %v5075
        %v5172 = vpack.c.bf16 %v5080, %v5076
        %v5173 = vpack.c.bf16 %v5081, %v5077
        %v5174 = vpack.c.bf16 %v5086, %v5082
        %v5175 = vpack.c.bf16 %v5087, %v5083
        %v5176 = vpack.c.bf16 %v5088, %v5084
        %v5177 = vpack.c.bf16 %v5089, %v5085
        %v5178 = vpack.c.bf16 %v5094, %v5090
        %v5179 = vpack.c.bf16 %v5095, %v5091
        %v5180 = vpack.c.bf16 %v5096, %v5092
        %v5181 = vpack.c.bf16 %v5097, %v5093
        %v5182 = vpack.c.bf16 %v5102, %v5098
        %v5183 = vpack.c.bf16 %v5103, %v5099
        %v5184 = vpack.c.bf16 %v5104, %v5100
        %v5185 = vpack.c.bf16 %v5105, %v5101
        %v5186 = vpack.c.bf16 %v5110, %v5106
        %v5187 = vpack.c.bf16 %v5111, %v5107
        %v5188 = vpack.c.bf16 %v5112, %v5108
        %v5189 = vpack.c.bf16 %v5113, %v5109
        %v5190 = vpack.c.bf16 %v5118, %v5114
        %v5191 = vpack.c.bf16 %v5119, %v5115
        %v5192 = vpack.c.bf16 %v5120, %v5116
        %v5193 = vpack.c.bf16 %v5121, %v5117
        %v5194 = vpack.c.bf16 %v5126, %v5122
        %v5195 = vpack.c.bf16 %v5127, %v5123
        %v5196 = vpack.c.bf16 %v5128, %v5124
        %v5197 = vpack.c.bf16 %v5129, %v5125
        %v5198 = vpack.c.bf16 %v5134, %v5130
        %v5199 = vpack.c.bf16 %v5135, %v5131
        %v5200 = vpack.c.bf16 %v5136, %v5132
        %v5201 = vpack.c.bf16 %v5137, %v5133
        %v5266 = vunpack.c.l.b16 %v5138
        %v5267 = vunpack.c.l.b16 %v5139
        %v5268 = vunpack.c.l.b16 %v5140
        %v5269 = vunpack.c.l.b16 %v5141
        %v5270 = vunpack.c.h.b16 %v5138
        %v5271 = vunpack.c.h.b16 %v5139
        %v5272 = vunpack.c.h.b16 %v5140
        %v5273 = vunpack.c.h.b16 %v5141
        %v5274 = vunpack.c.l.b16 %v5142
        %v5275 = vunpack.c.l.b16 %v5143
        %v5276 = vunpack.c.l.b16 %v5144
        %v5277 = vunpack.c.l.b16 %v5145
        %v5278 = vunpack.c.h.b16 %v5142
        %v5279 = vunpack.c.h.b16 %v5143
        %v5280 = vunpack.c.h.b16 %v5144
        %v5281 = vunpack.c.h.b16 %v5145
        %v5282 = vunpack.c.l.b16 %v5146
        %v5283 = vunpack.c.l.b16 %v5147
        %v5284 = vunpack.c.l.b16 %v5148
        %v5285 = vunpack.c.l.b16 %v5149
        %v5286 = vunpack.c.h.b16 %v5146
        %v5287 = vunpack.c.h.b16 %v5147
        %v5288 = vunpack.c.h.b16 %v5148
        %v5289 = vunpack.c.h.b16 %v5149
        %v5290 = vunpack.c.l.b16 %v5150
        %v5291 = vunpack.c.l.b16 %v5151
        %v5292 = vunpack.c.l.b16 %v5152
        %v5293 = vunpack.c.l.b16 %v5153
        %v5294 = vunpack.c.h.b16 %v5150
        %v5295 = vunpack.c.h.b16 %v5151
        %v5296 = vunpack.c.h.b16 %v5152
        %v5297 = vunpack.c.h.b16 %v5153
        %v5298 = vunpack.c.l.b16 %v5154
        %v5299 = vunpack.c.l.b16 %v5155
        %v5300 = vunpack.c.l.b16 %v5156
        %v5301 = vunpack.c.l.b16 %v5157
        %v5302 = vunpack.c.h.b16 %v5154
        %v5303 = vunpack.c.h.b16 %v5155
        %v5304 = vunpack.c.h.b16 %v5156
        %v5305 = vunpack.c.h.b16 %v5157
        %v5306 = vunpack.c.l.b16 %v5158
        %v5307 = vunpack.c.l.b16 %v5159
        %v5308 = vunpack.c.l.b16 %v5160
        %v5309 = vunpack.c.l.b16 %v5161
        %v5310 = vunpack.c.h.b16 %v5158
        %v5311 = vunpack.c.h.b16 %v5159
        %v5312 = vunpack.c.h.b16 %v5160
        %v5313 = vunpack.c.h.b16 %v5161
        %v5314 = vunpack.c.l.b16 %v5162
        %v5315 = vunpack.c.l.b16 %v5163
        %v5316 = vunpack.c.l.b16 %v5164
        %v5317 = vunpack.c.l.b16 %v5165
        %v5318 = vunpack.c.h.b16 %v5162
        %v5319 = vunpack.c.h.b16 %v5163
        %v5320 = vunpack.c.h.b16 %v5164
        %v5321 = vunpack.c.h.b16 %v5165
        %v5322 = vunpack.c.l.b16 %v5166
        %v5323 = vunpack.c.l.b16 %v5167
        %v5324 = vunpack.c.l.b16 %v5168
        %v5325 = vunpack.c.l.b16 %v5169
        %v5326 = vunpack.c.h.b16 %v5166
        %v5327 = vunpack.c.h.b16 %v5167
        %v5328 = vunpack.c.h.b16 %v5168
        %v5329 = vunpack.c.h.b16 %v5169
        %v5330 = vunpack.c.l.b16 %v5170
        %v5331 = vunpack.c.l.b16 %v5171
        %v5332 = vunpack.c.l.b16 %v5172
        %v5333 = vunpack.c.l.b16 %v5173
        %v5334 = vunpack.c.h.b16 %v5170
        %v5335 = vunpack.c.h.b16 %v5171
        %v5336 = vunpack.c.h.b16 %v5172
        %v5337 = vunpack.c.h.b16 %v5173
        %v5338 = vunpack.c.l.b16 %v5174
        %v5339 = vunpack.c.l.b16 %v5175
        %v5340 = vunpack.c.l.b16 %v5176
        %v5341 = vunpack.c.l.b16 %v5177
        %v5342 = vunpack.c.h.b16 %v5174
        %v5343 = vunpack.c.h.b16 %v5175
        %v5344 = vunpack.c.h.b16 %v5176
        %v5345 = vunpack.c.h.b16 %v5177
        %v5346 = vunpack.c.l.b16 %v5178
        %v5347 = vunpack.c.l.b16 %v5179
        %v5348 = vunpack.c.l.b16 %v5180
        %v5349 = vunpack.c.l.b16 %v5181
        %v5350 = vunpack.c.h.b16 %v5178
        %v5351 = vunpack.c.h.b16 %v5179
        %v5352 = vunpack.c.h.b16 %v5180
        %v5353 = vunpack.c.h.b16 %v5181
        %v5354 = vunpack.c.l.b16 %v5182
        %v5355 = vunpack.c.l.b16 %v5183
        %v5356 = vunpack.c.l.b16 %v5184
        %v5357 = vunpack.c.l.b16 %v5185
        %v5358 = vunpack.c.h.b16 %v5182
        %v5359 = vunpack.c.h.b16 %v5183
        %v5360 = vunpack.c.h.b16 %v5184
        %v5361 = vunpack.c.h.b16 %v5185
        %v5362 = vunpack.c.l.b16 %v5186
        %v5363 = vunpack.c.l.b16 %v5187
        %v5364 = vunpack.c.l.b16 %v5188
        %v5365 = vunpack.c.l.b16 %v5189
        %v5366 = vunpack.c.h.b16 %v5186
        %v5367 = vunpack.c.h.b16 %v5187
        %v5368 = vunpack.c.h.b16 %v5188
        %v5369 = vunpack.c.h.b16 %v5189
        %v5370 = vunpack.c.l.b16 %v5190
        %v5371 = vunpack.c.l.b16 %v5191
        %v5372 = vunpack.c.l.b16 %v5192
        %v5373 = vunpack.c.l.b16 %v5193
        %v5374 = vunpack.c.h.b16 %v5190
        %v5375 = vunpack.c.h.b16 %v5191
        %v5376 = vunpack.c.h.b16 %v5192
        %v5377 = vunpack.c.h.b16 %v5193
        %v5378 = vunpack.c.l.b16 %v5194
        %v5379 = vunpack.c.l.b16 %v5195
        %v5380 = vunpack.c.l.b16 %v5196
        %v5381 = vunpack.c.l.b16 %v5197
        %v5382 = vunpack.c.h.b16 %v5194
        %v5383 = vunpack.c.h.b16 %v5195
        %v5384 = vunpack.c.h.b16 %v5196
        %v5385 = vunpack.c.h.b16 %v5197
        %v5386 = vunpack.c.l.b16 %v5198
        %v5387 = vunpack.c.l.b16 %v5199
        %v5388 = vunpack.c.l.b16 %v5200
        %v5389 = vunpack.c.l.b16 %v5201
        %v5390 = vunpack.c.h.b16 %v5198
        %v5391 = vunpack.c.h.b16 %v5199
        %v5392 = vunpack.c.h.b16 %v5200
        %v5393 = vunpack.c.h.b16 %v5201
        %v5394 = vpack.c.b16 %v5267, %v5266
        %v5395 = vpack.c.b16 %v5269, %v5268
        %v5396 = vpack.c.b16 %v5271, %v5270
        %v5397 = vpack.c.b16 %v5273, %v5272
        %v5398 = vpack.c.b16 %v5275, %v5274
        %v5399 = vpack.c.b16 %v5277, %v5276
        %v5400 = vpack.c.b16 %v5279, %v5278
        %v5401 = vpack.c.b16 %v5281, %v5280
        %v5402 = vpack.c.b16 %v5283, %v5282
        %v5403 = vpack.c.b16 %v5285, %v5284
        %v5404 = vpack.c.b16 %v5287, %v5286
        %v5405 = vpack.c.b16 %v5289, %v5288
        %v5406 = vpack.c.b16 %v5291, %v5290
        %v5407 = vpack.c.b16 %v5293, %v5292
        %v5408 = vpack.c.b16 %v5295, %v5294
        %v5409 = vpack.c.b16 %v5297, %v5296
        %v5410 = vpack.c.b16 %v5299, %v5298
        %v5411 = vpack.c.b16 %v5301, %v5300
        %v5412 = vpack.c.b16 %v5303, %v5302
        %v5413 = vpack.c.b16 %v5305, %v5304
        %v5414 = vpack.c.b16 %v5307, %v5306
        %v5415 = vpack.c.b16 %v5309, %v5308
        %v5416 = vpack.c.b16 %v5311, %v5310
        %v5417 = vpack.c.b16 %v5313, %v5312
        %v5418 = vpack.c.b16 %v5315, %v5314
        %v5419 = vpack.c.b16 %v5317, %v5316
        %v5420 = vpack.c.b16 %v5319, %v5318
        %v5421 = vpack.c.b16 %v5321, %v5320
        %v5422 = vpack.c.b16 %v5323, %v5322
        %v5423 = vpack.c.b16 %v5325, %v5324
        %v5424 = vpack.c.b16 %v5327, %v5326
        %v5425 = vpack.c.b16 %v5329, %v5328
        %v5426 = vpack.c.b16 %v5331, %v5330
        %v5427 = vpack.c.b16 %v5333, %v5332
        %v5428 = vpack.c.b16 %v5335, %v5334
        %v5429 = vpack.c.b16 %v5337, %v5336
        %v5430 = vpack.c.b16 %v5339, %v5338
        %v5431 = vpack.c.b16 %v5341, %v5340
        %v5432 = vpack.c.b16 %v5343, %v5342
        %v5433 = vpack.c.b16 %v5345, %v5344
        %v5434 = vpack.c.b16 %v5347, %v5346
        %v5435 = vpack.c.b16 %v5349, %v5348
        %v5436 = vpack.c.b16 %v5351, %v5350
        %v5437 = vpack.c.b16 %v5353, %v5352
        %v5438 = vpack.c.b16 %v5355, %v5354
        %v5439 = vpack.c.b16 %v5357, %v5356
        %v5440 = vpack.c.b16 %v5359, %v5358
        %v5441 = vpack.c.b16 %v5361, %v5360
        %v5442 = vpack.c.b16 %v5363, %v5362
        %v5443 = vpack.c.b16 %v5365, %v5364
        %v5444 = vpack.c.b16 %v5367, %v5366
        %v5445 = vpack.c.b16 %v5369, %v5368
        %v5446 = vpack.c.b16 %v5371, %v5370
        %v5447 = vpack.c.b16 %v5373, %v5372
        %v5448 = vpack.c.b16 %v5375, %v5374
        %v5449 = vpack.c.b16 %v5377, %v5376
        %v5450 = vpack.c.b16 %v5379, %v5378
        %v5451 = vpack.c.b16 %v5381, %v5380
        %v5452 = vpack.c.b16 %v5383, %v5382
        %v5453 = vpack.c.b16 %v5385, %v5384
        %v5454 = vpack.c.b16 %v5387, %v5386
        %v5455 = vpack.c.b16 %v5389, %v5388
        %v5456 = vpack.c.b16 %v5391, %v5390
        %v5457 = vpack.c.b16 %v5393, %v5392
        %5522 = vst [vmem:[%s340] sm:$0xff] %v5394
        %5523 = vst [vmem:[%s340 + $0x8] sm:$0xff] %v5395
        %5524 = vst [vmem:[%s340 + $0x10] sm:$0xff] %v5396
        %5525 = vst [vmem:[%s340 + $0x18] sm:$0xff] %v5397
        %5526 = vst [vmem:[%s340 + $0x20] sm:$0xff] %v5398
        %5527 = vst [vmem:[%s340 + $0x28] sm:$0xff] %v5399
        %5528 = vst [vmem:[%s340 + $0x30] sm:$0xff] %v5400
        %5529 = vst [vmem:[%s340 + $0x38] sm:$0xff] %v5401
        %5530 = vst [vmem:[%s340 + $0x40] sm:$0xff] %v5402
        %5531 = vst [vmem:[%s340 + $0x48] sm:$0xff] %v5403
        %5532 = vst [vmem:[%s340 + $0x50] sm:$0xff] %v5404
        %5533 = vst [vmem:[%s340 + $0x58] sm:$0xff] %v5405
        %5534 = vst [vmem:[%s340 + $0x60] sm:$0xff] %v5406
        %5535 = vst [vmem:[%s340 + $0x68] sm:$0xff] %v5407
        %5536 = vst [vmem:[%s340 + $0x70] sm:$0xff] %v5408
        %5537 = vst [vmem:[%s340 + $0x78] sm:$0xff] %v5409
        %5538 = vst [vmem:[%s340 + $0x80] sm:$0xff] %v5410
        %5539 = vst [vmem:[%s340 + $0x88] sm:$0xff] %v5411
        %5540 = vst [vmem:[%s340 + $0x90] sm:$0xff] %v5412
        %5541 = vst [vmem:[%s340 + $0x98] sm:$0xff] %v5413
        %5542 = vst [vmem:[%s340 + $0xa0] sm:$0xff] %v5414
        %5543 = vst [vmem:[%s340 + $0xa8] sm:$0xff] %v5415
        %5544 = vst [vmem:[%s340 + $0xb0] sm:$0xff] %v5416
        %5545 = vst [vmem:[%s340 + $0xb8] sm:$0xff] %v5417
        %5546 = vst [vmem:[%s340 + $0xc0] sm:$0xff] %v5418
        %5547 = vst [vmem:[%s340 + $0xc8] sm:$0xff] %v5419
        %5548 = vst [vmem:[%s340 + $0xd0] sm:$0xff] %v5420
        %5549 = vst [vmem:[%s340 + $0xd8] sm:$0xff] %v5421
        %5550 = vst [vmem:[%s340 + $0xe0] sm:$0xff] %v5422
        %5551 = vst [vmem:[%s340 + $0xe8] sm:$0xff] %v5423
        %5552 = vst [vmem:[%s340 + $0xf0] sm:$0xff] %v5424
        %5553 = vst [vmem:[%s340 + $0xf8] sm:$0xff] %v5425
        %5554 = vst [vmem:[%s340 + $0x100] sm:$0xff] %v5426
        %5555 = vst [vmem:[%s340 + $0x108] sm:$0xff] %v5427
        %5556 = vst [vmem:[%s340 + $0x110] sm:$0xff] %v5428
        %5557 = vst [vmem:[%s340 + $0x118] sm:$0xff] %v5429
        %5558 = vst [vmem:[%s340 + $0x120] sm:$0xff] %v5430
        %5559 = vst [vmem:[%s340 + $0x128] sm:$0xff] %v5431
        %5560 = vst [vmem:[%s340 + $0x130] sm:$0xff] %v5432
        %5561 = vst [vmem:[%s340 + $0x138] sm:$0xff] %v5433
        %5562 = vst [vmem:[%s340 + $0x140] sm:$0xff] %v5434
        %5563 = vst [vmem:[%s340 + $0x148] sm:$0xff] %v5435
        %5564 = vst [vmem:[%s340 + $0x150] sm:$0xff] %v5436
        %5565 = vst [vmem:[%s340 + $0x158] sm:$0xff] %v5437
        %5566 = vst [vmem:[%s340 + $0x160] sm:$0xff] %v5438
        %5567 = vst [vmem:[%s340 + $0x168] sm:$0xff] %v5439
        %5568 = vst [vmem:[%s340 + $0x170] sm:$0xff] %v5440
        %5569 = vst [vmem:[%s340 + $0x178] sm:$0xff] %v5441
        %5570 = vst [vmem:[%s340 + $0x180] sm:$0xff] %v5442
        %5571 = vst [vmem:[%s340 + $0x188] sm:$0xff] %v5443
        %5572 = vst [vmem:[%s340 + $0x190] sm:$0xff] %v5444
        %5573 = vst [vmem:[%s340 + $0x198] sm:$0xff] %v5445
        %5574 = vst [vmem:[%s340 + $0x1a0] sm:$0xff] %v5446
        %5575 = vst [vmem:[%s340 + $0x1a8] sm:$0xff] %v5447
        %5576 = vst [vmem:[%s340 + $0x1b0] sm:$0xff] %v5448
        %5577 = vst [vmem:[%s340 + $0x1b8] sm:$0xff] %v5449
        %5578 = vst [vmem:[%s340 + $0x1c0] sm:$0xff] %v5450
        %5579 = vst [vmem:[%s340 + $0x1c8] sm:$0xff] %v5451
        %5580 = vst [vmem:[%s340 + $0x1d0] sm:$0xff] %v5452
        %5581 = vst [vmem:[%s340 + $0x1d8] sm:$0xff] %v5453
        %5582 = vst [vmem:[%s340 + $0x1e0] sm:$0xff] %v5454
        %5583 = vst [vmem:[%s340 + $0x1e8] sm:$0xff] %v5455
        %5584 = vst [vmem:[%s340 + $0x1f0] sm:$0xff] %v5456
        %5585 = vst [vmem:[%s340 + $0x1f8] sm:$0xff] %v5457
        %s5586 = sand.u32 %s186, 1
        %s5587 = scalar_lea.sflag [#allocation5], %s5586
        %s5588 = sand.u32 %s186, 1
        %s5589 = smul.addr %s5588, 512
        %s5590 = scalar_lea.vmem [#allocation11], %s5589
        // Predicated region
        $region65: #{tpu_custom_call.1} parent=47 // pred_check
          %p5591 = pneg %p196
        $region66: #{tpu_custom_call.1} parent=47 // pred_check_branch
          %5593 = sbr.rel (%p5591) target = $region68
        $region67: #{tpu_custom_call.1} parent=47 // pred_region
          %s5595 = ssub.s32 8192, 8192
          %5596 = vsyncadd %s5587, %s5595
          %s5597 = smul.addr %s26, 128
          %s5598 = smul.addr %s5597, 64
          %s5599 = scalar_lea.hbm %s7, %s5598
          %s5600 = sshll.u32 %s5590, 4
          %s5601 = int_to_ptr.vmem [resolvable:$true] %s5600
          %5606 = dma.vmem_to_hbm [thread:$0]  %s5601, 8192, %s5599, %s5587, 256, 256, 16
        $region68: #{tpu_custom_call.1} parent=47 // pred_fallthru
          _
      $region48: #{tpu_custom_call.1} parent=5 // pred_fallthru
        _
      %p5607 = scmp.le.s32.totalorder 2, %s21
      // Predicated region
      $region69: #{tpu_custom_call.1} parent=5 // pred_check
        %p5608 = pneg %p5607
      $region70: #{tpu_custom_call.1} parent=5 // pred_check_branch
        %5610 = sbr.rel (%p5608) target = $region72
      $region71: #{tpu_custom_call.1} parent=5 // pred_region
        %s5611 = ssub.s32 %s21, 2
        // Predicated region
        $region73: #{tpu_custom_call.1} parent=71 // pred_check
          %p5612 = pneg %p202
        $region74: #{tpu_custom_call.1} parent=71 // pred_check_branch
          %5614 = sbr.rel (%p5612) target = $region76
        $region75: #{tpu_custom_call.1} parent=71 // pred_region
          %s5615 = sand.u32 %s187, 1
          %s5616 = scalar_lea.sflag [#allocation5], %s5615
          %s5617 = sand.u32 %s187, 1
          %s5618 = smul.addr %s5617, 512
          %s5619 = scalar_lea.vmem [#allocation11], %s5618
          %5620 = dma.done %s5616, 8192
        $region76: #{tpu_custom_call.1} parent=71 // pred_fallthru
          _
      $region72: #{tpu_custom_call.1} parent=5 // pred_fallthru
        _
    $region6: #{tpu_custom_call.1} parent=1 // loop_footer
      %s25 = sadd.s32 1, %s21
    $region7: #{tpu_custom_call.1} parent=1 // loop_footer_branch
      %20 = sbr.rel target = $region3
    $region8: #{tpu_custom_call.1} parent=1 // loop_exit
      _
    %5621 = vsyncpa [#allocation4], 1
    %s5622 = scalar_lea.sflag [#allocation4], 1
    %5623 = vsyncpa %s5622, 1
    %5624 = vsyncpa [#allocation7], 1
    %5625 = vsyncpa [#allocation10], 1
    %5626 = vsyncpa [#allocation5], 1
    %s5627 = scalar_lea.sflag [#allocation5], 1
    %5628 = vsyncpa %s5627, 1

</llo_original>
